<compile_context>
chip_gen: v5e
topology: v5e:2x2
jax: 0.10.0
libtpu: 0.0.40
codegen_flags: <defaults>
</compile_context>

<pallas_src>
import math

import jax
import jax.numpy as jnp
from jax.experimental import pallas as pl
from jax.experimental.pallas import tpu as pltpu

D_MODEL = 256          # bert-mini hidden size == classifier D_in
N_HEADS = 4
HEAD_DIM = D_MODEL // N_HEADS
D_FFN = 1024
N_LAYERS = 4
H_CLS = 50
D_OUT = 2
H_PAD = 128            # lane-dense padding of classifier hidden width (50 -> 128)
OUT_PAD = 128          # lane-dense padding of logits width (2 -> 128)
LN_EPS = 1e-12


def _layer_norm(x, g, b, eps=LN_EPS):
    mu = jnp.mean(x, axis=-1, keepdims=True)
    var = jnp.mean((x - mu) * (x - mu), axis=-1, keepdims=True)
    return (x - mu) * jax.lax.rsqrt(var + eps) * g + b


# ---------------------------------------------------------------------------
# Fused encoder-stack + classifier kernel (grid over layers)
# ---------------------------------------------------------------------------
def make_fused_kernel(B, S):
    BS = B * S

    def kernel(x_ref, maskb_ref,
               wq_ref, bq_ref, wk_ref, bk_ref, wv_ref, bv_ref,
               wo_ref, bo_ref, ln1g_ref, ln1b_ref,
               w1_ref, b1_ref, w2_ref, b2_ref, ln2g_ref, ln2b_ref,
               cw1_ref, cb1_ref, cw2_ref, cb2_ref,
               logits_ref, xc_ref):
        l = pl.program_id(0)

        # Load initial activations into the VMEM carry on the first layer.
        @pl.when(l == 0)
        def _():
            xc_ref[...] = x_ref[...]

        x = xc_ref[...]                         # (B*S, D) f32 activations
        xb = x.astype(jnp.bfloat16)             # bf16 only at the MXU boundary

        # QKV projections: full-width (K=256) MXU dots, bf16 in / f32 acc.
        q = (jnp.dot(xb, wq_ref[...], preferred_element_type=jnp.float32)
             + bq_ref[...]).reshape(B, S, D_MODEL)
        k = (jnp.dot(xb, wk_ref[...], preferred_element_type=jnp.float32)
             + bk_ref[...]).reshape(B, S, D_MODEL)
        v = (jnp.dot(xb, wv_ref[...], preferred_element_type=jnp.float32)
             + bv_ref[...]).reshape(B, S, D_MODEL)

        mask_bias = maskb_ref[...]              # (B, 1, S) additive, f32

        # Per-head attention.  The 64-wide lane slices cost one tiny XLU
        # relayout each; head-major [H, D, 64] weights would remove them but
        # pad 64->128 lanes in HBM (+~25% weight DMA), which is worse at this
        # DMA-bound size, so the slices are kept.
        ctx_heads = []
        for h in range(N_HEADS):
            lo = h * HEAD_DIM
            hi = lo + HEAD_DIM
            qh = q[:, :, lo:hi].astype(jnp.bfloat16)
            kh = k[:, :, lo:hi].astype(jnp.bfloat16)
            vh = v[:, :, lo:hi].astype(jnp.bfloat16)
            # 1/sqrt(head_dim) already folded into wq/bq.
            s = jnp.einsum('bqd,bkd->bqk', qh, kh,
                           preferred_element_type=jnp.float32)
            s = s + mask_bias
            m = jnp.max(s, axis=-1, keepdims=True)
            e = jnp.exp(s - m)                  # f32 softmax math (v5e-safe)
            p = e * pl.reciprocal(jnp.sum(e, axis=-1, keepdims=True), approx=True)
            ctx_heads.append(jnp.einsum('bqk,bkd->bqd', p.astype(jnp.bfloat16), vh,
                                        preferred_element_type=jnp.float32))

        # Concatenate heads -> one full-width K=256 output-projection dot.
        ctx = jnp.concatenate(ctx_heads, axis=-1).reshape(BS, D_MODEL)
        attn = (jnp.dot(ctx.astype(jnp.bfloat16), wo_ref[...],
                        preferred_element_type=jnp.float32) + bo_ref[...])

        # Residual + LayerNorm 1 (f32).
        h1 = _layer_norm(x + attn, ln1g_ref[...], ln1b_ref[...])

        # Feed-forward.
        ffn = (jnp.dot(h1.astype(jnp.bfloat16), w1_ref[...],
                       preferred_element_type=jnp.float32) + b1_ref[...])
        # TODO(synk): PyTorch nn.GELU()/HF BERT use the exact erf GELU; the tanh
        # approximation is kept here (~1e-3 logits drift) for safe TPU lowering.
        ffn = jax.nn.gelu(ffn, approximate=True)
        ffn = (jnp.dot(ffn.astype(jnp.bfloat16), w2_ref[...],
                       preferred_element_type=jnp.float32) + b2_ref[...])

        # Residual + LayerNorm 2, write back the carry.
        y = _layer_norm(h1 + ffn, ln2g_ref[...], ln2b_ref[...])
        xc_ref[...] = y

        # Classifier head fused into the last layer step (lane-dense padded).
        @pl.when(l == pl.num_programs(0) - 1)
        def _():
            cls = y.reshape(B, S, D_MODEL)[:, 0, :]        # (B, D) CLS token
            hcls = (jnp.dot(cls.astype(jnp.bfloat16), cw1_ref[...],
                            preferred_element_type=jnp.float32) + cb1_ref[...])
            hcls = jnp.maximum(hcls, 0.0)
            # TODO(synk): nn.Dropout(0.9) is identity in eval mode; train-mode
            # random masking/scaling is not implemented.
            logits_ref[...] = (jnp.dot(hcls.astype(jnp.bfloat16), cw2_ref[...],
                                       preferred_element_type=jnp.float32)
                               + cb2_ref[...])

    return kernel


def run_fused_encoder_classifier(x2d, mask_bias, pk, B, S):
    """One pallas_call over grid=(N_LAYERS,). Returns padded logits (B, OUT_PAD)."""

    def lspec(a):   # stacked per-layer array (L, a, b): one layer per block
        return pl.BlockSpec((None,) + a.shape[1:], lambda l: (l, 0, 0))

    def fspec(a):   # layer-invariant array: constant block (single DMA)
        zeros = (0,) * a.ndim
        return pl.BlockSpec(a.shape, lambda l, z=zeros: z)

    args = (x2d, mask_bias,
            pk['wq'], pk['bq'], pk['wk'], pk['bk'], pk['wv'], pk['bv'],
            pk['wo'], pk['bo'], pk['ln1_g'], pk['ln1_b'],
            pk['w1'], pk['b1'], pk['w2'], pk['b2'], pk['ln2_g'], pk['ln2_b'],
            pk['cls_w1'], pk['cls_b1'], pk['cls_w2'], pk['cls_b2'])
    in_specs = ([fspec(args[0]), fspec(args[1])]
                + [lspec(a) for a in args[2:18]]
                + [fspec(a) for a in args[18:]])

    return pl.pallas_call(
        make_fused_kernel(B, S),
        grid=(N_LAYERS,),
        in_specs=in_specs,
        out_specs=pl.BlockSpec((B, OUT_PAD), lambda l: (0, 0)),
        out_shape=jax.ShapeDtypeStruct((B, OUT_PAD), jnp.float32),
        scratch_shapes=[pltpu.VMEM((B * S, D_MODEL), jnp.float32)],
        compiler_params=pltpu.CompilerParams(
            dimension_semantics=("arbitrary",),       # layers are sequential
            vmem_limit_bytes=32 * 1024 * 1024),
    )(*args)


# ---------------------------------------------------------------------------
# Deterministic synthetic parameters (PyTorch-equivalent layout: W is [in,out])
# ---------------------------------------------------------------------------
def init_params(key, vocab_size, max_pos):
    ks = iter(jax.random.split(key, 512))
    w = lambda shape, s=0.02: (s * jax.random.normal(next(ks), shape)).astype(jnp.float32)

    params = {
        'word_emb': w((vocab_size, D_MODEL)),
        'pos_emb': w((max_pos, D_MODEL)),
        'type_emb': w((2, D_MODEL)),
        'emb_ln_g': jnp.ones((1, D_MODEL), jnp.float32),
        'emb_ln_b': jnp.zeros((1, D_MODEL), jnp.float32),
        'layers': [],
        'cls_w1': w((D_MODEL, H_CLS)),
        'cls_b1': jnp.zeros((1, H_CLS), jnp.float32),
        'cls_w2': w((H_CLS, D_OUT)),
        'cls_b2': jnp.zeros((1, D_OUT), jnp.float32),
    }
    for _ in range(N_LAYERS):
        params['layers'].append({
            'wq': w((D_MODEL, D_MODEL)), 'bq': jnp.zeros((1, D_MODEL), jnp.float32),
            'wk': w((D_MODEL, D_MODEL)), 'bk': jnp.zeros((1, D_MODEL), jnp.float32),
            'wv': w((D_MODEL, D_MODEL)), 'bv': jnp.zeros((1, D_MODEL), jnp.float32),
            'wo': w((D_MODEL, D_MODEL)), 'bo': jnp.zeros((1, D_MODEL), jnp.float32),
            'ln1_g': jnp.ones((1, D_MODEL), jnp.float32),
            'ln1_b': jnp.zeros((1, D_MODEL), jnp.float32),
            'w1': w((D_MODEL, D_FFN)), 'b1': jnp.zeros((1, D_FFN), jnp.float32),
            'w2': w((D_FFN, D_MODEL)), 'b2': jnp.zeros((1, D_MODEL), jnp.float32),
            'ln2_g': jnp.ones((1, D_MODEL), jnp.float32),
            'ln2_b': jnp.zeros((1, D_MODEL), jnp.float32),
        })
    return params


def pack_params(params):
    """Stack per-layer weights along [L], cast MXU operands to bf16, fold the
    attention scale into Q, and lane-pad the classifier head (done once)."""
    scale = 1.0 / math.sqrt(HEAD_DIM)
    layers = params['layers']
    stack = lambda name: jnp.stack([lp[name] for lp in layers], axis=0)
    bf = lambda a: a.astype(jnp.bfloat16)

    pk = {
        'word_emb': params['word_emb'], 'pos_emb': params['pos_emb'],
        'type_emb': params['type_emb'],
        'emb_ln_g': params['emb_ln_g'], 'emb_ln_b': params['emb_ln_b'],
        # 1/sqrt(head_dim) folded into the Q projection (exact rewrite).
        'wq': bf(stack('wq') * scale), 'bq': stack('bq') * scale,
        'wk': bf(stack('wk')), 'bk': stack('bk'),
        'wv': bf(stack('wv')), 'bv': stack('bv'),
        'wo': bf(stack('wo')), 'bo': stack('bo'),
        'ln1_g': stack('ln1_g'), 'ln1_b': stack('ln1_b'),
        'w1': bf(stack('w1')), 'b1': stack('b1'),
        'w2': bf(stack('w2')), 'b2': stack('b2'),
        'ln2_g': stack('ln2_g'), 'ln2_b': stack('ln2_b'),
    }
    # Zero-padded, lane-dense classifier head (exact: padded units are dead).
    w1c = jnp.zeros((D_MODEL, H_PAD), jnp.float32).at[:, :H_CLS].set(params['cls_w1'])
    b1c = jnp.zeros((1, H_PAD), jnp.float32).at[:, :H_CLS].set(params['cls_b1'])
    w2c = jnp.zeros((H_PAD, OUT_PAD), jnp.float32).at[:H_CLS, :D_OUT].set(params['cls_w2'])
    b2c = jnp.zeros((1, OUT_PAD), jnp.float32).at[:, :D_OUT].set(params['cls_b2'])
    pk.update({'cls_w1': bf(w1c), 'cls_b1': b1c, 'cls_w2': bf(w2c), 'cls_b2': b2c})
    return pk


# ---------------------------------------------------------------------------
# Full forward (embedding glue in plain JAX, everything else one Pallas call)
# ---------------------------------------------------------------------------
def bert_classifier_forward(pk, input_ids, attention_mask):
    B, S = input_ids.shape
    # Embedding lookup + LayerNorm (token_type_ids assumed all zero).
    emb = (jnp.take(pk['word_emb'], input_ids, axis=0)
           + pk['pos_emb'][None, :S, :]
           + pk['type_emb'][0][None, None, :])
    x = _layer_norm(emb.astype(jnp.float32), pk['emb_ln_g'], pk['emb_ln_b'])

    # HF-style additive extended attention mask, pre-broadcast to (B, 1, S).
    mask_bias = ((1.0 - attention_mask.astype(jnp.float32)) * (-1e9))[:, None, :]

    logits_pad = run_fused_encoder_classifier(
        x.reshape(B * S, D_MODEL), mask_bias, pk, B, S)
    return logits_pad[:, :D_OUT]


if __name__ == "__main__":
    key = jax.random.PRNGKey(0)
    k_params, k_ids = jax.random.split(key)

    B, S = 2, 8
    VOCAB, MAX_POS = 128, 64

    params = init_params(k_params, VOCAB, MAX_POS)
    pk = pack_params(params)

    input_ids = jax.random.randint(k_ids, (B, S), 0, VOCAB, dtype=jnp.int32)
    attention_mask = jnp.ones((B, S), dtype=jnp.int32).at[1, 6:].set(0)  # pad tail

    fwd = jax.jit(bert_classifier_forward)
    logits = fwd(pk, input_ids, attention_mask)
    logits = jax.block_until_ready(logits)
    assert logits.shape == (B, D_OUT) and logits.dtype == jnp.float32
    print("KERNEL_OK")
</pallas_src>

<mosaic_0001>
module attributes {stable_mosaic.version = 11 : i64} {
  func.func @kernel(%arg0: i32, %arg1: memref<16x256xf32, #tpu.memory_space<vmem>>, %arg2: memref<2x1x8xf32, #tpu.memory_space<vmem>>, %arg3: memref<1x256x256xbf16, #tpu.memory_space<vmem>>, %arg4: memref<1x1x256xf32, #tpu.memory_space<vmem>>, %arg5: memref<1x256x256xbf16, #tpu.memory_space<vmem>>, %arg6: memref<1x1x256xf32, #tpu.memory_space<vmem>>, %arg7: memref<1x256x256xbf16, #tpu.memory_space<vmem>>, %arg8: memref<1x1x256xf32, #tpu.memory_space<vmem>>, %arg9: memref<1x256x256xbf16, #tpu.memory_space<vmem>>, %arg10: memref<1x1x256xf32, #tpu.memory_space<vmem>>, %arg11: memref<1x1x256xf32, #tpu.memory_space<vmem>>, %arg12: memref<1x1x256xf32, #tpu.memory_space<vmem>>, %arg13: memref<1x256x1024xbf16, #tpu.memory_space<vmem>>, %arg14: memref<1x1x1024xf32, #tpu.memory_space<vmem>>, %arg15: memref<1x1024x256xbf16, #tpu.memory_space<vmem>>, %arg16: memref<1x1x256xf32, #tpu.memory_space<vmem>>, %arg17: memref<1x1x256xf32, #tpu.memory_space<vmem>>, %arg18: memref<1x1x256xf32, #tpu.memory_space<vmem>>, %arg19: memref<256x128xbf16, #tpu.memory_space<vmem>>, %arg20: memref<1x128xf32, #tpu.memory_space<vmem>>, %arg21: memref<128x128xbf16, #tpu.memory_space<vmem>>, %arg22: memref<1x128xf32, #tpu.memory_space<vmem>>, %arg23: memref<2x128xf32, #tpu.memory_space<vmem>>, %arg24: memref<16x256xf32, #tpu.memory_space<vmem>>) attributes {dimension_semantics = [#tpu.dimension_semantics<arbitrary>], iteration_bounds = array<i64: 4>, scalar_prefetch = 0 : i64, scratch_operands = 1 : i64, tpu.core_type = #tpu.core_type<tc>, window_params = [{pipeline_mode = #tpu.pipeline_mode<synchronous>, transform_indices = @transform_0, window_bounds = array<i64: 16, 256>}, {pipeline_mode = #tpu.pipeline_mode<synchronous>, transform_indices = @transform_1, window_bounds = array<i64: 2, 1, 8>}, {transform_indices = @transform_2, window_bounds = array<i64: 1, 256, 256>}, {transform_indices = @transform_3, window_bounds = array<i64: 1, 1, 256>}, {transform_indices = @transform_4, window_bounds = array<i64: 1, 256, 256>}, {transform_indices = @transform_5, window_bounds = array<i64: 1, 1, 256>}, {transform_indices = @transform_6, window_bounds = array<i64: 1, 256, 256>}, {transform_indices = @transform_7, window_bounds = array<i64: 1, 1, 256>}, {transform_indices = @transform_8, window_bounds = array<i64: 1, 256, 256>}, {transform_indices = @transform_9, window_bounds = array<i64: 1, 1, 256>}, {transform_indices = @transform_10, window_bounds = array<i64: 1, 1, 256>}, {transform_indices = @transform_11, window_bounds = array<i64: 1, 1, 256>}, {transform_indices = @transform_12, window_bounds = array<i64: 1, 256, 1024>}, {transform_indices = @transform_13, window_bounds = array<i64: 1, 1, 1024>}, {transform_indices = @transform_14, window_bounds = array<i64: 1, 1024, 256>}, {transform_indices = @transform_15, window_bounds = array<i64: 1, 1, 256>}, {transform_indices = @transform_16, window_bounds = array<i64: 1, 1, 256>}, {transform_indices = @transform_17, window_bounds = array<i64: 1, 1, 256>}, {pipeline_mode = #tpu.pipeline_mode<synchronous>, transform_indices = @transform_18, window_bounds = array<i64: 256, 128>}, {pipeline_mode = #tpu.pipeline_mode<synchronous>, transform_indices = @transform_19, window_bounds = array<i64: 1, 128>}, {pipeline_mode = #tpu.pipeline_mode<synchronous>, transform_indices = @transform_20, window_bounds = array<i64: 128, 128>}, {pipeline_mode = #tpu.pipeline_mode<synchronous>, transform_indices = @transform_21, window_bounds = array<i64: 1, 128>}, {pipeline_mode = #tpu.pipeline_mode<synchronous>, transform_indices = @transform_22, window_bounds = array<i64: 2, 128>}]} {
    %c0_i32 = arith.constant 0 : i32
    %0 = arith.cmpi eq, %arg0, %c0_i32 : i32
    %1 = arith.extui %0 : i1 to i32
    %c0_i32_0 = arith.constant 0 : i32
    %2 = arith.cmpi ne, %1, %c0_i32_0 : i32
    scf.if %2 {
      %c0_91 = arith.constant 0 : index
      %c0_92 = arith.constant 0 : index
      %215 = vector.load %arg1[%c0_91, %c0_92] : memref<16x256xf32, #tpu.memory_space<vmem>>, vector<16x256xf32>
      %c0_93 = arith.constant 0 : index
      %c0_94 = arith.constant 0 : index
      %216 = vector.load %arg24[%c0_93, %c0_94] : memref<16x256xf32, #tpu.memory_space<vmem>>, vector<16x256xf32>
      tpu.vector_store %arg24[%c0_93, %c0_94], %215 {strides = array<i32>} : memref<16x256xf32, #tpu.memory_space<vmem>>, vector<16x256xf32>,
    } else {
    }
    %c0 = arith.constant 0 : index
    %c0_1 = arith.constant 0 : index
    %3 = vector.load %arg24[%c0, %c0_1] : memref<16x256xf32, #tpu.memory_space<vmem>>, vector<16x256xf32>
    %4 = arith.truncf %3 : vector<16x256xf32> to vector<16x256xbf16>
    %c0_2 = arith.constant 0 : index
    %c0_3 = arith.constant 0 : index
    %c0_4 = arith.constant 0 : index
    %5 = vector.load %arg3[%c0_2, %c0_3, %c0_4] : memref<1x256x256xbf16, #tpu.memory_space<vmem>>, vector<1x256x256xbf16>
    %6 = vector.shape_cast %5 : vector<1x256x256xbf16> to vector<256x256xbf16>
    %cst = arith.constant dense<0.000000e+00> : vector<16x256xf32>
    %7 = tpu.matmul %4, %6, %cst {dimension_numbers = #tpu.dot_dimension_numbers<[1], [0], [0], [1], [0, 0, 1, 1], [], []>} : vector<16x256xbf16>, vector<256x256xbf16>, vector<16x256xf32> -> vector<16x256xf32>
    %c0_5 = arith.constant 0 : index
    %c0_6 = arith.constant 0 : index
    %c0_7 = arith.constant 0 : index
    %8 = vector.load %arg4[%c0_5, %c0_6, %c0_7] : memref<1x1x256xf32, #tpu.memory_space<vmem>>, vector<1x1x256xf32>
    %9 = vector.shape_cast %8 : vector<1x1x256xf32> to vector<1x256xf32>
    %10 = vector.broadcast %9 : vector<1x256xf32> to vector<16x256xf32>
    %11 = arith.addf %7, %10 : vector<16x256xf32>
    %12 = vector.shape_cast %11 : vector<16x256xf32> to vector<2x8x256xf32>
    %c0_8 = arith.constant 0 : index
    %c0_9 = arith.constant 0 : index
    %c0_10 = arith.constant 0 : index
    %13 = vector.load %arg5[%c0_8, %c0_9, %c0_10] : memref<1x256x256xbf16, #tpu.memory_space<vmem>>, vector<1x256x256xbf16>
    %14 = vector.shape_cast %13 : vector<1x256x256xbf16> to vector<256x256xbf16>
    %cst_11 = arith.constant dense<0.000000e+00> : vector<16x256xf32>
    %15 = tpu.matmul %4, %14, %cst_11 {dimension_numbers = #tpu.dot_dimension_numbers<[1], [0], [0], [1], [0, 0, 1, 1], [], []>} : vector<16x256xbf16>, vector<256x256xbf16>, vector<16x256xf32> -> vector<16x256xf32>
    %c0_12 = arith.constant 0 : index
    %c0_13 = arith.constant 0 : index
    %c0_14 = arith.constant 0 : index
    %16 = vector.load %arg6[%c0_12, %c0_13, %c0_14] : memref<1x1x256xf32, #tpu.memory_space<vmem>>, vector<1x1x256xf32>
    %17 = vector.shape_cast %16 : vector<1x1x256xf32> to vector<1x256xf32>
    %18 = vector.broadcast %17 : vector<1x256xf32> to vector<16x256xf32>
    %19 = arith.addf %15, %18 : vector<16x256xf32>
    %20 = vector.shape_cast %19 : vector<16x256xf32> to vector<2x8x256xf32>
    %c0_15 = arith.constant 0 : index
    %c0_16 = arith.constant 0 : index
    %c0_17 = arith.constant 0 : index
    %21 = vector.load %arg7[%c0_15, %c0_16, %c0_17] : memref<1x256x256xbf16, #tpu.memory_space<vmem>>, vector<1x256x256xbf16>
    %22 = vector.shape_cast %21 : vector<1x256x256xbf16> to vector<256x256xbf16>
    %cst_18 = arith.constant dense<0.000000e+00> : vector<16x256xf32>
    %23 = tpu.matmul %4, %22, %cst_18 {dimension_numbers = #tpu.dot_dimension_numbers<[1], [0], [0], [1], [0, 0, 1, 1], [], []>} : vector<16x256xbf16>, vector<256x256xbf16>, vector<16x256xf32> -> vector<16x256xf32>
    %c0_19 = arith.constant 0 : index
    %c0_20 = arith.constant 0 : index
    %c0_21 = arith.constant 0 : index
    %24 = vector.load %arg8[%c0_19, %c0_20, %c0_21] : memref<1x1x256xf32, #tpu.memory_space<vmem>>, vector<1x1x256xf32>
    %25 = vector.shape_cast %24 : vector<1x1x256xf32> to vector<1x256xf32>
    %26 = vector.broadcast %25 : vector<1x256xf32> to vector<16x256xf32>
    %27 = arith.addf %23, %26 : vector<16x256xf32>
    %28 = vector.shape_cast %27 : vector<16x256xf32> to vector<2x8x256xf32>
    %c0_22 = arith.constant 0 : index
    %c0_23 = arith.constant 0 : index
    %c0_24 = arith.constant 0 : index
    %29 = vector.load %arg2[%c0_22, %c0_23, %c0_24] : memref<2x1x8xf32, #tpu.memory_space<vmem>>, vector<2x1x8xf32>
    %30 = vector.extract_strided_slice %12 {offsets = [0, 0, 0], sizes = [2, 8, 64], strides = [1, 1, 1]} : vector<2x8x256xf32> to vector<2x8x64xf32>
    %31 = arith.truncf %30 : vector<2x8x64xf32> to vector<2x8x64xbf16>
    %32 = vector.extract_strided_slice %20 {offsets = [0, 0, 0], sizes = [2, 8, 64], strides = [1, 1, 1]} : vector<2x8x256xf32> to vector<2x8x64xf32>
    %33 = arith.truncf %32 : vector<2x8x64xf32> to vector<2x8x64xbf16>
    %34 = vector.extract_strided_slice %28 {offsets = [0, 0, 0], sizes = [2, 8, 64], strides = [1, 1, 1]} : vector<2x8x256xf32> to vector<2x8x64xf32>
    %35 = arith.truncf %34 : vector<2x8x64xf32> to vector<2x8x64xbf16>
    "tpu.trace_start"() <{level = 10 : i32, message = "bqd,bkd->bqk"}> : () -> ()
    %cst_25 = arith.constant dense<0.000000e+00> : vector<2x8x8xf32>
    %36 = tpu.matmul %31, %33, %cst_25 {dimension_numbers = #tpu.dot_dimension_numbers<[2], [2], [1], [1], [0, 0, 0, 1, 1, 1], [0], [0]>} : vector<2x8x64xbf16>, vector<2x8x64xbf16>, vector<2x8x8xf32> -> vector<2x8x8xf32>
    "tpu.trace_stop"() : () -> ()
    %37 = vector.broadcast %29 : vector<2x1x8xf32> to vector<2x8x8xf32>
    %38 = arith.addf %36, %37 : vector<2x8x8xf32>
    %cst_26 = arith.constant dense<0xFF800000> : vector<2x8xf32>
    %39 = vector.multi_reduction <maximumf>, %38, %cst_26 [2] : vector<2x8x8xf32> to vector<2x8xf32>
    %40 = vector.shape_cast %39 : vector<2x8xf32> to vector<2x8x1xf32>
    %41 = vector.broadcast %40 : vector<2x8x1xf32> to vector<2x8x8xf32>
    %42 = arith.subf %38, %41 : vector<2x8x8xf32>
    %43 = math.exp %42 : vector<2x8x8xf32>
    %cst_27 = arith.constant dense<0.000000e+00> : vector<2x8xf32>
    %44 = vector.multi_reduction <add>, %43, %cst_27 [2] : vector<2x8x8xf32> to vector<2x8xf32>
    %45 = vector.shape_cast %44 : vector<2x8xf32> to vector<2x8x1xf32>
    %46 = tpu.reciprocal %45 {approx = true} : vector<2x8x1xf32> -> vector<2x8x1xf32>
    %47 = vector.broadcast %46 : vector<2x8x1xf32> to vector<2x8x8xf32>
    %48 = arith.mulf %43, %47 : vector<2x8x8xf32>
    %49 = arith.truncf %48 : vector<2x8x8xf32> to vector<2x8x8xbf16>
    "tpu.trace_start"() <{level = 10 : i32, message = "bqk,bkd->bqd"}> : () -> ()
    %cst_28 = arith.constant dense<0.000000e+00> : vector<2x8x64xf32>
    %50 = tpu.matmul %49, %35, %cst_28 {dimension_numbers = #tpu.dot_dimension_numbers<[2], [1], [1], [2], [0, 0, 0, 1, 1, 2], [0], [0]>} : vector<2x8x8xbf16>, vector<2x8x64xbf16>, vector<2x8x64xf32> -> vector<2x8x64xf32>
    "tpu.trace_stop"() : () -> ()
    %51 = vector.extract_strided_slice %12 {offsets = [0, 0, 64], sizes = [2, 8, 64], strides = [1, 1, 1]} : vector<2x8x256xf32> to vector<2x8x64xf32>
    %52 = arith.truncf %51 : vector<2x8x64xf32> to vector<2x8x64xbf16>
    %53 = vector.extract_strided_slice %20 {offsets = [0, 0, 64], sizes = [2, 8, 64], strides = [1, 1, 1]} : vector<2x8x256xf32> to vector<2x8x64xf32>
    %54 = arith.truncf %53 : vector<2x8x64xf32> to vector<2x8x64xbf16>
    %55 = vector.extract_strided_slice %28 {offsets = [0, 0, 64], sizes = [2, 8, 64], strides = [1, 1, 1]} : vector<2x8x256xf32> to vector<2x8x64xf32>
    %56 = arith.truncf %55 : vector<2x8x64xf32> to vector<2x8x64xbf16>
    "tpu.trace_start"() <{level = 10 : i32, message = "bqd,bkd->bqk"}> : () -> ()
    %cst_29 = arith.constant dense<0.000000e+00> : vector<2x8x8xf32>
    %57 = tpu.matmul %52, %54, %cst_29 {dimension_numbers = #tpu.dot_dimension_numbers<[2], [2], [1], [1], [0, 0, 0, 1, 1, 1], [0], [0]>} : vector<2x8x64xbf16>, vector<2x8x64xbf16>, vector<2x8x8xf32> -> vector<2x8x8xf32>
    "tpu.trace_stop"() : () -> ()
    %58 = vector.broadcast %29 : vector<2x1x8xf32> to vector<2x8x8xf32>
    %59 = arith.addf %57, %58 : vector<2x8x8xf32>
    %cst_30 = arith.constant dense<0xFF800000> : vector<2x8xf32>
    %60 = vector.multi_reduction <maximumf>, %59, %cst_30 [2] : vector<2x8x8xf32> to vector<2x8xf32>
    %61 = vector.shape_cast %60 : vector<2x8xf32> to vector<2x8x1xf32>
    %62 = vector.broadcast %61 : vector<2x8x1xf32> to vector<2x8x8xf32>
    %63 = arith.subf %59, %62 : vector<2x8x8xf32>
    %64 = math.exp %63 : vector<2x8x8xf32>
    %cst_31 = arith.constant dense<0.000000e+00> : vector<2x8xf32>
    %65 = vector.multi_reduction <add>, %64, %cst_31 [2] : vector<2x8x8xf32> to vector<2x8xf32>
    %66 = vector.shape_cast %65 : vector<2x8xf32> to vector<2x8x1xf32>
    %67 = tpu.reciprocal %66 {approx = true} : vector<2x8x1xf32> -> vector<2x8x1xf32>
    %68 = vector.broadcast %67 : vector<2x8x1xf32> to vector<2x8x8xf32>
    %69 = arith.mulf %64, %68 : vector<2x8x8xf32>
    %70 = arith.truncf %69 : vector<2x8x8xf32> to vector<2x8x8xbf16>
    "tpu.trace_start"() <{level = 10 : i32, message = "bqk,bkd->bqd"}> : () -> ()
    %cst_32 = arith.constant dense<0.000000e+00> : vector<2x8x64xf32>
    %71 = tpu.matmul %70, %56, %cst_32 {dimension_numbers = #tpu.dot_dimension_numbers<[2], [1], [1], [2], [0, 0, 0, 1, 1, 2], [0], [0]>} : vector<2x8x8xbf16>, vector<2x8x64xbf16>, vector<2x8x64xf32> -> vector<2x8x64xf32>
    "tpu.trace_stop"() : () -> ()
    %72 = vector.extract_strided_slice %12 {offsets = [0, 0, 128], sizes = [2, 8, 64], strides = [1, 1, 1]} : vector<2x8x256xf32> to vector<2x8x64xf32>
    %73 = arith.truncf %72 : vector<2x8x64xf32> to vector<2x8x64xbf16>
    %74 = vector.extract_strided_slice %20 {offsets = [0, 0, 128], sizes = [2, 8, 64], strides = [1, 1, 1]} : vector<2x8x256xf32> to vector<2x8x64xf32>
    %75 = arith.truncf %74 : vector<2x8x64xf32> to vector<2x8x64xbf16>
    %76 = vector.extract_strided_slice %28 {offsets = [0, 0, 128], sizes = [2, 8, 64], strides = [1, 1, 1]} : vector<2x8x256xf32> to vector<2x8x64xf32>
    %77 = arith.truncf %76 : vector<2x8x64xf32> to vector<2x8x64xbf16>
    "tpu.trace_start"() <{level = 10 : i32, message = "bqd,bkd->bqk"}> : () -> ()
    %cst_33 = arith.constant dense<0.000000e+00> : vector<2x8x8xf32>
    %78 = tpu.matmul %73, %75, %cst_33 {dimension_numbers = #tpu.dot_dimension_numbers<[2], [2], [1], [1], [0, 0, 0, 1, 1, 1], [0], [0]>} : vector<2x8x64xbf16>, vector<2x8x64xbf16>, vector<2x8x8xf32> -> vector<2x8x8xf32>
    "tpu.trace_stop"() : () -> ()
    %79 = vector.broadcast %29 : vector<2x1x8xf32> to vector<2x8x8xf32>
    %80 = arith.addf %78, %79 : vector<2x8x8xf32>
    %cst_34 = arith.constant dense<0xFF800000> : vector<2x8xf32>
    %81 = vector.multi_reduction <maximumf>, %80, %cst_34 [2] : vector<2x8x8xf32> to vector<2x8xf32>
    %82 = vector.shape_cast %81 : vector<2x8xf32> to vector<2x8x1xf32>
    %83 = vector.broadcast %82 : vector<2x8x1xf32> to vector<2x8x8xf32>
    %84 = arith.subf %80, %83 : vector<2x8x8xf32>
    %85 = math.exp %84 : vector<2x8x8xf32>
    %cst_35 = arith.constant dense<0.000000e+00> : vector<2x8xf32>
    %86 = vector.multi_reduction <add>, %85, %cst_35 [2] : vector<2x8x8xf32> to vector<2x8xf32>
    %87 = vector.shape_cast %86 : vector<2x8xf32> to vector<2x8x1xf32>
    %88 = tpu.reciprocal %87 {approx = true} : vector<2x8x1xf32> -> vector<2x8x1xf32>
    %89 = vector.broadcast %88 : vector<2x8x1xf32> to vector<2x8x8xf32>
    %90 = arith.mulf %85, %89 : vector<2x8x8xf32>
    %91 = arith.truncf %90 : vector<2x8x8xf32> to vector<2x8x8xbf16>
    "tpu.trace_start"() <{level = 10 : i32, message = "bqk,bkd->bqd"}> : () -> ()
    %cst_36 = arith.constant dense<0.000000e+00> : vector<2x8x64xf32>
    %92 = tpu.matmul %91, %77, %cst_36 {dimension_numbers = #tpu.dot_dimension_numbers<[2], [1], [1], [2], [0, 0, 0, 1, 1, 2], [0], [0]>} : vector<2x8x8xbf16>, vector<2x8x64xbf16>, vector<2x8x64xf32> -> vector<2x8x64xf32>
    "tpu.trace_stop"() : () -> ()
    %93 = vector.extract_strided_slice %12 {offsets = [0, 0, 192], sizes = [2, 8, 64], strides = [1, 1, 1]} : vector<2x8x256xf32> to vector<2x8x64xf32>
    %94 = arith.truncf %93 : vector<2x8x64xf32> to vector<2x8x64xbf16>
    %95 = vector.extract_strided_slice %20 {offsets = [0, 0, 192], sizes = [2, 8, 64], strides = [1, 1, 1]} : vector<2x8x256xf32> to vector<2x8x64xf32>
    %96 = arith.truncf %95 : vector<2x8x64xf32> to vector<2x8x64xbf16>
    %97 = vector.extract_strided_slice %28 {offsets = [0, 0, 192], sizes = [2, 8, 64], strides = [1, 1, 1]} : vector<2x8x256xf32> to vector<2x8x64xf32>
    %98 = arith.truncf %97 : vector<2x8x64xf32> to vector<2x8x64xbf16>
    "tpu.trace_start"() <{level = 10 : i32, message = "bqd,bkd->bqk"}> : () -> ()
    %cst_37 = arith.constant dense<0.000000e+00> : vector<2x8x8xf32>
    %99 = tpu.matmul %94, %96, %cst_37 {dimension_numbers = #tpu.dot_dimension_numbers<[2], [2], [1], [1], [0, 0, 0, 1, 1, 1], [0], [0]>} : vector<2x8x64xbf16>, vector<2x8x64xbf16>, vector<2x8x8xf32> -> vector<2x8x8xf32>
    "tpu.trace_stop"() : () -> ()
    %100 = vector.broadcast %29 : vector<2x1x8xf32> to vector<2x8x8xf32>
    %101 = arith.addf %99, %100 : vector<2x8x8xf32>
    %cst_38 = arith.constant dense<0xFF800000> : vector<2x8xf32>
    %102 = vector.multi_reduction <maximumf>, %101, %cst_38 [2] : vector<2x8x8xf32> to vector<2x8xf32>
    %103 = vector.shape_cast %102 : vector<2x8xf32> to vector<2x8x1xf32>
    %104 = vector.broadcast %103 : vector<2x8x1xf32> to vector<2x8x8xf32>
    %105 = arith.subf %101, %104 : vector<2x8x8xf32>
    %106 = math.exp %105 : vector<2x8x8xf32>
    %cst_39 = arith.constant dense<0.000000e+00> : vector<2x8xf32>
    %107 = vector.multi_reduction <add>, %106, %cst_39 [2] : vector<2x8x8xf32> to vector<2x8xf32>
    %108 = vector.shape_cast %107 : vector<2x8xf32> to vector<2x8x1xf32>
    %109 = tpu.reciprocal %108 {approx = true} : vector<2x8x1xf32> -> vector<2x8x1xf32>
    %110 = vector.broadcast %109 : vector<2x8x1xf32> to vector<2x8x8xf32>
    %111 = arith.mulf %106, %110 : vector<2x8x8xf32>
    %112 = arith.truncf %111 : vector<2x8x8xf32> to vector<2x8x8xbf16>
    "tpu.trace_start"() <{level = 10 : i32, message = "bqk,bkd->bqd"}> : () -> ()
    %cst_40 = arith.constant dense<0.000000e+00> : vector<2x8x64xf32>
    %113 = tpu.matmul %112, %98, %cst_40 {dimension_numbers = #tpu.dot_dimension_numbers<[2], [1], [1], [2], [0, 0, 0, 1, 1, 2], [0], [0]>} : vector<2x8x8xbf16>, vector<2x8x64xbf16>, vector<2x8x64xf32> -> vector<2x8x64xf32>
    "tpu.trace_stop"() : () -> ()
    %114 = tpu.concatenate %50, %71, %92, %113 in 2 : vector<2x8x64xf32>, vector<2x8x64xf32>, vector<2x8x64xf32>, vector<2x8x64xf32> -> vector<2x8x256xf32>
    %115 = vector.shape_cast %114 : vector<2x8x256xf32> to vector<16x256xf32>
    %116 = arith.truncf %115 : vector<16x256xf32> to vector<16x256xbf16>
    %c0_41 = arith.constant 0 : index
    %c0_42 = arith.constant 0 : index
    %c0_43 = arith.constant 0 : index
    %117 = vector.load %arg9[%c0_41, %c0_42, %c0_43] : memref<1x256x256xbf16, #tpu.memory_space<vmem>>, vector<1x256x256xbf16>
    %118 = vector.shape_cast %117 : vector<1x256x256xbf16> to vector<256x256xbf16>
    %cst_44 = arith.constant dense<0.000000e+00> : vector<16x256xf32>
    %119 = tpu.matmul %116, %118, %cst_44 {dimension_numbers = #tpu.dot_dimension_numbers<[1], [0], [0], [1], [0, 0, 1, 1], [], []>} : vector<16x256xbf16>, vector<256x256xbf16>, vector<16x256xf32> -> vector<16x256xf32>
    %c0_45 = arith.constant 0 : index
    %c0_46 = arith.constant 0 : index
    %c0_47 = arith.constant 0 : index
    %120 = vector.load %arg10[%c0_45, %c0_46, %c0_47] : memref<1x1x256xf32, #tpu.memory_space<vmem>>, vector<1x1x256xf32>
    %121 = vector.shape_cast %120 : vector<1x1x256xf32> to vector<1x256xf32>
    %122 = vector.broadcast %121 : vector<1x256xf32> to vector<16x256xf32>
    %123 = arith.addf %119, %122 : vector<16x256xf32>
    %124 = arith.addf %3, %123 : vector<16x256xf32>
    %c0_48 = arith.constant 0 : index
    %c0_49 = arith.constant 0 : index
    %c0_50 = arith.constant 0 : index
    %125 = vector.load %arg11[%c0_48, %c0_49, %c0_50] : memref<1x1x256xf32, #tpu.memory_space<vmem>>, vector<1x1x256xf32>
    %126 = vector.shape_cast %125 : vector<1x1x256xf32> to vector<1x256xf32>
    %c0_51 = arith.constant 0 : index
    %c0_52 = arith.constant 0 : index
    %c0_53 = arith.constant 0 : index
    %127 = vector.load %arg12[%c0_51, %c0_52, %c0_53] : memref<1x1x256xf32, #tpu.memory_space<vmem>>, vector<1x1x256xf32>
    %128 = vector.shape_cast %127 : vector<1x1x256xf32> to vector<1x256xf32>
    %cst_54 = arith.constant dense<0.000000e+00> : vector<16xf32>
    %129 = vector.multi_reduction <add>, %124, %cst_54 [1] : vector<16x256xf32> to vector<16xf32>
    %130 = vector.shape_cast %129 : vector<16xf32> to vector<16x1xf32>
    %cst_55 = arith.constant 2.560000e+02 : f32
    %131 = vector.broadcast %cst_55 : f32 to vector<16x1xf32>
    %132 = arith.divf %130, %131 : vector<16x1xf32>
    %133 = vector.broadcast %132 : vector<16x1xf32> to vector<16x256xf32>
    %134 = arith.subf %124, %133 : vector<16x256xf32>
    %135 = vector.broadcast %132 : vector<16x1xf32> to vector<16x256xf32>
    %136 = arith.subf %124, %135 : vector<16x256xf32>
    %137 = arith.mulf %134, %136 : vector<16x256xf32>
    %cst_56 = arith.constant dense<0.000000e+00> : vector<16xf32>
    %138 = vector.multi_reduction <add>, %137, %cst_56 [1] : vector<16x256xf32> to vector<16xf32>
    %139 = vector.shape_cast %138 : vector<16xf32> to vector<16x1xf32>
    %cst_57 = arith.constant 2.560000e+02 : f32
    %140 = vector.broadcast %cst_57 : f32 to vector<16x1xf32>
    %141 = arith.divf %139, %140 : vector<16x1xf32>
    %142 = vector.broadcast %132 : vector<16x1xf32> to vector<16x256xf32>
    %143 = arith.subf %124, %142 : vector<16x256xf32>
    %cst_58 = arith.constant 9.99999996E-13 : f32
    %144 = vector.broadcast %cst_58 : f32 to vector<16x1xf32>
    %145 = arith.addf %141, %144 : vector<16x1xf32>
    %146 = math.rsqrt %145 : vector<16x1xf32>
    %147 = vector.broadcast %146 : vector<16x1xf32> to vector<16x256xf32>
    %148 = arith.mulf %143, %147 : vector<16x256xf32>
    %149 = vector.broadcast %126 : vector<1x256xf32> to vector<16x256xf32>
    %150 = arith.mulf %148, %149 : vector<16x256xf32>
    %151 = vector.broadcast %128 : vector<1x256xf32> to vector<16x256xf32>
    %152 = arith.addf %150, %151 : vector<16x256xf32>
    %153 = arith.truncf %152 : vector<16x256xf32> to vector<16x256xbf16>
    %c0_59 = arith.constant 0 : index
    %c0_60 = arith.constant 0 : index
    %c0_61 = arith.constant 0 : index
    %154 = vector.load %arg13[%c0_59, %c0_60, %c0_61] : memref<1x256x1024xbf16, #tpu.memory_space<vmem>>, vector<1x256x1024xbf16>
    %155 = vector.shape_cast %154 : vector<1x256x1024xbf16> to vector<256x1024xbf16>
    %cst_62 = arith.constant dense<0.000000e+00> : vector<16x1024xf32>
    %156 = tpu.matmul %153, %155, %cst_62 {dimension_numbers = #tpu.dot_dimension_numbers<[1], [0], [0], [1], [0, 0, 1, 1], [], []>} : vector<16x256xbf16>, vector<256x1024xbf16>, vector<16x1024xf32> -> vector<16x1024xf32>
    %c0_63 = arith.constant 0 : index
    %c0_64 = arith.constant 0 : index
    %c0_65 = arith.constant 0 : index
    %157 = vector.load %arg14[%c0_63, %c0_64, %c0_65] : memref<1x1x1024xf32, #tpu.memory_space<vmem>>, vector<1x1x1024xf32>
    %158 = vector.shape_cast %157 : vector<1x1x1024xf32> to vector<1x1024xf32>
    %159 = vector.broadcast %158 : vector<1x1024xf32> to vector<16x1024xf32>
    %160 = arith.addf %156, %159 : vector<16x1024xf32>
    %161 = arith.mulf %160, %160 : vector<16x1024xf32>
    %162 = arith.mulf %160, %161 : vector<16x1024xf32>
    %cst_66 = arith.constant 4.471500e-02 : f32
    %163 = vector.broadcast %cst_66 : f32 to vector<16x1024xf32>
    %164 = arith.mulf %163, %162 : vector<16x1024xf32>
    %165 = arith.addf %160, %164 : vector<16x1024xf32>
    %cst_67 = arith.constant 0.797884583 : f32
    %166 = vector.broadcast %cst_67 : f32 to vector<16x1024xf32>
    %167 = arith.mulf %166, %165 : vector<16x1024xf32>
    %168 = math.tanh %167 : vector<16x1024xf32>
    %cst_68 = arith.constant 1.000000e+00 : f32
    %169 = vector.broadcast %cst_68 : f32 to vector<16x1024xf32>
    %170 = arith.addf %169, %168 : vector<16x1024xf32>
    %cst_69 = arith.constant 5.000000e-01 : f32
    %171 = vector.broadcast %cst_69 : f32 to vector<16x1024xf32>
    %172 = arith.mulf %171, %170 : vector<16x1024xf32>
    %173 = arith.mulf %160, %172 : vector<16x1024xf32>
    %174 = arith.truncf %173 : vector<16x1024xf32> to vector<16x1024xbf16>
    %c0_70 = arith.constant 0 : index
    %c0_71 = arith.constant 0 : index
    %c0_72 = arith.constant 0 : index
    %175 = vector.load %arg15[%c0_70, %c0_71, %c0_72] : memref<1x1024x256xbf16, #tpu.memory_space<vmem>>, vector<1x1024x256xbf16>
    %176 = vector.shape_cast %175 : vector<1x1024x256xbf16> to vector<1024x256xbf16>
    %cst_73 = arith.constant dense<0.000000e+00> : vector<16x256xf32>
    %177 = tpu.matmul %174, %176, %cst_73 {dimension_numbers = #tpu.dot_dimension_numbers<[1], [0], [0], [1], [0, 0, 1, 1], [], []>} : vector<16x1024xbf16>, vector<1024x256xbf16>, vector<16x256xf32> -> vector<16x256xf32>
    %c0_74 = arith.constant 0 : index
    %c0_75 = arith.constant 0 : index
    %c0_76 = arith.constant 0 : index
    %178 = vector.load %arg16[%c0_74, %c0_75, %c0_76] : memref<1x1x256xf32, #tpu.memory_space<vmem>>, vector<1x1x256xf32>
    %179 = vector.shape_cast %178 : vector<1x1x256xf32> to vector<1x256xf32>
    %180 = vector.broadcast %179 : vector<1x256xf32> to vector<16x256xf32>
    %181 = arith.addf %177, %180 : vector<16x256xf32>
    %182 = arith.addf %152, %181 : vector<16x256xf32>
    %c0_77 = arith.constant 0 : index
    %c0_78 = arith.constant 0 : index
    %c0_79 = arith.constant 0 : index
    %183 = vector.load %arg17[%c0_77, %c0_78, %c0_79] : memref<1x1x256xf32, #tpu.memory_space<vmem>>, vector<1x1x256xf32>
    %184 = vector.shape_cast %183 : vector<1x1x256xf32> to vector<1x256xf32>
    %c0_80 = arith.constant 0 : index
    %c0_81 = arith.constant 0 : index
    %c0_82 = arith.constant 0 : index
    %185 = vector.load %arg18[%c0_80, %c0_81, %c0_82] : memref<1x1x256xf32, #tpu.memory_space<vmem>>, vector<1x1x256xf32>
    %186 = vector.shape_cast %185 : vector<1x1x256xf32> to vector<1x256xf32>
    %cst_83 = arith.constant dense<0.000000e+00> : vector<16xf32>
    %187 = vector.multi_reduction <add>, %182, %cst_83 [1] : vector<16x256xf32> to vector<16xf32>
    %188 = vector.shape_cast %187 : vector<16xf32> to vector<16x1xf32>
    %cst_84 = arith.constant 2.560000e+02 : f32
    %189 = vector.broadcast %cst_84 : f32 to vector<16x1xf32>
    %190 = arith.divf %188, %189 : vector<16x1xf32>
    %191 = vector.broadcast %190 : vector<16x1xf32> to vector<16x256xf32>
    %192 = arith.subf %182, %191 : vector<16x256xf32>
    %193 = vector.broadcast %190 : vector<16x1xf32> to vector<16x256xf32>
    %194 = arith.subf %182, %193 : vector<16x256xf32>
    %195 = arith.mulf %192, %194 : vector<16x256xf32>
    %cst_85 = arith.constant dense<0.000000e+00> : vector<16xf32>
    %196 = vector.multi_reduction <add>, %195, %cst_85 [1] : vector<16x256xf32> to vector<16xf32>
    %197 = vector.shape_cast %196 : vector<16xf32> to vector<16x1xf32>
    %cst_86 = arith.constant 2.560000e+02 : f32
    %198 = vector.broadcast %cst_86 : f32 to vector<16x1xf32>
    %199 = arith.divf %197, %198 : vector<16x1xf32>
    %200 = vector.broadcast %190 : vector<16x1xf32> to vector<16x256xf32>
    %201 = arith.subf %182, %200 : vector<16x256xf32>
    %cst_87 = arith.constant 9.99999996E-13 : f32
    %202 = vector.broadcast %cst_87 : f32 to vector<16x1xf32>
    %203 = arith.addf %199, %202 : vector<16x1xf32>
    %204 = math.rsqrt %203 : vector<16x1xf32>
    %205 = vector.broadcast %204 : vector<16x1xf32> to vector<16x256xf32>
    %206 = arith.mulf %201, %205 : vector<16x256xf32>
    %207 = vector.broadcast %184 : vector<1x256xf32> to vector<16x256xf32>
    %208 = arith.mulf %206, %207 : vector<16x256xf32>
    %209 = vector.broadcast %186 : vector<1x256xf32> to vector<16x256xf32>
    %210 = arith.addf %208, %209 : vector<16x256xf32>
    %c0_88 = arith.constant 0 : index
    %c0_89 = arith.constant 0 : index
    %211 = vector.load %arg24[%c0_88, %c0_89] : memref<16x256xf32, #tpu.memory_space<vmem>>, vector<16x256xf32>
    tpu.vector_store %arg24[%c0_88, %c0_89], %210 {strides = array<i32>} : memref<16x256xf32, #tpu.memory_space<vmem>>, vector<16x256xf32>,
    %c3_i32 = arith.constant 3 : i32
    %212 = arith.cmpi eq, %arg0, %c3_i32 : i32
    %213 = arith.extui %212 : i1 to i32
    %c0_i32_90 = arith.constant 0 : i32
    %214 = arith.cmpi ne, %213, %c0_i32_90 : i32
    scf.if %214 {
      %215 = vector.shape_cast %210 : vector<16x256xf32> to vector<2x8x256xf32>
      %216 = vector.extract_strided_slice %215 {offsets = [0, 0, 0], sizes = [2, 1, 256], strides = [1, 1, 1]} : vector<2x8x256xf32> to vector<2x1x256xf32>
      %217 = vector.shape_cast %216 : vector<2x1x256xf32> to vector<2x256xf32>
      %218 = arith.truncf %217 : vector<2x256xf32> to vector<2x256xbf16>
      %c0_91 = arith.constant 0 : index
      %c0_92 = arith.constant 0 : index
      %219 = vector.load %arg19[%c0_91, %c0_92] : memref<256x128xbf16, #tpu.memory_space<vmem>>, vector<256x128xbf16>
      %cst_93 = arith.constant dense<0.000000e+00> : vector<2x128xf32>
      %220 = tpu.matmul %218, %219, %cst_93 {dimension_numbers = #tpu.dot_dimension_numbers<[1], [0], [0], [1], [0, 0, 1, 1], [], []>} : vector<2x256xbf16>, vector<256x128xbf16>, vector<2x128xf32> -> vector<2x128xf32>
      %c0_94 = arith.constant 0 : index
      %c0_95 = arith.constant 0 : index
      %221 = vector.load %arg20[%c0_94, %c0_95] : memref<1x128xf32, #tpu.memory_space<vmem>>, vector<1x128xf32>
      %222 = vector.broadcast %221 : vector<1x128xf32> to vector<2x128xf32>
      %223 = arith.addf %220, %222 : vector<2x128xf32>
      %cst_96 = arith.constant 0.000000e+00 : f32
      %224 = vector.broadcast %cst_96 : f32 to vector<2x128xf32>
      %225 = arith.maximumf %223, %224 : vector<2x128xf32>
      %226 = arith.truncf %225 : vector<2x128xf32> to vector<2x128xbf16>
      %c0_97 = arith.constant 0 : index
      %c0_98 = arith.constant 0 : index
      %227 = vector.load %arg21[%c0_97, %c0_98] : memref<128x128xbf16, #tpu.memory_space<vmem>>, vector<128x128xbf16>
      %cst_99 = arith.constant dense<0.000000e+00> : vector<2x128xf32>
      %228 = tpu.matmul %226, %227, %cst_99 {dimension_numbers = #tpu.dot_dimension_numbers<[1], [0], [0], [1], [0, 0, 1, 1], [], []>} : vector<2x128xbf16>, vector<128x128xbf16>, vector<2x128xf32> -> vector<2x128xf32>
      %c0_100 = arith.constant 0 : index
      %c0_101 = arith.constant 0 : index
      %229 = vector.load %arg22[%c0_100, %c0_101] : memref<1x128xf32, #tpu.memory_space<vmem>>, vector<1x128xf32>
      %230 = vector.broadcast %229 : vector<1x128xf32> to vector<2x128xf32>
      %231 = arith.addf %228, %230 : vector<2x128xf32>
      %c0_102 = arith.constant 0 : index
      %c0_103 = arith.constant 0 : index
      %232 = vector.load %arg23[%c0_102, %c0_103] : memref<2x128xf32, #tpu.memory_space<vmem>>, vector<2x128xf32>
      tpu.vector_store %arg23[%c0_102, %c0_103], %231 {strides = array<i32>} : memref<2x128xf32, #tpu.memory_space<vmem>>, vector<2x128xf32>,
    } else {
    }
    return
  }
  func.func @transform_0(%arg0: i32) -> (i32, i32) {
    %c0_i32 = arith.constant 0 : i32
    %c0_i32_0 = arith.constant 0 : i32
    %c0_i32_1 = arith.constant 0 : i32
    return %c0_i32, %c0_i32_0 : i32, i32
  }
  func.func @transform_1(%arg0: i32) -> (i32, i32, i32) {
    %c0_i32 = arith.constant 0 : i32
    %c0_i32_0 = arith.constant 0 : i32
    %c0_i32_1 = arith.constant 0 : i32
    %c0_i32_2 = arith.constant 0 : i32
    return %c0_i32, %c0_i32_0, %c0_i32_1 : i32, i32, i32
  }
  func.func @transform_2(%arg0: i32) -> (i32, i32, i32) {
    %c0_i32 = arith.constant 0 : i32
    %c0_i32_0 = arith.constant 0 : i32
    %c0_i32_1 = arith.constant 0 : i32
    return %arg0, %c0_i32, %c0_i32_0 : i32, i32, i32
  }
  func.func @transform_3(%arg0: i32) -> (i32, i32, i32) {
    %c0_i32 = arith.constant 0 : i32
    %c0_i32_0 = arith.constant 0 : i32
    %c0_i32_1 = arith.constant 0 : i32
    return %arg0, %c0_i32, %c0_i32_0 : i32, i32, i32
  }
  func.func @transform_4(%arg0: i32) -> (i32, i32, i32) {
    %c0_i32 = arith.constant 0 : i32
    %c0_i32_0 = arith.constant 0 : i32
    %c0_i32_1 = arith.constant 0 : i32
    return %arg0, %c0_i32, %c0_i32_0 : i32, i32, i32
  }
  func.func @transform_5(%arg0: i32) -> (i32, i32, i32) {
    %c0_i32 = arith.constant 0 : i32
    %c0_i32_0 = arith.constant 0 : i32
    %c0_i32_1 = arith.constant 0 : i32
    return %arg0, %c0_i32, %c0_i32_0 : i32, i32, i32
  }
  func.func @transform_6(%arg0: i32) -> (i32, i32, i32) {
    %c0_i32 = arith.constant 0 : i32
    %c0_i32_0 = arith.constant 0 : i32
    %c0_i32_1 = arith.constant 0 : i32
    return %arg0, %c0_i32, %c0_i32_0 : i32, i32, i32
  }
  func.func @transform_7(%arg0: i32) -> (i32, i32, i32) {
    %c0_i32 = arith.constant 0 : i32
    %c0_i32_0 = arith.constant 0 : i32
    %c0_i32_1 = arith.constant 0 : i32
    return %arg0, %c0_i32, %c0_i32_0 : i32, i32, i32
  }
  func.func @transform_8(%arg0: i32) -> (i32, i32, i32) {
    %c0_i32 = arith.constant 0 : i32
    %c0_i32_0 = arith.constant 0 : i32
    %c0_i32_1 = arith.constant 0 : i32
    return %arg0, %c0_i32, %c0_i32_0 : i32, i32, i32
  }
  func.func @transform_9(%arg0: i32) -> (i32, i32, i32) {
    %c0_i32 = arith.constant 0 : i32
    %c0_i32_0 = arith.constant 0 : i32
    %c0_i32_1 = arith.constant 0 : i32
    return %arg0, %c0_i32, %c0_i32_0 : i32, i32, i32
  }
  func.func @transform_10(%arg0: i32) -> (i32, i32, i32) {
    %c0_i32 = arith.constant 0 : i32
    %c0_i32_0 = arith.constant 0 : i32
    %c0_i32_1 = arith.constant 0 : i32
    return %arg0, %c0_i32, %c0_i32_0 : i32, i32, i32
  }
  func.func @transform_11(%arg0: i32) -> (i32, i32, i32) {
    %c0_i32 = arith.constant 0 : i32
    %c0_i32_0 = arith.constant 0 : i32
    %c0_i32_1 = arith.constant 0 : i32
    return %arg0, %c0_i32, %c0_i32_0 : i32, i32, i32
  }
  func.func @transform_12(%arg0: i32) -> (i32, i32, i32) {
    %c0_i32 = arith.constant 0 : i32
    %c0_i32_0 = arith.constant 0 : i32
    %c0_i32_1 = arith.constant 0 : i32
    return %arg0, %c0_i32, %c0_i32_0 : i32, i32, i32
  }
  func.func @transform_13(%arg0: i32) -> (i32, i32, i32) {
    %c0_i32 = arith.constant 0 : i32
    %c0_i32_0 = arith.constant 0 : i32
    %c0_i32_1 = arith.constant 0 : i32
    return %arg0, %c0_i32, %c0_i32_0 : i32, i32, i32
  }
  func.func @transform_14(%arg0: i32) -> (i32, i32, i32) {
    %c0_i32 = arith.constant 0 : i32
    %c0_i32_0 = arith.constant 0 : i32
    %c0_i32_1 = arith.constant 0 : i32
    return %arg0, %c0_i32, %c0_i32_0 : i32, i32, i32
  }
  func.func @transform_15(%arg0: i32) -> (i32, i32, i32) {
    %c0_i32 = arith.constant 0 : i32
    %c0_i32_0 = arith.constant 0 : i32
    %c0_i32_1 = arith.constant 0 : i32
    return %arg0, %c0_i32, %c0_i32_0 : i32, i32, i32
  }
  func.func @transform_16(%arg0: i32) -> (i32, i32, i32) {
    %c0_i32 = arith.constant 0 : i32
    %c0_i32_0 = arith.constant 0 : i32
    %c0_i32_1 = arith.constant 0 : i32
    return %arg0, %c0_i32, %c0_i32_0 : i32, i32, i32
  }
  func.func @transform_17(%arg0: i32) -> (i32, i32, i32) {
    %c0_i32 = arith.constant 0 : i32
    %c0_i32_0 = arith.constant 0 : i32
    %c0_i32_1 = arith.constant 0 : i32
    return %arg0, %c0_i32, %c0_i32_0 : i32, i32, i32
  }
  func.func @transform_18(%arg0: i32) -> (i32, i32) {
    %c0_i32 = arith.constant 0 : i32
    %c0_i32_0 = arith.constant 0 : i32
    %c0_i32_1 = arith.constant 0 : i32
    return %c0_i32, %c0_i32_0 : i32, i32
  }
  func.func @transform_19(%arg0: i32) -> (i32, i32) {
    %c0_i32 = arith.constant 0 : i32
    %c0_i32_0 = arith.constant 0 : i32
    %c0_i32_1 = arith.constant 0 : i32
    return %c0_i32, %c0_i32_0 : i32, i32
  }
  func.func @transform_20(%arg0: i32) -> (i32, i32) {
    %c0_i32 = arith.constant 0 : i32
    %c0_i32_0 = arith.constant 0 : i32
    %c0_i32_1 = arith.constant 0 : i32
    return %c0_i32, %c0_i32_0 : i32, i32
  }
  func.func @transform_21(%arg0: i32) -> (i32, i32) {
    %c0_i32 = arith.constant 0 : i32
    %c0_i32_0 = arith.constant 0 : i32
    %c0_i32_1 = arith.constant 0 : i32
    return %c0_i32, %c0_i32_0 : i32, i32
  }
  func.func @transform_22(%arg0: i32) -> (i32, i32) {
    %c0_i32 = arith.constant 0 : i32
    %c0_i32_0 = arith.constant 0 : i32
    %c0_i32_1 = arith.constant 0 : i32
    return %c0_i32, %c0_i32_0 : i32, i32
  }
}

</mosaic_0001>

<llo_original>
// kernel: bert_classifier_forward.1
$region0: #{bert_classifier_forward.1}
  #allocation0 [shape = 'u32[]', space=smem, size = 0x4, offset = 0x4, fixed_abs, tag = 'smem constant byte address 0x4 - core index']
  #allocation1 [shape = 'u32[72,128]{1,0:T(1,128)}', space=vmem, size = 0x9000, scoped, tag = 'internal scratch']
  #allocation2 [shape = 'f32[16,256]{1,0:T(8,128)}', space=vmem, size = 0x4000, scoped, tag = 'scratch operand']
  %s0 = inlined_call_operand.vmem [shape: f32[16,256], index: 0, kind: input, shape index: {}]
  %s1 = inlined_call_operand.vmem [shape: f32[2,1,8], index: 1, kind: input, shape index: {}]
  %s2 = inlined_call_operand.hbm [shape: bf16[4,256,256], index: 2, kind: input, shape index: {}]
  %s3 = inlined_call_operand.hbm [shape: f32[4,1,256], index: 3, kind: input, shape index: {}]
  %s4 = inlined_call_operand.hbm [shape: bf16[4,256,256], index: 4, kind: input, shape index: {}]
  %s5 = inlined_call_operand.hbm [shape: f32[4,1,256], index: 5, kind: input, shape index: {}]
  %s6 = inlined_call_operand.hbm [shape: bf16[4,256,256], index: 6, kind: input, shape index: {}]
  %s7 = inlined_call_operand.hbm [shape: f32[4,1,256], index: 7, kind: input, shape index: {}]
  %s8 = inlined_call_operand.hbm [shape: bf16[4,256,256], index: 8, kind: input, shape index: {}]
  %s9 = inlined_call_operand.hbm [shape: f32[4,1,256], index: 9, kind: input, shape index: {}]
  %s10 = inlined_call_operand.hbm [shape: f32[4,1,256], index: 10, kind: input, shape index: {}]
  %s11 = inlined_call_operand.hbm [shape: f32[4,1,256], index: 11, kind: input, shape index: {}]
  %s12 = inlined_call_operand.hbm [shape: bf16[4,256,1024], index: 12, kind: input, shape index: {}]
  %s13 = inlined_call_operand.hbm [shape: f32[4,1,1024], index: 13, kind: input, shape index: {}]
  %s14 = inlined_call_operand.hbm [shape: bf16[4,1024,256], index: 14, kind: input, shape index: {}]
  %s15 = inlined_call_operand.hbm [shape: f32[4,1,256], index: 15, kind: input, shape index: {}]
  %s16 = inlined_call_operand.hbm [shape: f32[4,1,256], index: 16, kind: input, shape index: {}]
  %s17 = inlined_call_operand.hbm [shape: f32[4,1,256], index: 17, kind: input, shape index: {}]
  %s18 = inlined_call_operand.hbm [shape: bf16[256,128], index: 18, kind: input, shape index: {}]
  %s19 = inlined_call_operand.hbm [shape: f32[1,128], index: 19, kind: input, shape index: {}]
  %s20 = inlined_call_operand.hbm [shape: bf16[128,128], index: 20, kind: input, shape index: {}]
  %s21 = inlined_call_operand.hbm [shape: f32[1,128], index: 21, kind: input, shape index: {}]
  %s22 = inlined_call_operand.hbm [shape: f32[2,128], index: 22, kind: output, shape index: {}]
  %s23 = sld [smem:[#allocation0]]
  $region209: #{bert_classifier_forward.1} parent=0
    _
  %s25 = ssub.s32 1, %s23
  %s26 = scalar_select 0, %s25, %s23
  $region1: #{bert_classifier_forward.1} parent=0
    #allocation3 [shape = 'u8[262144]{0}', space=vmem, size = 0x40000, scoped, tag = 'input window, operand 2']
    #allocation4 [shape = 's32[2]{0}', space=sflag, size = 0x8, scoped, tag = 'scoped memory for bert_classifier_forward.1']
    #allocation5 [shape = 's32[2]{0}', space=sflag, size = 0x8, scoped, tag = 'scoped memory for bert_classifier_forward.1']
    #allocation6 [shape = 'u8[2048]{0}', space=vmem, size = 0x800, scoped, tag = 'input window, operand 3']
    #allocation7 [shape = 's32[2]{0}', space=sflag, size = 0x8, scoped, tag = 'scoped memory for bert_classifier_forward.1']
    #allocation8 [shape = 'u8[262144]{0}', space=vmem, size = 0x40000, scoped, tag = 'input window, operand 4']
    #allocation9 [shape = 'u8[2048]{0}', space=vmem, size = 0x800, scoped, tag = 'input window, operand 5']
    #allocation10 [shape = 's32[2]{0}', space=sflag, size = 0x8, scoped, tag = 'scoped memory for bert_classifier_forward.1']
    #allocation11 [shape = 'u8[262144]{0}', space=vmem, size = 0x40000, scoped, tag = 'input window, operand 6']
    #allocation12 [shape = 'u8[2048]{0}', space=vmem, size = 0x800, scoped, tag = 'input window, operand 7']
    #allocation13 [shape = 's32[2]{0}', space=sflag, size = 0x8, scoped, tag = 'scoped memory for bert_classifier_forward.1']
    #allocation14 [shape = 'u8[262144]{0}', space=vmem, size = 0x40000, scoped, tag = 'input window, operand 8']
    #allocation15 [shape = 'u8[2048]{0}', space=vmem, size = 0x800, scoped, tag = 'input window, operand 9']
    #allocation16 [shape = 's32[2]{0}', space=sflag, size = 0x8, scoped, tag = 'scoped memory for bert_classifier_forward.1']
    #allocation17 [shape = 'u8[2048]{0}', space=vmem, size = 0x800, scoped, tag = 'input window, operand 10']
    #allocation18 [shape = 'u8[2048]{0}', space=vmem, size = 0x800, scoped, tag = 'input window, operand 11']
    #allocation19 [shape = 's32[2]{0}', space=sflag, size = 0x8, scoped, tag = 'scoped memory for bert_classifier_forward.1']
    #allocation20 [shape = 'u8[1048576]{0}', space=vmem, size = 0x100000, scoped, tag = 'input window, operand 12']
    #allocation21 [shape = 'u8[8192]{0}', space=vmem, size = 0x2000, scoped, tag = 'input window, operand 13']
    #allocation22 [shape = 's32[2]{0}', space=sflag, size = 0x8, scoped, tag = 'scoped memory for bert_classifier_forward.1']
    #allocation23 [shape = 'u8[1048576]{0}', space=vmem, size = 0x100000, scoped, tag = 'input window, operand 14']
    #allocation24 [shape = 'u8[2048]{0}', space=vmem, size = 0x800, scoped, tag = 'input window, operand 15']
    #allocation25 [shape = 's32[2]{0}', space=sflag, size = 0x8, scoped, tag = 'scoped memory for bert_classifier_forward.1']
    #allocation26 [shape = 'u8[2048]{0}', space=vmem, size = 0x800, scoped, tag = 'input window, operand 16']
    #allocation27 [shape = 'u8[2048]{0}', space=vmem, size = 0x800, scoped, tag = 'input window, operand 17']
    #allocation28 [shape = 's32[2]{0}', space=sflag, size = 0x8, scoped, tag = 'scoped memory for bert_classifier_forward.1']
    #allocation29 [shape = 'u8[65536]{0}', space=vmem, size = 0x10000, scoped, tag = 'input window, operand 18, single buffered']
    #allocation30 [shape = 'u8[512]{0}', space=vmem, size = 0x400, scoped, tag = 'input window, operand 19, single buffered']
    #allocation31 [shape = 's32[1]{0}', space=sflag, size = 0x4, scoped, tag = 'scoped memory for bert_classifier_forward.1']
    #allocation32 [shape = 'u8[32768]{0}', space=vmem, size = 0x8000, scoped, tag = 'input window, operand 20, single buffered']
    #allocation33 [shape = 'u8[512]{0}', space=vmem, size = 0x400, scoped, tag = 'input window, operand 21, single buffered']
    #allocation34 [shape = 's32[1]{0}', space=sflag, size = 0x4, scoped, tag = 'scoped memory for bert_classifier_forward.1']
    #allocation35 [shape = 'u8[1024]{0}', space=vmem, size = 0x400, scoped, tag = 'output window, operand 0, single buffered']
    %27 = vsyncpa [#allocation4], 0
    %s28 = scalar_lea.sflag [#allocation4], 1
    %29 = vsyncpa %s28, 0
    %30 = vsyncpa [#allocation7], 0
    %s31 = scalar_lea.sflag [#allocation7], 1
    %32 = vsyncpa %s31, 0
    %33 = vsyncpa [#allocation10], 0
    %s34 = scalar_lea.sflag [#allocation10], 1
    %35 = vsyncpa %s34, 0
    %36 = vsyncpa [#allocation13], 0
    %s37 = scalar_lea.sflag [#allocation13], 1
    %38 = vsyncpa %s37, 0
    %39 = vsyncpa [#allocation16], 0
    %s40 = scalar_lea.sflag [#allocation16], 1
    %41 = vsyncpa %s40, 0
    %42 = vsyncpa [#allocation19], 0
    %s43 = scalar_lea.sflag [#allocation19], 1
    %44 = vsyncpa %s43, 0
    %45 = vsyncpa [#allocation22], 0
    %s46 = scalar_lea.sflag [#allocation22], 1
    %47 = vsyncpa %s46, 0
    %48 = vsyncpa [#allocation25], 0
    %s49 = scalar_lea.sflag [#allocation25], 1
    %50 = vsyncpa %s49, 0
    %51 = vsyncpa [#allocation28], 0
    %s52 = scalar_lea.sflag [#allocation28], 1
    %53 = vsyncpa %s52, 0
    %54 = vsyncpa [#allocation31], 0
    %55 = vsyncpa [#allocation34], 0
    %56 = vsyncpa [#allocation5], 0
    loop: start=0, step=1, limit=6
    $region2: #{bert_classifier_forward.1} parent=1 // loop_pre_header
      _
    $region3: #{bert_classifier_forward.1} parent=1 // loop_header
      %s58 = sphi 0, %s62
      %p59 = scmp.ge.s32.totalorder %s58, 6
      %s66 = sphi 0, %s66
      %s68 = sphi 0, %s66
      %s69 = sphi 0, %s68
      %s83 = sphi 0, %s69
      %s87 = sphi 0, %s87
      %s89 = sphi 0, %s87
      %s90 = sphi 0, %s89
      %s104 = sphi 0, %s90
      %s110 = sphi 0, %s112
      %s113 = sphi 0, %s110
      %s114 = sphi 0, %s113
      %s130 = sphi 0, %s114
      %s136 = sphi 0, %s138
      %s139 = sphi 0, %s136
      %s140 = sphi 0, %s139
      %s156 = sphi 0, %s140
      %s162 = sphi 0, %s164
      %s165 = sphi 0, %s162
      %s166 = sphi 0, %s165
      %s182 = sphi 0, %s166
      %s188 = sphi 0, %s190
      %s191 = sphi 0, %s188
      %s192 = sphi 0, %s191
      %s208 = sphi 0, %s192
      %s214 = sphi 0, %s216
      %s217 = sphi 0, %s214
      %s218 = sphi 0, %s217
      %s234 = sphi 0, %s218
      %s240 = sphi 0, %s242
      %s243 = sphi 0, %s240
      %s244 = sphi 0, %s243
      %s260 = sphi 0, %s244
      %s266 = sphi 0, %s268
      %s269 = sphi 0, %s266
      %s270 = sphi 0, %s269
      %s286 = sphi 0, %s270
      %s292 = sphi 0, %s294
      %s295 = sphi 0, %s292
      %s296 = sphi 0, %s295
      %s312 = sphi 0, %s296
      %s318 = sphi 0, %s320
      %s321 = sphi 0, %s318
      %s322 = sphi 0, %s321
      %s338 = sphi 0, %s322
      %s344 = sphi 0, %s346
      %s347 = sphi 0, %s344
      %s348 = sphi 0, %s347
      %s364 = sphi 0, %s348
      %s370 = sphi 0, %s372
      %s373 = sphi 0, %s370
      %s374 = sphi 0, %s373
      %s390 = sphi 0, %s374
      %s396 = sphi 0, %s398
      %s399 = sphi 0, %s396
      %s400 = sphi 0, %s399
      %s416 = sphi 0, %s400
      %s422 = sphi 0, %s424
      %s425 = sphi 0, %s422
      %s426 = sphi 0, %s425
      %s442 = sphi 0, %s426
      %s448 = sphi 0, %s450
      %s451 = sphi 0, %s448
      %s452 = sphi 0, %s451
      %s468 = sphi 0, %s452
      %s474 = sphi 0, %s476
      %s477 = sphi 0, %s474
      %s478 = sphi 0, %s477
      %s494 = sphi 0, %s478
      %s500 = sphi 0, %s502
      %s503 = sphi 0, %s500
      %s504 = sphi 0, %s503
      %s520 = sphi 0, %s504
      %s524 = sphi 0, %s524
      %s526 = sphi 0, %s524
      %s527 = sphi 0, %s526
      %s541 = sphi 0, %s527
      %s545 = sphi 0, %s545
      %s547 = sphi 0, %s545
      %s548 = sphi 0, %s547
      %s562 = sphi 0, %s548
      %s566 = sphi 0, %s566
      %s568 = sphi 0, %s566
      %s569 = sphi 0, %s568
      %s583 = sphi 0, %s569
      %s587 = sphi 0, %s587
      %s589 = sphi 0, %s587
      %s590 = sphi 0, %s589
      %s604 = sphi 0, %s590
      %s608 = sphi 0, %s608
      %s610 = sphi 0, %s608
      %s611 = sphi 0, %s610
      %s625 = sphi 0, %s611
    $region4: #{bert_classifier_forward.1} parent=1 // loop_header_branch
      %61 = sbr.rel (%p59) target = $region8
    $region5: #{bert_classifier_forward.1} parent=1 // loop_body
      %s63 = ssub.s32 %s58, 1
      %s64 = ssub.s32 %s58, 2
      %s65 = sadd.s32 %s58, 1
      %s67 = sadd.s32 %s66, 1
      %p70 = scmp.eq.s32.totalorder %s58, 3
      %p71 = scmp.ne.s32.totalorder %s66, %s68
      %p72 = scmp.eq.s32.totalorder %s58, 0
      %p73 = por %p71, %p72
      %p74 = scmp.ne.s32.totalorder %s66, %s68
      %p75 = scmp.eq.s32.totalorder %s63, 3
      %p76 = por %p74, %p75
      %p77 = scmp.ne.s32.totalorder %s68, %s69
      %p78 = scmp.eq.s32.totalorder %s63, 0
      %p79 = por %p77, %p78
      %p80 = scmp.ne.s32.totalorder %s68, %s69
      %p81 = scmp.eq.s32.totalorder %s64, 3
      %p82 = por %p80, %p81
      %p84 = scmp.ne.s32.totalorder %s69, %s83
      %p85 = scmp.eq.s32.totalorder %s64, 0
      %p86 = por %p84, %p85
      %s88 = sadd.s32 %s87, 1
      %p91 = scmp.eq.s32.totalorder %s58, 3
      %p92 = scmp.ne.s32.totalorder %s87, %s89
      %p93 = scmp.eq.s32.totalorder %s58, 0
      %p94 = por %p92, %p93
      %p95 = scmp.ne.s32.totalorder %s87, %s89
      %p96 = scmp.eq.s32.totalorder %s63, 3
      %p97 = por %p95, %p96
      %p98 = scmp.ne.s32.totalorder %s89, %s90
      %p99 = scmp.eq.s32.totalorder %s63, 0
      %p100 = por %p98, %p99
      %p101 = scmp.ne.s32.totalorder %s89, %s90
      %p102 = scmp.eq.s32.totalorder %s64, 3
      %p103 = por %p101, %p102
      %p105 = scmp.ne.s32.totalorder %s90, %s104
      %p106 = scmp.eq.s32.totalorder %s64, 0
      %p107 = por %p105, %p106
      %s108 = ssub.s32 %s58, %s65
      %p109 = scmp.eq.s32.totalorder %s108, 0
      %s111 = sadd.s32 %s110, 1
      %s112 = scalar_select %p109, %s110, %s111
      %p115 = pneg %p109
      %p116 = scmp.eq.s32.totalorder %s58, 3
      %p117 = por %p115, %p116
      %p118 = scmp.ne.s32.totalorder %s110, %s113
      %p119 = scmp.eq.s32.totalorder %s58, 0
      %p120 = por %p118, %p119
      %p121 = scmp.ne.s32.totalorder %s110, %s113
      %p122 = scmp.eq.s32.totalorder %s63, 3
      %p123 = por %p121, %p122
      %p124 = scmp.ne.s32.totalorder %s113, %s114
      %p125 = scmp.eq.s32.totalorder %s63, 0
      %p126 = por %p124, %p125
      %p127 = scmp.ne.s32.totalorder %s113, %s114
      %p128 = scmp.eq.s32.totalorder %s64, 3
      %p129 = por %p127, %p128
      %p131 = scmp.ne.s32.totalorder %s114, %s130
      %p132 = scmp.eq.s32.totalorder %s64, 0
      %p133 = por %p131, %p132
      %s134 = ssub.s32 %s58, %s65
      %p135 = scmp.eq.s32.totalorder %s134, 0
      %s137 = sadd.s32 %s136, 1
      %s138 = scalar_select %p135, %s136, %s137
      %p141 = pneg %p135
      %p142 = scmp.eq.s32.totalorder %s58, 3
      %p143 = por %p141, %p142
      %p144 = scmp.ne.s32.totalorder %s136, %s139
      %p145 = scmp.eq.s32.totalorder %s58, 0
      %p146 = por %p144, %p145
      %p147 = scmp.ne.s32.totalorder %s136, %s139
      %p148 = scmp.eq.s32.totalorder %s63, 3
      %p149 = por %p147, %p148
      %p150 = scmp.ne.s32.totalorder %s139, %s140
      %p151 = scmp.eq.s32.totalorder %s63, 0
      %p152 = por %p150, %p151
      %p153 = scmp.ne.s32.totalorder %s139, %s140
      %p154 = scmp.eq.s32.totalorder %s64, 3
      %p155 = por %p153, %p154
      %p157 = scmp.ne.s32.totalorder %s140, %s156
      %p158 = scmp.eq.s32.totalorder %s64, 0
      %p159 = por %p157, %p158
      %s160 = ssub.s32 %s58, %s65
      %p161 = scmp.eq.s32.totalorder %s160, 0
      %s163 = sadd.s32 %s162, 1
      %s164 = scalar_select %p161, %s162, %s163
      %p167 = pneg %p161
      %p168 = scmp.eq.s32.totalorder %s58, 3
      %p169 = por %p167, %p168
      %p170 = scmp.ne.s32.totalorder %s162, %s165
      %p171 = scmp.eq.s32.totalorder %s58, 0
      %p172 = por %p170, %p171
      %p173 = scmp.ne.s32.totalorder %s162, %s165
      %p174 = scmp.eq.s32.totalorder %s63, 3
      %p175 = por %p173, %p174
      %p176 = scmp.ne.s32.totalorder %s165, %s166
      %p177 = scmp.eq.s32.totalorder %s63, 0
      %p178 = por %p176, %p177
      %p179 = scmp.ne.s32.totalorder %s165, %s166
      %p180 = scmp.eq.s32.totalorder %s64, 3
      %p181 = por %p179, %p180
      %p183 = scmp.ne.s32.totalorder %s166, %s182
      %p184 = scmp.eq.s32.totalorder %s64, 0
      %p185 = por %p183, %p184
      %s186 = ssub.s32 %s58, %s65
      %p187 = scmp.eq.s32.totalorder %s186, 0
      %s189 = sadd.s32 %s188, 1
      %s190 = scalar_select %p187, %s188, %s189
      %p193 = pneg %p187
      %p194 = scmp.eq.s32.totalorder %s58, 3
      %p195 = por %p193, %p194
      %p196 = scmp.ne.s32.totalorder %s188, %s191
      %p197 = scmp.eq.s32.totalorder %s58, 0
      %p198 = por %p196, %p197
      %p199 = scmp.ne.s32.totalorder %s188, %s191
      %p200 = scmp.eq.s32.totalorder %s63, 3
      %p201 = por %p199, %p200
      %p202 = scmp.ne.s32.totalorder %s191, %s192
      %p203 = scmp.eq.s32.totalorder %s63, 0
      %p204 = por %p202, %p203
      %p205 = scmp.ne.s32.totalorder %s191, %s192
      %p206 = scmp.eq.s32.totalorder %s64, 3
      %p207 = por %p205, %p206
      %p209 = scmp.ne.s32.totalorder %s192, %s208
      %p210 = scmp.eq.s32.totalorder %s64, 0
      %p211 = por %p209, %p210
      %s212 = ssub.s32 %s58, %s65
      %p213 = scmp.eq.s32.totalorder %s212, 0
      %s215 = sadd.s32 %s214, 1
      %s216 = scalar_select %p213, %s214, %s215
      %p219 = pneg %p213
      %p220 = scmp.eq.s32.totalorder %s58, 3
      %p221 = por %p219, %p220
      %p222 = scmp.ne.s32.totalorder %s214, %s217
      %p223 = scmp.eq.s32.totalorder %s58, 0
      %p224 = por %p222, %p223
      %p225 = scmp.ne.s32.totalorder %s214, %s217
      %p226 = scmp.eq.s32.totalorder %s63, 3
      %p227 = por %p225, %p226
      %p228 = scmp.ne.s32.totalorder %s217, %s218
      %p229 = scmp.eq.s32.totalorder %s63, 0
      %p230 = por %p228, %p229
      %p231 = scmp.ne.s32.totalorder %s217, %s218
      %p232 = scmp.eq.s32.totalorder %s64, 3
      %p233 = por %p231, %p232
      %p235 = scmp.ne.s32.totalorder %s218, %s234
      %p236 = scmp.eq.s32.totalorder %s64, 0
      %p237 = por %p235, %p236
      %s238 = ssub.s32 %s58, %s65
      %p239 = scmp.eq.s32.totalorder %s238, 0
      %s241 = sadd.s32 %s240, 1
      %s242 = scalar_select %p239, %s240, %s241
      %p245 = pneg %p239
      %p246 = scmp.eq.s32.totalorder %s58, 3
      %p247 = por %p245, %p246
      %p248 = scmp.ne.s32.totalorder %s240, %s243
      %p249 = scmp.eq.s32.totalorder %s58, 0
      %p250 = por %p248, %p249
      %p251 = scmp.ne.s32.totalorder %s240, %s243
      %p252 = scmp.eq.s32.totalorder %s63, 3
      %p253 = por %p251, %p252
      %p254 = scmp.ne.s32.totalorder %s243, %s244
      %p255 = scmp.eq.s32.totalorder %s63, 0
      %p256 = por %p254, %p255
      %p257 = scmp.ne.s32.totalorder %s243, %s244
      %p258 = scmp.eq.s32.totalorder %s64, 3
      %p259 = por %p257, %p258
      %p261 = scmp.ne.s32.totalorder %s244, %s260
      %p262 = scmp.eq.s32.totalorder %s64, 0
      %p263 = por %p261, %p262
      %s264 = ssub.s32 %s58, %s65
      %p265 = scmp.eq.s32.totalorder %s264, 0
      %s267 = sadd.s32 %s266, 1
      %s268 = scalar_select %p265, %s266, %s267
      %p271 = pneg %p265
      %p272 = scmp.eq.s32.totalorder %s58, 3
      %p273 = por %p271, %p272
      %p274 = scmp.ne.s32.totalorder %s266, %s269
      %p275 = scmp.eq.s32.totalorder %s58, 0
      %p276 = por %p274, %p275
      %p277 = scmp.ne.s32.totalorder %s266, %s269
      %p278 = scmp.eq.s32.totalorder %s63, 3
      %p279 = por %p277, %p278
      %p280 = scmp.ne.s32.totalorder %s269, %s270
      %p281 = scmp.eq.s32.totalorder %s63, 0
      %p282 = por %p280, %p281
      %p283 = scmp.ne.s32.totalorder %s269, %s270
      %p284 = scmp.eq.s32.totalorder %s64, 3
      %p285 = por %p283, %p284
      %p287 = scmp.ne.s32.totalorder %s270, %s286
      %p288 = scmp.eq.s32.totalorder %s64, 0
      %p289 = por %p287, %p288
      %s290 = ssub.s32 %s58, %s65
      %p291 = scmp.eq.s32.totalorder %s290, 0
      %s293 = sadd.s32 %s292, 1
      %s294 = scalar_select %p291, %s292, %s293
      %p297 = pneg %p291
      %p298 = scmp.eq.s32.totalorder %s58, 3
      %p299 = por %p297, %p298
      %p300 = scmp.ne.s32.totalorder %s292, %s295
      %p301 = scmp.eq.s32.totalorder %s58, 0
      %p302 = por %p300, %p301
      %p303 = scmp.ne.s32.totalorder %s292, %s295
      %p304 = scmp.eq.s32.totalorder %s63, 3
      %p305 = por %p303, %p304
      %p306 = scmp.ne.s32.totalorder %s295, %s296
      %p307 = scmp.eq.s32.totalorder %s63, 0
      %p308 = por %p306, %p307
      %p309 = scmp.ne.s32.totalorder %s295, %s296
      %p310 = scmp.eq.s32.totalorder %s64, 3
      %p311 = por %p309, %p310
      %p313 = scmp.ne.s32.totalorder %s296, %s312
      %p314 = scmp.eq.s32.totalorder %s64, 0
      %p315 = por %p313, %p314
      %s316 = ssub.s32 %s58, %s65
      %p317 = scmp.eq.s32.totalorder %s316, 0
      %s319 = sadd.s32 %s318, 1
      %s320 = scalar_select %p317, %s318, %s319
      %p323 = pneg %p317
      %p324 = scmp.eq.s32.totalorder %s58, 3
      %p325 = por %p323, %p324
      %p326 = scmp.ne.s32.totalorder %s318, %s321
      %p327 = scmp.eq.s32.totalorder %s58, 0
      %p328 = por %p326, %p327
      %p329 = scmp.ne.s32.totalorder %s318, %s321
      %p330 = scmp.eq.s32.totalorder %s63, 3
      %p331 = por %p329, %p330
      %p332 = scmp.ne.s32.totalorder %s321, %s322
      %p333 = scmp.eq.s32.totalorder %s63, 0
      %p334 = por %p332, %p333
      %p335 = scmp.ne.s32.totalorder %s321, %s322
      %p336 = scmp.eq.s32.totalorder %s64, 3
      %p337 = por %p335, %p336
      %p339 = scmp.ne.s32.totalorder %s322, %s338
      %p340 = scmp.eq.s32.totalorder %s64, 0
      %p341 = por %p339, %p340
      %s342 = ssub.s32 %s58, %s65
      %p343 = scmp.eq.s32.totalorder %s342, 0
      %s345 = sadd.s32 %s344, 1
      %s346 = scalar_select %p343, %s344, %s345
      %p349 = pneg %p343
      %p350 = scmp.eq.s32.totalorder %s58, 3
      %p351 = por %p349, %p350
      %p352 = scmp.ne.s32.totalorder %s344, %s347
      %p353 = scmp.eq.s32.totalorder %s58, 0
      %p354 = por %p352, %p353
      %p355 = scmp.ne.s32.totalorder %s344, %s347
      %p356 = scmp.eq.s32.totalorder %s63, 3
      %p357 = por %p355, %p356
      %p358 = scmp.ne.s32.totalorder %s347, %s348
      %p359 = scmp.eq.s32.totalorder %s63, 0
      %p360 = por %p358, %p359
      %p361 = scmp.ne.s32.totalorder %s347, %s348
      %p362 = scmp.eq.s32.totalorder %s64, 3
      %p363 = por %p361, %p362
      %p365 = scmp.ne.s32.totalorder %s348, %s364
      %p366 = scmp.eq.s32.totalorder %s64, 0
      %p367 = por %p365, %p366
      %s368 = ssub.s32 %s58, %s65
      %p369 = scmp.eq.s32.totalorder %s368, 0
      %s371 = sadd.s32 %s370, 1
      %s372 = scalar_select %p369, %s370, %s371
      %p375 = pneg %p369
      %p376 = scmp.eq.s32.totalorder %s58, 3
      %p377 = por %p375, %p376
      %p378 = scmp.ne.s32.totalorder %s370, %s373
      %p379 = scmp.eq.s32.totalorder %s58, 0
      %p380 = por %p378, %p379
      %p381 = scmp.ne.s32.totalorder %s370, %s373
      %p382 = scmp.eq.s32.totalorder %s63, 3
      %p383 = por %p381, %p382
      %p384 = scmp.ne.s32.totalorder %s373, %s374
      %p385 = scmp.eq.s32.totalorder %s63, 0
      %p386 = por %p384, %p385
      %p387 = scmp.ne.s32.totalorder %s373, %s374
      %p388 = scmp.eq.s32.totalorder %s64, 3
      %p389 = por %p387, %p388
      %p391 = scmp.ne.s32.totalorder %s374, %s390
      %p392 = scmp.eq.s32.totalorder %s64, 0
      %p393 = por %p391, %p392
      %s394 = ssub.s32 %s58, %s65
      %p395 = scmp.eq.s32.totalorder %s394, 0
      %s397 = sadd.s32 %s396, 1
      %s398 = scalar_select %p395, %s396, %s397
      %p401 = pneg %p395
      %p402 = scmp.eq.s32.totalorder %s58, 3
      %p403 = por %p401, %p402
      %p404 = scmp.ne.s32.totalorder %s396, %s399
      %p405 = scmp.eq.s32.totalorder %s58, 0
      %p406 = por %p404, %p405
      %p407 = scmp.ne.s32.totalorder %s396, %s399
      %p408 = scmp.eq.s32.totalorder %s63, 3
      %p409 = por %p407, %p408
      %p410 = scmp.ne.s32.totalorder %s399, %s400
      %p411 = scmp.eq.s32.totalorder %s63, 0
      %p412 = por %p410, %p411
      %p413 = scmp.ne.s32.totalorder %s399, %s400
      %p414 = scmp.eq.s32.totalorder %s64, 3
      %p415 = por %p413, %p414
      %p417 = scmp.ne.s32.totalorder %s400, %s416
      %p418 = scmp.eq.s32.totalorder %s64, 0
      %p419 = por %p417, %p418
      %s420 = ssub.s32 %s58, %s65
      %p421 = scmp.eq.s32.totalorder %s420, 0
      %s423 = sadd.s32 %s422, 1
      %s424 = scalar_select %p421, %s422, %s423
      %p427 = pneg %p421
      %p428 = scmp.eq.s32.totalorder %s58, 3
      %p429 = por %p427, %p428
      %p430 = scmp.ne.s32.totalorder %s422, %s425
      %p431 = scmp.eq.s32.totalorder %s58, 0
      %p432 = por %p430, %p431
      %p433 = scmp.ne.s32.totalorder %s422, %s425
      %p434 = scmp.eq.s32.totalorder %s63, 3
      %p435 = por %p433, %p434
      %p436 = scmp.ne.s32.totalorder %s425, %s426
      %p437 = scmp.eq.s32.totalorder %s63, 0
      %p438 = por %p436, %p437
      %p439 = scmp.ne.s32.totalorder %s425, %s426
      %p440 = scmp.eq.s32.totalorder %s64, 3
      %p441 = por %p439, %p440
      %p443 = scmp.ne.s32.totalorder %s426, %s442
      %p444 = scmp.eq.s32.totalorder %s64, 0
      %p445 = por %p443, %p444
      %s446 = ssub.s32 %s58, %s65
      %p447 = scmp.eq.s32.totalorder %s446, 0
      %s449 = sadd.s32 %s448, 1
      %s450 = scalar_select %p447, %s448, %s449
      %p453 = pneg %p447
      %p454 = scmp.eq.s32.totalorder %s58, 3
      %p455 = por %p453, %p454
      %p456 = scmp.ne.s32.totalorder %s448, %s451
      %p457 = scmp.eq.s32.totalorder %s58, 0
      %p458 = por %p456, %p457
      %p459 = scmp.ne.s32.totalorder %s448, %s451
      %p460 = scmp.eq.s32.totalorder %s63, 3
      %p461 = por %p459, %p460
      %p462 = scmp.ne.s32.totalorder %s451, %s452
      %p463 = scmp.eq.s32.totalorder %s63, 0
      %p464 = por %p462, %p463
      %p465 = scmp.ne.s32.totalorder %s451, %s452
      %p466 = scmp.eq.s32.totalorder %s64, 3
      %p467 = por %p465, %p466
      %p469 = scmp.ne.s32.totalorder %s452, %s468
      %p470 = scmp.eq.s32.totalorder %s64, 0
      %p471 = por %p469, %p470
      %s472 = ssub.s32 %s58, %s65
      %p473 = scmp.eq.s32.totalorder %s472, 0
      %s475 = sadd.s32 %s474, 1
      %s476 = scalar_select %p473, %s474, %s475
      %p479 = pneg %p473
      %p480 = scmp.eq.s32.totalorder %s58, 3
      %p481 = por %p479, %p480
      %p482 = scmp.ne.s32.totalorder %s474, %s477
      %p483 = scmp.eq.s32.totalorder %s58, 0
      %p484 = por %p482, %p483
      %p485 = scmp.ne.s32.totalorder %s474, %s477
      %p486 = scmp.eq.s32.totalorder %s63, 3
      %p487 = por %p485, %p486
      %p488 = scmp.ne.s32.totalorder %s477, %s478
      %p489 = scmp.eq.s32.totalorder %s63, 0
      %p490 = por %p488, %p489
      %p491 = scmp.ne.s32.totalorder %s477, %s478
      %p492 = scmp.eq.s32.totalorder %s64, 3
      %p493 = por %p491, %p492
      %p495 = scmp.ne.s32.totalorder %s478, %s494
      %p496 = scmp.eq.s32.totalorder %s64, 0
      %p497 = por %p495, %p496
      %s498 = ssub.s32 %s58, %s65
      %p499 = scmp.eq.s32.totalorder %s498, 0
      %s501 = sadd.s32 %s500, 1
      %s502 = scalar_select %p499, %s500, %s501
      %p505 = pneg %p499
      %p506 = scmp.eq.s32.totalorder %s58, 3
      %p507 = por %p505, %p506
      %p508 = scmp.ne.s32.totalorder %s500, %s503
      %p509 = scmp.eq.s32.totalorder %s58, 0
      %p510 = por %p508, %p509
      %p511 = scmp.ne.s32.totalorder %s500, %s503
      %p512 = scmp.eq.s32.totalorder %s63, 3
      %p513 = por %p511, %p512
      %p514 = scmp.ne.s32.totalorder %s503, %s504
      %p515 = scmp.eq.s32.totalorder %s63, 0
      %p516 = por %p514, %p515
      %p517 = scmp.ne.s32.totalorder %s503, %s504
      %p518 = scmp.eq.s32.totalorder %s64, 3
      %p519 = por %p517, %p518
      %p521 = scmp.ne.s32.totalorder %s504, %s520
      %p522 = scmp.eq.s32.totalorder %s64, 0
      %p523 = por %p521, %p522
      %s525 = sadd.s32 %s524, 1
      %p528 = scmp.eq.s32.totalorder %s58, 3
      %p529 = scmp.ne.s32.totalorder %s524, %s526
      %p530 = scmp.eq.s32.totalorder %s58, 0
      %p531 = por %p529, %p530
      %p532 = scmp.ne.s32.totalorder %s524, %s526
      %p533 = scmp.eq.s32.totalorder %s63, 3
      %p534 = por %p532, %p533
      %p535 = scmp.ne.s32.totalorder %s526, %s527
      %p536 = scmp.eq.s32.totalorder %s63, 0
      %p537 = por %p535, %p536
      %p538 = scmp.ne.s32.totalorder %s526, %s527
      %p539 = scmp.eq.s32.totalorder %s64, 3
      %p540 = por %p538, %p539
      %p542 = scmp.ne.s32.totalorder %s527, %s541
      %p543 = scmp.eq.s32.totalorder %s64, 0
      %p544 = por %p542, %p543
      %s546 = sadd.s32 %s545, 1
      %p549 = scmp.eq.s32.totalorder %s58, 3
      %p550 = scmp.ne.s32.totalorder %s545, %s547
      %p551 = scmp.eq.s32.totalorder %s58, 0
      %p552 = por %p550, %p551
      %p553 = scmp.ne.s32.totalorder %s545, %s547
      %p554 = scmp.eq.s32.totalorder %s63, 3
      %p555 = por %p553, %p554
      %p556 = scmp.ne.s32.totalorder %s547, %s548
      %p557 = scmp.eq.s32.totalorder %s63, 0
      %p558 = por %p556, %p557
      %p559 = scmp.ne.s32.totalorder %s547, %s548
      %p560 = scmp.eq.s32.totalorder %s64, 3
      %p561 = por %p559, %p560
      %p563 = scmp.ne.s32.totalorder %s548, %s562
      %p564 = scmp.eq.s32.totalorder %s64, 0
      %p565 = por %p563, %p564
      %s567 = sadd.s32 %s566, 1
      %p570 = scmp.eq.s32.totalorder %s58, 3
      %p571 = scmp.ne.s32.totalorder %s566, %s568
      %p572 = scmp.eq.s32.totalorder %s58, 0
      %p573 = por %p571, %p572
      %p574 = scmp.ne.s32.totalorder %s566, %s568
      %p575 = scmp.eq.s32.totalorder %s63, 3
      %p576 = por %p574, %p575
      %p577 = scmp.ne.s32.totalorder %s568, %s569
      %p578 = scmp.eq.s32.totalorder %s63, 0
      %p579 = por %p577, %p578
      %p580 = scmp.ne.s32.totalorder %s568, %s569
      %p581 = scmp.eq.s32.totalorder %s64, 3
      %p582 = por %p580, %p581
      %p584 = scmp.ne.s32.totalorder %s569, %s583
      %p585 = scmp.eq.s32.totalorder %s64, 0
      %p586 = por %p584, %p585
      %s588 = sadd.s32 %s587, 1
      %p591 = scmp.eq.s32.totalorder %s58, 3
      %p592 = scmp.ne.s32.totalorder %s587, %s589
      %p593 = scmp.eq.s32.totalorder %s58, 0
      %p594 = por %p592, %p593
      %p595 = scmp.ne.s32.totalorder %s587, %s589
      %p596 = scmp.eq.s32.totalorder %s63, 3
      %p597 = por %p595, %p596
      %p598 = scmp.ne.s32.totalorder %s589, %s590
      %p599 = scmp.eq.s32.totalorder %s63, 0
      %p600 = por %p598, %p599
      %p601 = scmp.ne.s32.totalorder %s589, %s590
      %p602 = scmp.eq.s32.totalorder %s64, 3
      %p603 = por %p601, %p602
      %p605 = scmp.ne.s32.totalorder %s590, %s604
      %p606 = scmp.eq.s32.totalorder %s64, 0
      %p607 = por %p605, %p606
      %s609 = sadd.s32 %s608, 1
      %p612 = scmp.eq.s32.totalorder %s58, 3
      %p613 = scmp.ne.s32.totalorder %s608, %s610
      %p614 = scmp.eq.s32.totalorder %s58, 0
      %p615 = por %p613, %p614
      %p616 = scmp.ne.s32.totalorder %s608, %s610
      %p617 = scmp.eq.s32.totalorder %s63, 3
      %p618 = por %p616, %p617
      %p619 = scmp.ne.s32.totalorder %s610, %s611
      %p620 = scmp.eq.s32.totalorder %s63, 0
      %p621 = por %p619, %p620
      %p622 = scmp.ne.s32.totalorder %s610, %s611
      %p623 = scmp.eq.s32.totalorder %s64, 3
      %p624 = por %p622, %p623
      %p626 = scmp.ne.s32.totalorder %s611, %s625
      %p627 = scmp.eq.s32.totalorder %s64, 0
      %p628 = por %p626, %p627
      %p629 = scmp.le.s32.totalorder 1, %s58
      %p630 = scmp.lt.s32.totalorder %s58, 5
      %p631 = pnand %p629, %p630
      %p632 = pneg %p631
      // Predicated region
      $region9: #{bert_classifier_forward.1} parent=5 // pred_check
        _
      $region10: #{bert_classifier_forward.1} parent=5 // pred_check_branch
        %634 = sbr.rel (%p631) target = $region12
      $region11: #{bert_classifier_forward.1} parent=5 // pred_region
        %s635 = ssub.s32 %s58, 1
        // Predicated region
        $region13: #{bert_classifier_forward.1} parent=11 // pred_check
          %p636 = pneg %p79
        $region14: #{bert_classifier_forward.1} parent=11 // pred_check_branch
          %638 = sbr.rel (%p636) target = $region16
        $region15: #{bert_classifier_forward.1} parent=11 // pred_region
          _
        $region16: #{bert_classifier_forward.1} parent=11 // pred_fallthru
          _
        // Predicated region
        $region17: #{bert_classifier_forward.1} parent=11 // pred_check
          %p639 = pneg %p100
        $region18: #{bert_classifier_forward.1} parent=11 // pred_check_branch
          %641 = sbr.rel (%p639) target = $region20
        $region19: #{bert_classifier_forward.1} parent=11 // pred_region
          _
        $region20: #{bert_classifier_forward.1} parent=11 // pred_fallthru
          _
        // Predicated region
        $region21: #{bert_classifier_forward.1} parent=11 // pred_check
          %p642 = pneg %p537
        $region22: #{bert_classifier_forward.1} parent=11 // pred_check_branch
          %644 = sbr.rel (%p642) target = $region24
        $region23: #{bert_classifier_forward.1} parent=11 // pred_region
          %646 = vsyncadd [#allocation28], 0
          %s647 = sshll.u32 %s18, 4
          %s648 = int_to_ptr.hbm [resolvable:$true] %s647
          %s649 = sshll.u32 [#allocation29], 4
          %s650 = int_to_ptr.vmem [resolvable:$true] %s649
          %655 = dma.hbm_to_vmem [thread:$0]  %s648, 2048, %s650, [#allocation28], 64, 64, 4
        $region24: #{bert_classifier_forward.1} parent=11 // pred_fallthru
          _
        // Predicated region
        $region25: #{bert_classifier_forward.1} parent=11 // pred_check
          %p656 = pneg %p558
        $region26: #{bert_classifier_forward.1} parent=11 // pred_check_branch
          %658 = sbr.rel (%p656) target = $region28
        $region27: #{bert_classifier_forward.1} parent=11 // pred_region
          %660 = vsyncadd [#allocation31], 0
          %s662 = sshll.u32 %s19, 4
          %s663 = int_to_ptr.hbm [resolvable:$true] %s662
          %s664 = sshll.u32 [#allocation30], 4
          %s665 = int_to_ptr.vmem [resolvable:$true] %s664
          %667 = dma.hbm_to_vmem [thread:$0]  %s663, 16, %s665, [#allocation31]
        $region28: #{bert_classifier_forward.1} parent=11 // pred_fallthru
          _
        // Predicated region
        $region29: #{bert_classifier_forward.1} parent=11 // pred_check
          %p668 = pneg %p579
        $region30: #{bert_classifier_forward.1} parent=11 // pred_check_branch
          %670 = sbr.rel (%p668) target = $region32
        $region31: #{bert_classifier_forward.1} parent=11 // pred_region
          %672 = vsyncadd [#allocation31], 0
          %s673 = sshll.u32 %s20, 4
          %s674 = int_to_ptr.hbm [resolvable:$true] %s673
          %s675 = sshll.u32 [#allocation32], 4
          %s676 = int_to_ptr.vmem [resolvable:$true] %s675
          %681 = dma.hbm_to_vmem [thread:$0]  %s674, 1024, %s676, [#allocation31], 64, 64, 4
        $region32: #{bert_classifier_forward.1} parent=11 // pred_fallthru
          _
        // Predicated region
        $region33: #{bert_classifier_forward.1} parent=11 // pred_check
          %p682 = pneg %p600
        $region34: #{bert_classifier_forward.1} parent=11 // pred_check_branch
          %684 = sbr.rel (%p682) target = $region36
        $region35: #{bert_classifier_forward.1} parent=11 // pred_region
          %686 = vsyncadd [#allocation34], 0
          %s688 = sshll.u32 %s21, 4
          %s689 = int_to_ptr.hbm [resolvable:$true] %s688
          %s690 = sshll.u32 [#allocation33], 4
          %s691 = int_to_ptr.vmem [resolvable:$true] %s690
          %693 = dma.hbm_to_vmem [thread:$0]  %s689, 16, %s691, [#allocation34]
        $region36: #{bert_classifier_forward.1} parent=11 // pred_fallthru
          _
      $region12: #{bert_classifier_forward.1} parent=5 // pred_fallthru
        _
      %p694 = scmp.lt.s32.totalorder %s58, 4
      // Predicated region
      $region37: #{bert_classifier_forward.1} parent=5 // pred_check
        %p695 = pneg %p694
      $region38: #{bert_classifier_forward.1} parent=5 // pred_check_branch
        %697 = sbr.rel (%p695) target = $region40
      $region39: #{bert_classifier_forward.1} parent=5 // pred_region
        // Predicated region
        $region41: #{bert_classifier_forward.1} parent=39 // pred_check
          %p698 = pneg %p120
        $region42: #{bert_classifier_forward.1} parent=39 // pred_check_branch
          %700 = sbr.rel (%p698) target = $region44
        $region43: #{bert_classifier_forward.1} parent=39 // pred_region
          %s701 = sand.u32 %s110, 1
          %s702 = scalar_lea.sflag [#allocation4], %s701
          %s703 = sand.u32 %s110, 1
          %s704 = smul.addr %s703, 256
          %s705 = scalar_lea.vmem [#allocation3], %s704
          %707 = vsyncadd %s702, 0
          %s708 = smul.addr %s58, 64
          %s709 = smul.addr %s708, 4
          %s710 = scalar_lea.hbm %s2, %s709
          %s711 = sshll.u32 %s710, 4
          %s712 = int_to_ptr.hbm [resolvable:$true] %s711
          %s713 = sshll.u32 %s705, 4
          %s714 = int_to_ptr.vmem [resolvable:$true] %s713
          %719 = dma.hbm_to_vmem [thread:$0]  %s712, 4096, %s714, %s702, 128, 128, 8
        $region44: #{bert_classifier_forward.1} parent=39 // pred_fallthru
          _
        // Predicated region
        $region45: #{bert_classifier_forward.1} parent=39 // pred_check
          %p720 = pneg %p146
        $region46: #{bert_classifier_forward.1} parent=39 // pred_check_branch
          %722 = sbr.rel (%p720) target = $region48
        $region47: #{bert_classifier_forward.1} parent=39 // pred_region
          %s723 = sand.u32 %s58, 1
          %s724 = scalar_lea.sflag [#allocation7], %s723
          %s725 = sand.u32 %s136, 1
          %s726 = smul.addr %s725, 2
          %s727 = scalar_lea.vmem [#allocation6], %s726
          %729 = vsyncadd %s724, 0
          %s730 = smul.addr %s58, 2
          %s731 = scalar_lea.hbm %s3, %s730
          %s733 = sshll.u32 %s731, 4
          %s734 = int_to_ptr.hbm [resolvable:$true] %s733
          %s735 = sshll.u32 %s727, 4
          %s736 = int_to_ptr.vmem [resolvable:$true] %s735
          %738 = dma.hbm_to_vmem [thread:$0]  %s734, 32, %s736, %s724
        $region48: #{bert_classifier_forward.1} parent=39 // pred_fallthru
          _
        // Predicated region
        $region49: #{bert_classifier_forward.1} parent=39 // pred_check
          %p739 = pneg %p172
        $region50: #{bert_classifier_forward.1} parent=39 // pred_check_branch
          %741 = sbr.rel (%p739) target = $region52
        $region51: #{bert_classifier_forward.1} parent=39 // pred_region
          %s742 = sand.u32 %s58, 1
          %s743 = scalar_lea.sflag [#allocation7], %s742
          %s744 = sand.u32 %s162, 1
          %s745 = smul.addr %s744, 256
          %s746 = scalar_lea.vmem [#allocation8], %s745
          %748 = vsyncadd %s743, 0
          %s749 = smul.addr %s58, 64
          %s750 = smul.addr %s749, 4
          %s751 = scalar_lea.hbm %s4, %s750
          %s752 = sshll.u32 %s751, 4
          %s753 = int_to_ptr.hbm [resolvable:$true] %s752
          %s754 = sshll.u32 %s746, 4
          %s755 = int_to_ptr.vmem [resolvable:$true] %s754
          %760 = dma.hbm_to_vmem [thread:$0]  %s753, 4096, %s755, %s743, 128, 128, 8
        $region52: #{bert_classifier_forward.1} parent=39 // pred_fallthru
          _
        // Predicated region
        $region53: #{bert_classifier_forward.1} parent=39 // pred_check
          %p761 = pneg %p198
        $region54: #{bert_classifier_forward.1} parent=39 // pred_check_branch
          %763 = sbr.rel (%p761) target = $region56
        $region55: #{bert_classifier_forward.1} parent=39 // pred_region
          %s764 = sand.u32 %s58, 1
          %s765 = scalar_lea.sflag [#allocation10], %s764
          %s766 = sand.u32 %s188, 1
          %s767 = smul.addr %s766, 2
          %s768 = scalar_lea.vmem [#allocation9], %s767
          %770 = vsyncadd %s765, 0
          %s771 = smul.addr %s58, 2
          %s772 = scalar_lea.hbm %s5, %s771
          %s774 = sshll.u32 %s772, 4
          %s775 = int_to_ptr.hbm [resolvable:$true] %s774
          %s776 = sshll.u32 %s768, 4
          %s777 = int_to_ptr.vmem [resolvable:$true] %s776
          %779 = dma.hbm_to_vmem [thread:$0]  %s775, 32, %s777, %s765
        $region56: #{bert_classifier_forward.1} parent=39 // pred_fallthru
          _
        // Predicated region
        $region57: #{bert_classifier_forward.1} parent=39 // pred_check
          %p780 = pneg %p224
        $region58: #{bert_classifier_forward.1} parent=39 // pred_check_branch
          %782 = sbr.rel (%p780) target = $region60
        $region59: #{bert_classifier_forward.1} parent=39 // pred_region
          %s783 = sand.u32 %s58, 1
          %s784 = scalar_lea.sflag [#allocation10], %s783
          %s785 = sand.u32 %s214, 1
          %s786 = smul.addr %s785, 256
          %s787 = scalar_lea.vmem [#allocation11], %s786
          %789 = vsyncadd %s784, 0
          %s790 = smul.addr %s58, 64
          %s791 = smul.addr %s790, 4
          %s792 = scalar_lea.hbm %s6, %s791
          %s793 = sshll.u32 %s792, 4
          %s794 = int_to_ptr.hbm [resolvable:$true] %s793
          %s795 = sshll.u32 %s787, 4
          %s796 = int_to_ptr.vmem [resolvable:$true] %s795
          %801 = dma.hbm_to_vmem [thread:$0]  %s794, 4096, %s796, %s784, 128, 128, 8
        $region60: #{bert_classifier_forward.1} parent=39 // pred_fallthru
          _
        // Predicated region
        $region61: #{bert_classifier_forward.1} parent=39 // pred_check
          %p802 = pneg %p250
        $region62: #{bert_classifier_forward.1} parent=39 // pred_check_branch
          %804 = sbr.rel (%p802) target = $region64
        $region63: #{bert_classifier_forward.1} parent=39 // pred_region
          %s805 = sand.u32 %s58, 1
          %s806 = scalar_lea.sflag [#allocation13], %s805
          %s807 = sand.u32 %s240, 1
          %s808 = smul.addr %s807, 2
          %s809 = scalar_lea.vmem [#allocation12], %s808
          %811 = vsyncadd %s806, 0
          %s812 = smul.addr %s58, 2
          %s813 = scalar_lea.hbm %s7, %s812
          %s815 = sshll.u32 %s813, 4
          %s816 = int_to_ptr.hbm [resolvable:$true] %s815
          %s817 = sshll.u32 %s809, 4
          %s818 = int_to_ptr.vmem [resolvable:$true] %s817
          %820 = dma.hbm_to_vmem [thread:$0]  %s816, 32, %s818, %s806
        $region64: #{bert_classifier_forward.1} parent=39 // pred_fallthru
          _
        // Predicated region
        $region65: #{bert_classifier_forward.1} parent=39 // pred_check
          %p821 = pneg %p276
        $region66: #{bert_classifier_forward.1} parent=39 // pred_check_branch
          %823 = sbr.rel (%p821) target = $region68
        $region67: #{bert_classifier_forward.1} parent=39 // pred_region
          %s824 = sand.u32 %s58, 1
          %s825 = scalar_lea.sflag [#allocation13], %s824
          %s826 = sand.u32 %s266, 1
          %s827 = smul.addr %s826, 256
          %s828 = scalar_lea.vmem [#allocation14], %s827
          %830 = vsyncadd %s825, 0
          %s831 = smul.addr %s58, 64
          %s832 = smul.addr %s831, 4
          %s833 = scalar_lea.hbm %s8, %s832
          %s834 = sshll.u32 %s833, 4
          %s835 = int_to_ptr.hbm [resolvable:$true] %s834
          %s836 = sshll.u32 %s828, 4
          %s837 = int_to_ptr.vmem [resolvable:$true] %s836
          %842 = dma.hbm_to_vmem [thread:$0]  %s835, 4096, %s837, %s825, 128, 128, 8
        $region68: #{bert_classifier_forward.1} parent=39 // pred_fallthru
          _
        // Predicated region
        $region69: #{bert_classifier_forward.1} parent=39 // pred_check
          %p843 = pneg %p302
        $region70: #{bert_classifier_forward.1} parent=39 // pred_check_branch
          %845 = sbr.rel (%p843) target = $region72
        $region71: #{bert_classifier_forward.1} parent=39 // pred_region
          %s846 = sand.u32 %s58, 1
          %s847 = scalar_lea.sflag [#allocation16], %s846
          %s848 = sand.u32 %s292, 1
          %s849 = smul.addr %s848, 2
          %s850 = scalar_lea.vmem [#allocation15], %s849
          %852 = vsyncadd %s847, 0
          %s853 = smul.addr %s58, 2
          %s854 = scalar_lea.hbm %s9, %s853
          %s856 = sshll.u32 %s854, 4
          %s857 = int_to_ptr.hbm [resolvable:$true] %s856
          %s858 = sshll.u32 %s850, 4
          %s859 = int_to_ptr.vmem [resolvable:$true] %s858
          %861 = dma.hbm_to_vmem [thread:$0]  %s857, 32, %s859, %s847
        $region72: #{bert_classifier_forward.1} parent=39 // pred_fallthru
          _
        // Predicated region
        $region73: #{bert_classifier_forward.1} parent=39 // pred_check
          %p862 = pneg %p328
        $region74: #{bert_classifier_forward.1} parent=39 // pred_check_branch
          %864 = sbr.rel (%p862) target = $region76
        $region75: #{bert_classifier_forward.1} parent=39 // pred_region
          %s865 = sand.u32 %s58, 1
          %s866 = scalar_lea.sflag [#allocation16], %s865
          %s867 = sand.u32 %s318, 1
          %s868 = smul.addr %s867, 2
          %s869 = scalar_lea.vmem [#allocation17], %s868
          %871 = vsyncadd %s866, 0
          %s872 = smul.addr %s58, 2
          %s873 = scalar_lea.hbm %s10, %s872
          %s875 = sshll.u32 %s873, 4
          %s876 = int_to_ptr.hbm [resolvable:$true] %s875
          %s877 = sshll.u32 %s869, 4
          %s878 = int_to_ptr.vmem [resolvable:$true] %s877
          %880 = dma.hbm_to_vmem [thread:$0]  %s876, 32, %s878, %s866
        $region76: #{bert_classifier_forward.1} parent=39 // pred_fallthru
          _
        // Predicated region
        $region77: #{bert_classifier_forward.1} parent=39 // pred_check
          %p881 = pneg %p354
        $region78: #{bert_classifier_forward.1} parent=39 // pred_check_branch
          %883 = sbr.rel (%p881) target = $region80
        $region79: #{bert_classifier_forward.1} parent=39 // pred_region
          %s884 = sand.u32 %s58, 1
          %s885 = scalar_lea.sflag [#allocation19], %s884
          %s886 = sand.u32 %s344, 1
          %s887 = smul.addr %s886, 2
          %s888 = scalar_lea.vmem [#allocation18], %s887
          %890 = vsyncadd %s885, 0
          %s891 = smul.addr %s58, 2
          %s892 = scalar_lea.hbm %s11, %s891
          %s894 = sshll.u32 %s892, 4
          %s895 = int_to_ptr.hbm [resolvable:$true] %s894
          %s896 = sshll.u32 %s888, 4
          %s897 = int_to_ptr.vmem [resolvable:$true] %s896
          %899 = dma.hbm_to_vmem [thread:$0]  %s895, 32, %s897, %s885
        $region80: #{bert_classifier_forward.1} parent=39 // pred_fallthru
          _
        // Predicated region
        $region81: #{bert_classifier_forward.1} parent=39 // pred_check
          %p900 = pneg %p380
        $region82: #{bert_classifier_forward.1} parent=39 // pred_check_branch
          %902 = sbr.rel (%p900) target = $region84
        $region83: #{bert_classifier_forward.1} parent=39 // pred_region
          %s903 = sand.u32 %s58, 1
          %s904 = scalar_lea.sflag [#allocation19], %s903
          %s905 = sand.u32 %s370, 1
          %s906 = smul.addr %s905, 1024
          %s907 = scalar_lea.vmem [#allocation20], %s906
          %909 = vsyncadd %s904, 0
          %s910 = smul.addr %s58, 256
          %s911 = smul.addr %s910, 4
          %s912 = scalar_lea.hbm %s12, %s911
          %s913 = sshll.u32 %s912, 4
          %s914 = int_to_ptr.hbm [resolvable:$true] %s913
          %s915 = sshll.u32 %s907, 4
          %s916 = int_to_ptr.vmem [resolvable:$true] %s915
          %921 = dma.hbm_to_vmem [thread:$0]  %s914, 16384, %s916, %s904, 512, 512, 32
        $region84: #{bert_classifier_forward.1} parent=39 // pred_fallthru
          _
        // Predicated region
        $region85: #{bert_classifier_forward.1} parent=39 // pred_check
          %p922 = pneg %p406
        $region86: #{bert_classifier_forward.1} parent=39 // pred_check_branch
          %924 = sbr.rel (%p922) target = $region88
        $region87: #{bert_classifier_forward.1} parent=39 // pred_region
          %s925 = sand.u32 %s58, 1
          %s926 = scalar_lea.sflag [#allocation22], %s925
          %s927 = sand.u32 %s396, 1
          %s928 = smul.addr %s927, 8
          %s929 = scalar_lea.vmem [#allocation21], %s928
          %931 = vsyncadd %s926, 0
          %s932 = smul.addr %s58, 8
          %s933 = scalar_lea.hbm %s13, %s932
          %s935 = sshll.u32 %s933, 4
          %s936 = int_to_ptr.hbm [resolvable:$true] %s935
          %s937 = sshll.u32 %s929, 4
          %s938 = int_to_ptr.vmem [resolvable:$true] %s937
          %940 = dma.hbm_to_vmem [thread:$0]  %s936, 128, %s938, %s926
        $region88: #{bert_classifier_forward.1} parent=39 // pred_fallthru
          _
        // Predicated region
        $region89: #{bert_classifier_forward.1} parent=39 // pred_check
          %p941 = pneg %p432
        $region90: #{bert_classifier_forward.1} parent=39 // pred_check_branch
          %943 = sbr.rel (%p941) target = $region92
        $region91: #{bert_classifier_forward.1} parent=39 // pred_region
          %s944 = sand.u32 %s58, 1
          %s945 = scalar_lea.sflag [#allocation22], %s944
          %s946 = sand.u32 %s422, 1
          %s947 = smul.addr %s946, 1024
          %s948 = scalar_lea.vmem [#allocation23], %s947
          %950 = vsyncadd %s945, 0
          %s951 = smul.addr %s58, 256
          %s952 = smul.addr %s951, 4
          %s953 = scalar_lea.hbm %s14, %s952
          %s954 = sshll.u32 %s953, 4
          %s955 = int_to_ptr.hbm [resolvable:$true] %s954
          %s956 = sshll.u32 %s948, 4
          %s957 = int_to_ptr.vmem [resolvable:$true] %s956
          %962 = dma.hbm_to_vmem [thread:$0]  %s955, 16384, %s957, %s945, 128, 128, 8
        $region92: #{bert_classifier_forward.1} parent=39 // pred_fallthru
          _
        // Predicated region
        $region93: #{bert_classifier_forward.1} parent=39 // pred_check
          %p963 = pneg %p458
        $region94: #{bert_classifier_forward.1} parent=39 // pred_check_branch
          %965 = sbr.rel (%p963) target = $region96
        $region95: #{bert_classifier_forward.1} parent=39 // pred_region
          %s966 = sand.u32 %s58, 1
          %s967 = scalar_lea.sflag [#allocation25], %s966
          %s968 = sand.u32 %s448, 1
          %s969 = smul.addr %s968, 2
          %s970 = scalar_lea.vmem [#allocation24], %s969
          %972 = vsyncadd %s967, 0
          %s973 = smul.addr %s58, 2
          %s974 = scalar_lea.hbm %s15, %s973
          %s976 = sshll.u32 %s974, 4
          %s977 = int_to_ptr.hbm [resolvable:$true] %s976
          %s978 = sshll.u32 %s970, 4
          %s979 = int_to_ptr.vmem [resolvable:$true] %s978
          %981 = dma.hbm_to_vmem [thread:$0]  %s977, 32, %s979, %s967
        $region96: #{bert_classifier_forward.1} parent=39 // pred_fallthru
          _
        // Predicated region
        $region97: #{bert_classifier_forward.1} parent=39 // pred_check
          %p982 = pneg %p484
        $region98: #{bert_classifier_forward.1} parent=39 // pred_check_branch
          %984 = sbr.rel (%p982) target = $region100
        $region99: #{bert_classifier_forward.1} parent=39 // pred_region
          %s985 = sand.u32 %s58, 1
          %s986 = scalar_lea.sflag [#allocation25], %s985
          %s987 = sand.u32 %s474, 1
          %s988 = smul.addr %s987, 2
          %s989 = scalar_lea.vmem [#allocation26], %s988
          %991 = vsyncadd %s986, 0
          %s992 = smul.addr %s58, 2
          %s993 = scalar_lea.hbm %s16, %s992
          %s995 = sshll.u32 %s993, 4
          %s996 = int_to_ptr.hbm [resolvable:$true] %s995
          %s997 = sshll.u32 %s989, 4
          %s998 = int_to_ptr.vmem [resolvable:$true] %s997
          %1000 = dma.hbm_to_vmem [thread:$0]  %s996, 32, %s998, %s986
        $region100: #{bert_classifier_forward.1} parent=39 // pred_fallthru
          _
        // Predicated region
        $region101: #{bert_classifier_forward.1} parent=39 // pred_check
          %p1001 = pneg %p510
        $region102: #{bert_classifier_forward.1} parent=39 // pred_check_branch
          %1003 = sbr.rel (%p1001) target = $region104
        $region103: #{bert_classifier_forward.1} parent=39 // pred_region
          %s1004 = sand.u32 %s58, 1
          %s1005 = scalar_lea.sflag [#allocation28], %s1004
          %s1006 = sand.u32 %s500, 1
          %s1007 = smul.addr %s1006, 2
          %s1008 = scalar_lea.vmem [#allocation27], %s1007
          %1010 = vsyncadd %s1005, 0
          %s1011 = smul.addr %s58, 2
          %s1012 = scalar_lea.hbm %s17, %s1011
          %s1014 = sshll.u32 %s1012, 4
          %s1015 = int_to_ptr.hbm [resolvable:$true] %s1014
          %s1016 = sshll.u32 %s1008, 4
          %s1017 = int_to_ptr.vmem [resolvable:$true] %s1016
          %1019 = dma.hbm_to_vmem [thread:$0]  %s1015, 32, %s1017, %s1005
        $region104: #{bert_classifier_forward.1} parent=39 // pred_fallthru
          _
      $region40: #{bert_classifier_forward.1} parent=5 // pred_fallthru
        _
      %p1020 = scmp.le.s32.totalorder 1, %s58
      %p1021 = scmp.lt.s32.totalorder %s58, 5
      %p1022 = pnand %p1020, %p1021
      %p1023 = pneg %p1022
      // Predicated region
      $region105: #{bert_classifier_forward.1} parent=5 // pred_check
        _
      $region106: #{bert_classifier_forward.1} parent=5 // pred_check_branch
        %1025 = sbr.rel (%p1022) target = $region108
      $region107: #{bert_classifier_forward.1} parent=5 // pred_region
        %s1026 = ssub.s32 %s58, 1
        %s1027 = sand.u32 %s113, 1
        %s1028 = scalar_lea.sflag [#allocation4], %s1027
        %s1029 = sand.u32 %s113, 1
        %s1030 = smul.addr %s1029, 256
        %s1031 = scalar_lea.vmem [#allocation3], %s1030
        // Predicated region
        $region109: #{bert_classifier_forward.1} parent=107 // pred_check
          %p1032 = pneg %p126
        $region110: #{bert_classifier_forward.1} parent=107 // pred_check_branch
          %1034 = sbr.rel (%p1032) target = $region112
        $region111: #{bert_classifier_forward.1} parent=107 // pred_region
          %1036 = dma.done %s1028, 4096
        $region112: #{bert_classifier_forward.1} parent=107 // pred_fallthru
          _
        %s1037 = sand.u32 %s63, 1
        %s1038 = scalar_lea.sflag [#allocation7], %s1037
        %s1039 = sand.u32 %s139, 1
        %s1040 = smul.addr %s1039, 2
        %s1041 = scalar_lea.vmem [#allocation6], %s1040
        // Predicated region
        $region113: #{bert_classifier_forward.1} parent=107 // pred_check
          %p1042 = pneg %p152
        $region114: #{bert_classifier_forward.1} parent=107 // pred_check_branch
          %1044 = sbr.rel (%p1042) target = $region116
        $region115: #{bert_classifier_forward.1} parent=107 // pred_region
          %1046 = dma.done %s1038, 32
        $region116: #{bert_classifier_forward.1} parent=107 // pred_fallthru
          _
        %s1047 = sand.u32 %s63, 1
        %s1048 = scalar_lea.sflag [#allocation7], %s1047
        %s1049 = sand.u32 %s165, 1
        %s1050 = smul.addr %s1049, 256
        %s1051 = scalar_lea.vmem [#allocation8], %s1050
        // Predicated region
        $region117: #{bert_classifier_forward.1} parent=107 // pred_check
          %p1052 = pneg %p178
        $region118: #{bert_classifier_forward.1} parent=107 // pred_check_branch
          %1054 = sbr.rel (%p1052) target = $region120
        $region119: #{bert_classifier_forward.1} parent=107 // pred_region
          %1056 = dma.done %s1048, 4096
        $region120: #{bert_classifier_forward.1} parent=107 // pred_fallthru
          _
        %s1057 = sand.u32 %s63, 1
        %s1058 = scalar_lea.sflag [#allocation10], %s1057
        %s1059 = sand.u32 %s191, 1
        %s1060 = smul.addr %s1059, 2
        %s1061 = scalar_lea.vmem [#allocation9], %s1060
        // Predicated region
        $region121: #{bert_classifier_forward.1} parent=107 // pred_check
          %p1062 = pneg %p204
        $region122: #{bert_classifier_forward.1} parent=107 // pred_check_branch
          %1064 = sbr.rel (%p1062) target = $region124
        $region123: #{bert_classifier_forward.1} parent=107 // pred_region
          %1066 = dma.done %s1058, 32
        $region124: #{bert_classifier_forward.1} parent=107 // pred_fallthru
          _
        %s1067 = sand.u32 %s63, 1
        %s1068 = scalar_lea.sflag [#allocation10], %s1067
        %s1069 = sand.u32 %s217, 1
        %s1070 = smul.addr %s1069, 256
        %s1071 = scalar_lea.vmem [#allocation11], %s1070
        // Predicated region
        $region125: #{bert_classifier_forward.1} parent=107 // pred_check
          %p1072 = pneg %p230
        $region126: #{bert_classifier_forward.1} parent=107 // pred_check_branch
          %1074 = sbr.rel (%p1072) target = $region128
        $region127: #{bert_classifier_forward.1} parent=107 // pred_region
          %1076 = dma.done %s1068, 4096
        $region128: #{bert_classifier_forward.1} parent=107 // pred_fallthru
          _
        %s1077 = sand.u32 %s63, 1
        %s1078 = scalar_lea.sflag [#allocation13], %s1077
        %s1079 = sand.u32 %s243, 1
        %s1080 = smul.addr %s1079, 2
        %s1081 = scalar_lea.vmem [#allocation12], %s1080
        // Predicated region
        $region129: #{bert_classifier_forward.1} parent=107 // pred_check
          %p1082 = pneg %p256
        $region130: #{bert_classifier_forward.1} parent=107 // pred_check_branch
          %1084 = sbr.rel (%p1082) target = $region132
        $region131: #{bert_classifier_forward.1} parent=107 // pred_region
          %1086 = dma.done %s1078, 32
        $region132: #{bert_classifier_forward.1} parent=107 // pred_fallthru
          _
        %s1087 = sand.u32 %s63, 1
        %s1088 = scalar_lea.sflag [#allocation13], %s1087
        %s1089 = sand.u32 %s269, 1
        %s1090 = smul.addr %s1089, 256
        %s1091 = scalar_lea.vmem [#allocation14], %s1090
        // Predicated region
        $region133: #{bert_classifier_forward.1} parent=107 // pred_check
          %p1092 = pneg %p282
        $region134: #{bert_classifier_forward.1} parent=107 // pred_check_branch
          %1094 = sbr.rel (%p1092) target = $region136
        $region135: #{bert_classifier_forward.1} parent=107 // pred_region
          %1096 = dma.done %s1088, 4096
        $region136: #{bert_classifier_forward.1} parent=107 // pred_fallthru
          _
        %s1097 = sand.u32 %s63, 1
        %s1098 = scalar_lea.sflag [#allocation16], %s1097
        %s1099 = sand.u32 %s295, 1
        %s1100 = smul.addr %s1099, 2
        %s1101 = scalar_lea.vmem [#allocation15], %s1100
        // Predicated region
        $region137: #{bert_classifier_forward.1} parent=107 // pred_check
          %p1102 = pneg %p308
        $region138: #{bert_classifier_forward.1} parent=107 // pred_check_branch
          %1104 = sbr.rel (%p1102) target = $region140
        $region139: #{bert_classifier_forward.1} parent=107 // pred_region
          %1106 = dma.done %s1098, 32
        $region140: #{bert_classifier_forward.1} parent=107 // pred_fallthru
          _
        %s1107 = sand.u32 %s63, 1
        %s1108 = scalar_lea.sflag [#allocation16], %s1107
        %s1109 = sand.u32 %s321, 1
        %s1110 = smul.addr %s1109, 2
        %s1111 = scalar_lea.vmem [#allocation17], %s1110
        // Predicated region
        $region141: #{bert_classifier_forward.1} parent=107 // pred_check
          %p1112 = pneg %p334
        $region142: #{bert_classifier_forward.1} parent=107 // pred_check_branch
          %1114 = sbr.rel (%p1112) target = $region144
        $region143: #{bert_classifier_forward.1} parent=107 // pred_region
          %1116 = dma.done %s1108, 32
        $region144: #{bert_classifier_forward.1} parent=107 // pred_fallthru
          _
        %s1117 = sand.u32 %s63, 1
        %s1118 = scalar_lea.sflag [#allocation19], %s1117
        %s1119 = sand.u32 %s347, 1
        %s1120 = smul.addr %s1119, 2
        %s1121 = scalar_lea.vmem [#allocation18], %s1120
        // Predicated region
        $region145: #{bert_classifier_forward.1} parent=107 // pred_check
          %p1122 = pneg %p360
        $region146: #{bert_classifier_forward.1} parent=107 // pred_check_branch
          %1124 = sbr.rel (%p1122) target = $region148
        $region147: #{bert_classifier_forward.1} parent=107 // pred_region
          %1126 = dma.done %s1118, 32
        $region148: #{bert_classifier_forward.1} parent=107 // pred_fallthru
          _
        %s1127 = sand.u32 %s63, 1
        %s1128 = scalar_lea.sflag [#allocation19], %s1127
        %s1129 = sand.u32 %s373, 1
        %s1130 = smul.addr %s1129, 1024
        %s1131 = scalar_lea.vmem [#allocation20], %s1130
        // Predicated region
        $region149: #{bert_classifier_forward.1} parent=107 // pred_check
          %p1132 = pneg %p386
        $region150: #{bert_classifier_forward.1} parent=107 // pred_check_branch
          %1134 = sbr.rel (%p1132) target = $region152
        $region151: #{bert_classifier_forward.1} parent=107 // pred_region
          %1136 = dma.done %s1128, 16384
        $region152: #{bert_classifier_forward.1} parent=107 // pred_fallthru
          _
        %s1137 = sand.u32 %s63, 1
        %s1138 = scalar_lea.sflag [#allocation22], %s1137
        %s1139 = sand.u32 %s399, 1
        %s1140 = smul.addr %s1139, 8
        %s1141 = scalar_lea.vmem [#allocation21], %s1140
        // Predicated region
        $region153: #{bert_classifier_forward.1} parent=107 // pred_check
          %p1142 = pneg %p412
        $region154: #{bert_classifier_forward.1} parent=107 // pred_check_branch
          %1144 = sbr.rel (%p1142) target = $region156
        $region155: #{bert_classifier_forward.1} parent=107 // pred_region
          %1146 = dma.done %s1138, 128
        $region156: #{bert_classifier_forward.1} parent=107 // pred_fallthru
          _
        %s1147 = sand.u32 %s63, 1
        %s1148 = scalar_lea.sflag [#allocation22], %s1147
        %s1149 = sand.u32 %s425, 1
        %s1150 = smul.addr %s1149, 1024
        %s1151 = scalar_lea.vmem [#allocation23], %s1150
        // Predicated region
        $region157: #{bert_classifier_forward.1} parent=107 // pred_check
          %p1152 = pneg %p438
        $region158: #{bert_classifier_forward.1} parent=107 // pred_check_branch
          %1154 = sbr.rel (%p1152) target = $region160
        $region159: #{bert_classifier_forward.1} parent=107 // pred_region
          %1156 = dma.done %s1148, 16384
        $region160: #{bert_classifier_forward.1} parent=107 // pred_fallthru
          _
        %s1157 = sand.u32 %s63, 1
        %s1158 = scalar_lea.sflag [#allocation25], %s1157
        %s1159 = sand.u32 %s451, 1
        %s1160 = smul.addr %s1159, 2
        %s1161 = scalar_lea.vmem [#allocation24], %s1160
        // Predicated region
        $region161: #{bert_classifier_forward.1} parent=107 // pred_check
          %p1162 = pneg %p464
        $region162: #{bert_classifier_forward.1} parent=107 // pred_check_branch
          %1164 = sbr.rel (%p1162) target = $region164
        $region163: #{bert_classifier_forward.1} parent=107 // pred_region
          %1166 = dma.done %s1158, 32
        $region164: #{bert_classifier_forward.1} parent=107 // pred_fallthru
          _
        %s1167 = sand.u32 %s63, 1
        %s1168 = scalar_lea.sflag [#allocation25], %s1167
        %s1169 = sand.u32 %s477, 1
        %s1170 = smul.addr %s1169, 2
        %s1171 = scalar_lea.vmem [#allocation26], %s1170
        // Predicated region
        $region165: #{bert_classifier_forward.1} parent=107 // pred_check
          %p1172 = pneg %p490
        $region166: #{bert_classifier_forward.1} parent=107 // pred_check_branch
          %1174 = sbr.rel (%p1172) target = $region168
        $region167: #{bert_classifier_forward.1} parent=107 // pred_region
          %1176 = dma.done %s1168, 32
        $region168: #{bert_classifier_forward.1} parent=107 // pred_fallthru
          _
        %s1177 = sand.u32 %s63, 1
        %s1178 = scalar_lea.sflag [#allocation28], %s1177
        %s1179 = sand.u32 %s503, 1
        %s1180 = smul.addr %s1179, 2
        %s1181 = scalar_lea.vmem [#allocation27], %s1180
        // Predicated region
        $region169: #{bert_classifier_forward.1} parent=107 // pred_check
          %p1182 = pneg %p516
        $region170: #{bert_classifier_forward.1} parent=107 // pred_check_branch
          %1184 = sbr.rel (%p1182) target = $region172
        $region171: #{bert_classifier_forward.1} parent=107 // pred_region
          %1186 = dma.done %s1178, 32
        $region172: #{bert_classifier_forward.1} parent=107 // pred_fallthru
          _
        // Predicated region
        $region173: #{bert_classifier_forward.1} parent=107 // pred_check
          %p1187 = pneg %p537
        $region174: #{bert_classifier_forward.1} parent=107 // pred_check_branch
          %1189 = sbr.rel (%p1187) target = $region176
        $region175: #{bert_classifier_forward.1} parent=107 // pred_region
          %1191 = dma.done [#allocation28], 2048
        $region176: #{bert_classifier_forward.1} parent=107 // pred_fallthru
          _
        // Predicated region
        $region177: #{bert_classifier_forward.1} parent=107 // pred_check
          %p1192 = pneg %p558
        $region178: #{bert_classifier_forward.1} parent=107 // pred_check_branch
          %1194 = sbr.rel (%p1192) target = $region180
        $region179: #{bert_classifier_forward.1} parent=107 // pred_region
          %1196 = dma.done [#allocation31], 16
        $region180: #{bert_classifier_forward.1} parent=107 // pred_fallthru
          _
        // Predicated region
        $region181: #{bert_classifier_forward.1} parent=107 // pred_check
          %p1197 = pneg %p579
        $region182: #{bert_classifier_forward.1} parent=107 // pred_check_branch
          %1199 = sbr.rel (%p1197) target = $region184
        $region183: #{bert_classifier_forward.1} parent=107 // pred_region
          %1201 = dma.done [#allocation31], 1024
        $region184: #{bert_classifier_forward.1} parent=107 // pred_fallthru
          _
        // Predicated region
        $region185: #{bert_classifier_forward.1} parent=107 // pred_check
          %p1202 = pneg %p600
        $region186: #{bert_classifier_forward.1} parent=107 // pred_check_branch
          %1204 = sbr.rel (%p1202) target = $region188
        $region187: #{bert_classifier_forward.1} parent=107 // pred_region
          %1206 = dma.done [#allocation34], 16
        $region188: #{bert_classifier_forward.1} parent=107 // pred_fallthru
          _
        %p1207 = pneg %p79
        %p1208 = pneg %p76
        %p1209 = pneg %p100
        %p1210 = pneg %p97
        %s1211 = sand.u32 %s113, 1
        %s1212 = scalar_lea.sflag [#allocation4], %s1211
        %s1213 = sand.u32 %s113, 1
        %s1214 = smul.addr %s1213, 256
        %s1215 = scalar_lea.vmem [#allocation3], %s1214
        %p1216 = pneg %p126
        %p1217 = pneg %p123
        %s1218 = sand.u32 %s63, 1
        %s1219 = scalar_lea.sflag [#allocation7], %s1218
        %s1220 = sand.u32 %s139, 1
        %s1221 = smul.addr %s1220, 2
        %s1222 = scalar_lea.vmem [#allocation6], %s1221
        %p1223 = pneg %p152
        %p1224 = pneg %p149
        %s1225 = sand.u32 %s63, 1
        %s1226 = scalar_lea.sflag [#allocation7], %s1225
        %s1227 = sand.u32 %s165, 1
        %s1228 = smul.addr %s1227, 256
        %s1229 = scalar_lea.vmem [#allocation8], %s1228
        %p1230 = pneg %p178
        %p1231 = pneg %p175
        %s1232 = sand.u32 %s63, 1
        %s1233 = scalar_lea.sflag [#allocation10], %s1232
        %s1234 = sand.u32 %s191, 1
        %s1235 = smul.addr %s1234, 2
        %s1236 = scalar_lea.vmem [#allocation9], %s1235
        %p1237 = pneg %p204
        %p1238 = pneg %p201
        %s1239 = sand.u32 %s63, 1
        %s1240 = scalar_lea.sflag [#allocation10], %s1239
        %s1241 = sand.u32 %s217, 1
        %s1242 = smul.addr %s1241, 256
        %s1243 = scalar_lea.vmem [#allocation11], %s1242
        %p1244 = pneg %p230
        %p1245 = pneg %p227
        %s1246 = sand.u32 %s63, 1
        %s1247 = scalar_lea.sflag [#allocation13], %s1246
        %s1248 = sand.u32 %s243, 1
        %s1249 = smul.addr %s1248, 2
        %s1250 = scalar_lea.vmem [#allocation12], %s1249
        %p1251 = pneg %p256
        %p1252 = pneg %p253
        %s1253 = sand.u32 %s63, 1
        %s1254 = scalar_lea.sflag [#allocation13], %s1253
        %s1255 = sand.u32 %s269, 1
        %s1256 = smul.addr %s1255, 256
        %s1257 = scalar_lea.vmem [#allocation14], %s1256
        %p1258 = pneg %p282
        %p1259 = pneg %p279
        %s1260 = sand.u32 %s63, 1
        %s1261 = scalar_lea.sflag [#allocation16], %s1260
        %s1262 = sand.u32 %s295, 1
        %s1263 = smul.addr %s1262, 2
        %s1264 = scalar_lea.vmem [#allocation15], %s1263
        %p1265 = pneg %p308
        %p1266 = pneg %p305
        %s1267 = sand.u32 %s63, 1
        %s1268 = scalar_lea.sflag [#allocation16], %s1267
        %s1269 = sand.u32 %s321, 1
        %s1270 = smul.addr %s1269, 2
        %s1271 = scalar_lea.vmem [#allocation17], %s1270
        %p1272 = pneg %p334
        %p1273 = pneg %p331
        %s1274 = sand.u32 %s63, 1
        %s1275 = scalar_lea.sflag [#allocation19], %s1274
        %s1276 = sand.u32 %s347, 1
        %s1277 = smul.addr %s1276, 2
        %s1278 = scalar_lea.vmem [#allocation18], %s1277
        %p1279 = pneg %p360
        %p1280 = pneg %p357
        %s1281 = sand.u32 %s63, 1
        %s1282 = scalar_lea.sflag [#allocation19], %s1281
        %s1283 = sand.u32 %s373, 1
        %s1284 = smul.addr %s1283, 1024
        %s1285 = scalar_lea.vmem [#allocation20], %s1284
        %p1286 = pneg %p386
        %p1287 = pneg %p383
        %s1288 = sand.u32 %s63, 1
        %s1289 = scalar_lea.sflag [#allocation22], %s1288
        %s1290 = sand.u32 %s399, 1
        %s1291 = smul.addr %s1290, 8
        %s1292 = scalar_lea.vmem [#allocation21], %s1291
        %p1293 = pneg %p412
        %p1294 = pneg %p409
        %s1295 = sand.u32 %s63, 1
        %s1296 = scalar_lea.sflag [#allocation22], %s1295
        %s1297 = sand.u32 %s425, 1
        %s1298 = smul.addr %s1297, 1024
        %s1299 = scalar_lea.vmem [#allocation23], %s1298
        %p1300 = pneg %p438
        %p1301 = pneg %p435
        %s1302 = sand.u32 %s63, 1
        %s1303 = scalar_lea.sflag [#allocation25], %s1302
        %s1304 = sand.u32 %s451, 1
        %s1305 = smul.addr %s1304, 2
        %s1306 = scalar_lea.vmem [#allocation24], %s1305
        %p1307 = pneg %p464
        %p1308 = pneg %p461
        %s1309 = sand.u32 %s63, 1
        %s1310 = scalar_lea.sflag [#allocation25], %s1309
        %s1311 = sand.u32 %s477, 1
        %s1312 = smul.addr %s1311, 2
        %s1313 = scalar_lea.vmem [#allocation26], %s1312
        %p1314 = pneg %p490
        %p1315 = pneg %p487
        %s1316 = sand.u32 %s63, 1
        %s1317 = scalar_lea.sflag [#allocation28], %s1316
        %s1318 = sand.u32 %s503, 1
        %s1319 = smul.addr %s1318, 2
        %s1320 = scalar_lea.vmem [#allocation27], %s1319
        %p1321 = pneg %p516
        %p1322 = pneg %p513
        %p1323 = pneg %p537
        %p1324 = pneg %p534
        %p1325 = pneg %p558
        %p1326 = pneg %p555
        %p1327 = pneg %p579
        %p1328 = pneg %p576
        %p1329 = pneg %p600
        %p1330 = pneg %p597
        %p1331 = pneg %p621
        %p1332 = pneg %p618
        %p1334 = scmp.eq.s32.totalorder %s63, 0
        // Predicated region
        $region189: #{bert_classifier_forward.1} parent=107 // pred_check
          %p1335 = pneg %p1334
        $region190: #{bert_classifier_forward.1} parent=107 // pred_check_branch
          %1337 = sbr.rel (%p1335) target = $region192
        $region191: #{bert_classifier_forward.1} parent=107 // pred_region
          %v1338 = vld [vmem:[%s0] sm:$0xff]
          %v1339 = vld [vmem:[%s0 + $0x8] sm:$0xff]
          %v1340 = vld [vmem:[%s0 + $0x10] sm:$0xff]
          %v1341 = vld [vmem:[%s0 + $0x18] sm:$0xff]
          %1342 = vst [vmem:[#allocation2] sm:$0xff] %v1338
          %1343 = vst [vmem:[#allocation2 + $0x8] sm:$0xff] %v1339
          %1344 = vst [vmem:[#allocation2 + $0x10] sm:$0xff] %v1340
          %1345 = vst [vmem:[#allocation2 + $0x18] sm:$0xff] %v1341
        $region192: #{bert_classifier_forward.1} parent=107 // pred_fallthru
          _
        %v1346 = vld [vmem:[#allocation2] sm:$0xff]
        %v1347 = vld [vmem:[#allocation2 + $0x8] sm:$0xff]
        %v1348 = vld [vmem:[#allocation2 + $0x10] sm:$0xff]
        %v1349 = vld [vmem:[#allocation2 + $0x18] sm:$0xff]
        %v1350 = vpack.c.bf16 %v1348, %v1346
        %v1351 = vpack.c.bf16 %v1349, %v1347
        %v1352 = vld [vmem:[%s1031] sm:$0xff]
        %v1353 = vld [vmem:[%s1031 + $0x8] sm:$0xff]
        %v1354 = vld [vmem:[%s1031 + $0x10] sm:$0xff]
        %v1355 = vld [vmem:[%s1031 + $0x18] sm:$0xff]
        %v1356 = vld [vmem:[%s1031 + $0x20] sm:$0xff]
        %v1357 = vld [vmem:[%s1031 + $0x28] sm:$0xff]
        %v1358 = vld [vmem:[%s1031 + $0x30] sm:$0xff]
        %v1359 = vld [vmem:[%s1031 + $0x38] sm:$0xff]
        %v1360 = vld [vmem:[%s1031 + $0x40] sm:$0xff]
        %v1361 = vld [vmem:[%s1031 + $0x48] sm:$0xff]
        %v1362 = vld [vmem:[%s1031 + $0x50] sm:$0xff]
        %v1363 = vld [vmem:[%s1031 + $0x58] sm:$0xff]
        %v1364 = vld [vmem:[%s1031 + $0x60] sm:$0xff]
        %v1365 = vld [vmem:[%s1031 + $0x68] sm:$0xff]
        %v1366 = vld [vmem:[%s1031 + $0x70] sm:$0xff]
        %v1367 = vld [vmem:[%s1031 + $0x78] sm:$0xff]
        %v1368 = vld [vmem:[%s1031 + $0x80] sm:$0xff]
        %v1369 = vld [vmem:[%s1031 + $0x88] sm:$0xff]
        %v1370 = vld [vmem:[%s1031 + $0x90] sm:$0xff]
        %v1371 = vld [vmem:[%s1031 + $0x98] sm:$0xff]
        %v1372 = vld [vmem:[%s1031 + $0xa0] sm:$0xff]
        %v1373 = vld [vmem:[%s1031 + $0xa8] sm:$0xff]
        %v1374 = vld [vmem:[%s1031 + $0xb0] sm:$0xff]
        %v1375 = vld [vmem:[%s1031 + $0xb8] sm:$0xff]
        %v1376 = vld [vmem:[%s1031 + $0xc0] sm:$0xff]
        %v1377 = vld [vmem:[%s1031 + $0xc8] sm:$0xff]
        %v1378 = vld [vmem:[%s1031 + $0xd0] sm:$0xff]
        %v1379 = vld [vmem:[%s1031 + $0xd8] sm:$0xff]
        %v1380 = vld [vmem:[%s1031 + $0xe0] sm:$0xff]
        %v1381 = vld [vmem:[%s1031 + $0xe8] sm:$0xff]
        %v1382 = vld [vmem:[%s1031 + $0xf0] sm:$0xff]
        %v1383 = vld [vmem:[%s1031 + $0xf8] sm:$0xff]
        %v1384 = vld [vmem:[%s1041] sm:$0x3]
        %v1386 = vperm.slane %v1384, 0
        %v1387 = vperm.slane %v1384, 1
        %v1422 = vunpack.c.l.b16 %v1352
        %v1423 = vunpack.c.h.b16 %v1352
        %v1424 = vunpack.c.l.b16 %v1353
        %v1425 = vunpack.c.h.b16 %v1353
        %v1426 = vunpack.c.l.b16 %v1354
        %v1427 = vunpack.c.h.b16 %v1354
        %v1428 = vunpack.c.l.b16 %v1355
        %v1429 = vunpack.c.h.b16 %v1355
        %v1430 = vunpack.c.l.b16 %v1356
        %v1431 = vunpack.c.h.b16 %v1356
        %v1432 = vunpack.c.l.b16 %v1357
        %v1433 = vunpack.c.h.b16 %v1357
        %v1434 = vunpack.c.l.b16 %v1358
        %v1435 = vunpack.c.h.b16 %v1358
        %v1436 = vunpack.c.l.b16 %v1359
        %v1437 = vunpack.c.h.b16 %v1359
        %v1438 = vunpack.c.l.b16 %v1360
        %v1439 = vunpack.c.h.b16 %v1360
        %v1440 = vunpack.c.l.b16 %v1361
        %v1441 = vunpack.c.h.b16 %v1361
        %v1442 = vunpack.c.l.b16 %v1362
        %v1443 = vunpack.c.h.b16 %v1362
        %v1444 = vunpack.c.l.b16 %v1363
        %v1445 = vunpack.c.h.b16 %v1363
        %v1446 = vunpack.c.l.b16 %v1364
        %v1447 = vunpack.c.h.b16 %v1364
        %v1448 = vunpack.c.l.b16 %v1365
        %v1449 = vunpack.c.h.b16 %v1365
        %v1450 = vunpack.c.l.b16 %v1366
        %v1451 = vunpack.c.h.b16 %v1366
        %v1452 = vunpack.c.l.b16 %v1367
        %v1453 = vunpack.c.h.b16 %v1367
        %v1454 = vunpack.c.l.b16 %v1368
        %v1455 = vunpack.c.h.b16 %v1368
        %v1456 = vunpack.c.l.b16 %v1369
        %v1457 = vunpack.c.h.b16 %v1369
        %v1458 = vunpack.c.l.b16 %v1370
        %v1459 = vunpack.c.h.b16 %v1370
        %v1460 = vunpack.c.l.b16 %v1371
        %v1461 = vunpack.c.h.b16 %v1371
        %v1462 = vunpack.c.l.b16 %v1372
        %v1463 = vunpack.c.h.b16 %v1372
        %v1464 = vunpack.c.l.b16 %v1373
        %v1465 = vunpack.c.h.b16 %v1373
        %v1466 = vunpack.c.l.b16 %v1374
        %v1467 = vunpack.c.h.b16 %v1374
        %v1468 = vunpack.c.l.b16 %v1375
        %v1469 = vunpack.c.h.b16 %v1375
        %v1470 = vunpack.c.l.b16 %v1376
        %v1471 = vunpack.c.h.b16 %v1376
        %v1472 = vunpack.c.l.b16 %v1377
        %v1473 = vunpack.c.h.b16 %v1377
        %v1474 = vunpack.c.l.b16 %v1378
        %v1475 = vunpack.c.h.b16 %v1378
        %v1476 = vunpack.c.l.b16 %v1379
        %v1477 = vunpack.c.h.b16 %v1379
        %v1478 = vunpack.c.l.b16 %v1380
        %v1479 = vunpack.c.h.b16 %v1380
        %v1480 = vunpack.c.l.b16 %v1381
        %v1481 = vunpack.c.h.b16 %v1381
        %v1482 = vunpack.c.l.b16 %v1382
        %v1483 = vunpack.c.h.b16 %v1382
        %v1484 = vunpack.c.l.b16 %v1383
        %v1485 = vunpack.c.h.b16 %v1383
        %v1486 = vpack.c.b16 %v1424, %v1422
        %v1487 = vpack.c.b16 %v1425, %v1423
        %v1488 = vpack.c.b16 %v1428, %v1426
        %v1489 = vpack.c.b16 %v1429, %v1427
        %v1490 = vpack.c.b16 %v1432, %v1430
        %v1491 = vpack.c.b16 %v1433, %v1431
        %v1492 = vpack.c.b16 %v1436, %v1434
        %v1493 = vpack.c.b16 %v1437, %v1435
        %v1494 = vpack.c.b16 %v1440, %v1438
        %v1495 = vpack.c.b16 %v1441, %v1439
        %v1496 = vpack.c.b16 %v1444, %v1442
        %v1497 = vpack.c.b16 %v1445, %v1443
        %v1498 = vpack.c.b16 %v1448, %v1446
        %v1499 = vpack.c.b16 %v1449, %v1447
        %v1500 = vpack.c.b16 %v1452, %v1450
        %v1501 = vpack.c.b16 %v1453, %v1451
        %v1502 = vpack.c.b16 %v1456, %v1454
        %v1503 = vpack.c.b16 %v1457, %v1455
        %v1504 = vpack.c.b16 %v1460, %v1458
        %v1505 = vpack.c.b16 %v1461, %v1459
        %v1506 = vpack.c.b16 %v1464, %v1462
        %v1507 = vpack.c.b16 %v1465, %v1463
        %v1508 = vpack.c.b16 %v1468, %v1466
        %v1509 = vpack.c.b16 %v1469, %v1467
        %v1510 = vpack.c.b16 %v1472, %v1470
        %v1511 = vpack.c.b16 %v1473, %v1471
        %v1512 = vpack.c.b16 %v1476, %v1474
        %v1513 = vpack.c.b16 %v1477, %v1475
        %v1514 = vpack.c.b16 %v1480, %v1478
        %v1515 = vpack.c.b16 %v1481, %v1479
        %v1516 = vpack.c.b16 %v1484, %v1482
        %v1517 = vpack.c.b16 %v1485, %v1483
        %1550 = vmatpush.bf16.msra.mxu0 %v1500
        %1551 = vmatpush.bf16.msra.mxu0 %v1498
        %1552 = vmatpush.bf16.msra.mxu0 %v1496
        %1553 = vmatpush.bf16.msra.mxu0 %v1494
        %1554 = vmatpush.bf16.msra.mxu0 %v1492
        %1555 = vmatpush.bf16.msra.mxu0 %v1490
        %1556 = vmatpush.bf16.msra.mxu0 %v1488
        %1557 = vmatpush.bf16.msra.mxu0 %v1486
        %1558 = vmatmul.bf16.gmra.mxu0 %v1350
        %v1559 = vpop.f32.mrf.mxu0
        %v1560 = vadd.f32 %v1386, %v1559
        %v1561 = vpop.f32.mrf.mxu0
        %v1562 = vadd.f32 %v1386, %v1561
        %1563 = vdwg.mxu0
        %1564 = vmatpush.bf16.msra.mxu0 %v1516
        %1565 = vmatpush.bf16.msra.mxu0 %v1514
        %1566 = vmatpush.bf16.msra.mxu0 %v1512
        %1567 = vmatpush.bf16.msra.mxu0 %v1510
        %1568 = vmatpush.bf16.msra.mxu0 %v1508
        %1569 = vmatpush.bf16.msra.mxu0 %v1506
        %1570 = vmatpush.bf16.msra.mxu0 %v1504
        %1571 = vmatpush.bf16.msra.mxu0 %v1502
        %1572 = vmatmul.bf16.gmra.mxu0 %v1351
        %v1573 = vpop.f32.mrf.mxu0
        %v1574 = vadd.f32 %v1560, %v1573
        %v1575 = vpop.f32.mrf.mxu0
        %v1576 = vadd.f32 %v1562, %v1575
        %1577 = vdwg.mxu0
        %1578 = vmatpush.bf16.msra.mxu0 %v1501
        %1579 = vmatpush.bf16.msra.mxu0 %v1499
        %1580 = vmatpush.bf16.msra.mxu0 %v1497
        %1581 = vmatpush.bf16.msra.mxu0 %v1495
        %1582 = vmatpush.bf16.msra.mxu0 %v1493
        %1583 = vmatpush.bf16.msra.mxu0 %v1491
        %1584 = vmatpush.bf16.msra.mxu0 %v1489
        %1585 = vmatpush.bf16.msra.mxu0 %v1487
        %1586 = vmatmul.bf16.gmra.mxu0 %v1350
        %v1587 = vpop.f32.mrf.mxu0
        %v1588 = vadd.f32 %v1387, %v1587
        %v1589 = vpop.f32.mrf.mxu0
        %v1590 = vadd.f32 %v1387, %v1589
        %1591 = vdwg.mxu0
        %1592 = vmatpush.bf16.msra.mxu0 %v1517
        %1593 = vmatpush.bf16.msra.mxu0 %v1515
        %1594 = vmatpush.bf16.msra.mxu0 %v1513
        %1595 = vmatpush.bf16.msra.mxu0 %v1511
        %1596 = vmatpush.bf16.msra.mxu0 %v1509
        %1597 = vmatpush.bf16.msra.mxu0 %v1507
        %1598 = vmatpush.bf16.msra.mxu0 %v1505
        %1599 = vmatpush.bf16.msra.mxu0 %v1503
        %1600 = vmatmul.bf16.gmra.mxu0 %v1351
        %v1601 = vpop.f32.mrf.mxu0
        %v1602 = vadd.f32 %v1588, %v1601
        %v1603 = vpop.f32.mrf.mxu0
        %v1604 = vadd.f32 %v1590, %v1603
        %1605 = vdwg.mxu0
        %v1606 = vld [vmem:[%s1051] sm:$0xff]
        %v1607 = vld [vmem:[%s1051 + $0x8] sm:$0xff]
        %v1608 = vld [vmem:[%s1051 + $0x10] sm:$0xff]
        %v1609 = vld [vmem:[%s1051 + $0x18] sm:$0xff]
        %v1610 = vld [vmem:[%s1051 + $0x20] sm:$0xff]
        %v1611 = vld [vmem:[%s1051 + $0x28] sm:$0xff]
        %v1612 = vld [vmem:[%s1051 + $0x30] sm:$0xff]
        %v1613 = vld [vmem:[%s1051 + $0x38] sm:$0xff]
        %v1614 = vld [vmem:[%s1051 + $0x40] sm:$0xff]
        %v1615 = vld [vmem:[%s1051 + $0x48] sm:$0xff]
        %v1616 = vld [vmem:[%s1051 + $0x50] sm:$0xff]
        %v1617 = vld [vmem:[%s1051 + $0x58] sm:$0xff]
        %v1618 = vld [vmem:[%s1051 + $0x60] sm:$0xff]
        %v1619 = vld [vmem:[%s1051 + $0x68] sm:$0xff]
        %v1620 = vld [vmem:[%s1051 + $0x70] sm:$0xff]
        %v1621 = vld [vmem:[%s1051 + $0x78] sm:$0xff]
        %v1622 = vld [vmem:[%s1051 + $0x80] sm:$0xff]
        %v1623 = vld [vmem:[%s1051 + $0x88] sm:$0xff]
        %v1624 = vld [vmem:[%s1051 + $0x90] sm:$0xff]
        %v1625 = vld [vmem:[%s1051 + $0x98] sm:$0xff]
        %v1626 = vld [vmem:[%s1051 + $0xa0] sm:$0xff]
        %v1627 = vld [vmem:[%s1051 + $0xa8] sm:$0xff]
        %v1628 = vld [vmem:[%s1051 + $0xb0] sm:$0xff]
        %v1629 = vld [vmem:[%s1051 + $0xb8] sm:$0xff]
        %v1630 = vld [vmem:[%s1051 + $0xc0] sm:$0xff]
        %v1631 = vld [vmem:[%s1051 + $0xc8] sm:$0xff]
        %v1632 = vld [vmem:[%s1051 + $0xd0] sm:$0xff]
        %v1633 = vld [vmem:[%s1051 + $0xd8] sm:$0xff]
        %v1634 = vld [vmem:[%s1051 + $0xe0] sm:$0xff]
        %v1635 = vld [vmem:[%s1051 + $0xe8] sm:$0xff]
        %v1636 = vld [vmem:[%s1051 + $0xf0] sm:$0xff]
        %v1637 = vld [vmem:[%s1051 + $0xf8] sm:$0xff]
        %v1638 = vld [vmem:[%s1061] sm:$0x3]
        %v1640 = vperm.slane %v1638, 0
        %v1641 = vperm.slane %v1638, 1
        %v1676 = vunpack.c.l.b16 %v1606
        %v1677 = vunpack.c.h.b16 %v1606
        %v1678 = vunpack.c.l.b16 %v1607
        %v1679 = vunpack.c.h.b16 %v1607
        %v1680 = vunpack.c.l.b16 %v1608
        %v1681 = vunpack.c.h.b16 %v1608
        %v1682 = vunpack.c.l.b16 %v1609
        %v1683 = vunpack.c.h.b16 %v1609
        %v1684 = vunpack.c.l.b16 %v1610
        %v1685 = vunpack.c.h.b16 %v1610
        %v1686 = vunpack.c.l.b16 %v1611
        %v1687 = vunpack.c.h.b16 %v1611
        %v1688 = vunpack.c.l.b16 %v1612
        %v1689 = vunpack.c.h.b16 %v1612
        %v1690 = vunpack.c.l.b16 %v1613
        %v1691 = vunpack.c.h.b16 %v1613
        %v1692 = vunpack.c.l.b16 %v1614
        %v1693 = vunpack.c.h.b16 %v1614
        %v1694 = vunpack.c.l.b16 %v1615
        %v1695 = vunpack.c.h.b16 %v1615
        %v1696 = vunpack.c.l.b16 %v1616
        %v1697 = vunpack.c.h.b16 %v1616
        %v1698 = vunpack.c.l.b16 %v1617
        %v1699 = vunpack.c.h.b16 %v1617
        %v1700 = vunpack.c.l.b16 %v1618
        %v1701 = vunpack.c.h.b16 %v1618
        %v1702 = vunpack.c.l.b16 %v1619
        %v1703 = vunpack.c.h.b16 %v1619
        %v1704 = vunpack.c.l.b16 %v1620
        %v1705 = vunpack.c.h.b16 %v1620
        %v1706 = vunpack.c.l.b16 %v1621
        %v1707 = vunpack.c.h.b16 %v1621
        %v1708 = vunpack.c.l.b16 %v1622
        %v1709 = vunpack.c.h.b16 %v1622
        %v1710 = vunpack.c.l.b16 %v1623
        %v1711 = vunpack.c.h.b16 %v1623
        %v1712 = vunpack.c.l.b16 %v1624
        %v1713 = vunpack.c.h.b16 %v1624
        %v1714 = vunpack.c.l.b16 %v1625
        %v1715 = vunpack.c.h.b16 %v1625
        %v1716 = vunpack.c.l.b16 %v1626
        %v1717 = vunpack.c.h.b16 %v1626
        %v1718 = vunpack.c.l.b16 %v1627
        %v1719 = vunpack.c.h.b16 %v1627
        %v1720 = vunpack.c.l.b16 %v1628
        %v1721 = vunpack.c.h.b16 %v1628
        %v1722 = vunpack.c.l.b16 %v1629
        %v1723 = vunpack.c.h.b16 %v1629
        %v1724 = vunpack.c.l.b16 %v1630
        %v1725 = vunpack.c.h.b16 %v1630
        %v1726 = vunpack.c.l.b16 %v1631
        %v1727 = vunpack.c.h.b16 %v1631
        %v1728 = vunpack.c.l.b16 %v1632
        %v1729 = vunpack.c.h.b16 %v1632
        %v1730 = vunpack.c.l.b16 %v1633
        %v1731 = vunpack.c.h.b16 %v1633
        %v1732 = vunpack.c.l.b16 %v1634
        %v1733 = vunpack.c.h.b16 %v1634
        %v1734 = vunpack.c.l.b16 %v1635
        %v1735 = vunpack.c.h.b16 %v1635
        %v1736 = vunpack.c.l.b16 %v1636
        %v1737 = vunpack.c.h.b16 %v1636
        %v1738 = vunpack.c.l.b16 %v1637
        %v1739 = vunpack.c.h.b16 %v1637
        %v1740 = vpack.c.b16 %v1678, %v1676
        %v1741 = vpack.c.b16 %v1679, %v1677
        %v1742 = vpack.c.b16 %v1682, %v1680
        %v1743 = vpack.c.b16 %v1683, %v1681
        %v1744 = vpack.c.b16 %v1686, %v1684
        %v1745 = vpack.c.b16 %v1687, %v1685
        %v1746 = vpack.c.b16 %v1690, %v1688
        %v1747 = vpack.c.b16 %v1691, %v1689
        %v1748 = vpack.c.b16 %v1694, %v1692
        %v1749 = vpack.c.b16 %v1695, %v1693
        %v1750 = vpack.c.b16 %v1698, %v1696
        %v1751 = vpack.c.b16 %v1699, %v1697
        %v1752 = vpack.c.b16 %v1702, %v1700
        %v1753 = vpack.c.b16 %v1703, %v1701
        %v1754 = vpack.c.b16 %v1706, %v1704
        %v1755 = vpack.c.b16 %v1707, %v1705
        %v1756 = vpack.c.b16 %v1710, %v1708
        %v1757 = vpack.c.b16 %v1711, %v1709
        %v1758 = vpack.c.b16 %v1714, %v1712
        %v1759 = vpack.c.b16 %v1715, %v1713
        %v1760 = vpack.c.b16 %v1718, %v1716
        %v1761 = vpack.c.b16 %v1719, %v1717
        %v1762 = vpack.c.b16 %v1722, %v1720
        %v1763 = vpack.c.b16 %v1723, %v1721
        %v1764 = vpack.c.b16 %v1726, %v1724
        %v1765 = vpack.c.b16 %v1727, %v1725
        %v1766 = vpack.c.b16 %v1730, %v1728
        %v1767 = vpack.c.b16 %v1731, %v1729
        %v1768 = vpack.c.b16 %v1734, %v1732
        %v1769 = vpack.c.b16 %v1735, %v1733
        %v1770 = vpack.c.b16 %v1738, %v1736
        %v1771 = vpack.c.b16 %v1739, %v1737
        %1804 = vmatpush.bf16.msra.mxu0 %v1754
        %1805 = vmatpush.bf16.msra.mxu0 %v1752
        %1806 = vmatpush.bf16.msra.mxu0 %v1750
        %1807 = vmatpush.bf16.msra.mxu0 %v1748
        %1808 = vmatpush.bf16.msra.mxu0 %v1746
        %1809 = vmatpush.bf16.msra.mxu0 %v1744
        %1810 = vmatpush.bf16.msra.mxu0 %v1742
        %1811 = vmatpush.bf16.msra.mxu0 %v1740
        %1812 = vmatmul.bf16.gmra.mxu0 %v1350
        %v1813 = vpop.f32.mrf.mxu0
        %v1814 = vadd.f32 %v1640, %v1813
        %v1815 = vpop.f32.mrf.mxu0
        %v1816 = vadd.f32 %v1640, %v1815
        %1817 = vdwg.mxu0
        %1818 = vmatpush.bf16.msra.mxu0 %v1770
        %1819 = vmatpush.bf16.msra.mxu0 %v1768
        %1820 = vmatpush.bf16.msra.mxu0 %v1766
        %1821 = vmatpush.bf16.msra.mxu0 %v1764
        %1822 = vmatpush.bf16.msra.mxu0 %v1762
        %1823 = vmatpush.bf16.msra.mxu0 %v1760
        %1824 = vmatpush.bf16.msra.mxu0 %v1758
        %1825 = vmatpush.bf16.msra.mxu0 %v1756
        %1826 = vmatmul.bf16.gmra.mxu0 %v1351
        %v1827 = vpop.f32.mrf.mxu0
        %v1828 = vadd.f32 %v1814, %v1827
        %v1829 = vpop.f32.mrf.mxu0
        %v1830 = vadd.f32 %v1816, %v1829
        %1831 = vdwg.mxu0
        %1832 = vmatpush.bf16.msra.mxu0 %v1755
        %1833 = vmatpush.bf16.msra.mxu0 %v1753
        %1834 = vmatpush.bf16.msra.mxu0 %v1751
        %1835 = vmatpush.bf16.msra.mxu0 %v1749
        %1836 = vmatpush.bf16.msra.mxu0 %v1747
        %1837 = vmatpush.bf16.msra.mxu0 %v1745
        %1838 = vmatpush.bf16.msra.mxu0 %v1743
        %1839 = vmatpush.bf16.msra.mxu0 %v1741
        %1840 = vmatmul.bf16.gmra.mxu0 %v1350
        %v1841 = vpop.f32.mrf.mxu0
        %v1842 = vadd.f32 %v1641, %v1841
        %v1843 = vpop.f32.mrf.mxu0
        %v1844 = vadd.f32 %v1641, %v1843
        %1845 = vdwg.mxu0
        %1846 = vmatpush.bf16.msra.mxu0 %v1771
        %1847 = vmatpush.bf16.msra.mxu0 %v1769
        %1848 = vmatpush.bf16.msra.mxu0 %v1767
        %1849 = vmatpush.bf16.msra.mxu0 %v1765
        %1850 = vmatpush.bf16.msra.mxu0 %v1763
        %1851 = vmatpush.bf16.msra.mxu0 %v1761
        %1852 = vmatpush.bf16.msra.mxu0 %v1759
        %1853 = vmatpush.bf16.msra.mxu0 %v1757
        %1854 = vmatmul.bf16.gmra.mxu0 %v1351
        %v1855 = vpop.f32.mrf.mxu0
        %v1856 = vadd.f32 %v1842, %v1855
        %v1857 = vpop.f32.mrf.mxu0
        %v1858 = vadd.f32 %v1844, %v1857
        %1859 = vdwg.mxu0
        %v1860 = vld [vmem:[%s1071] sm:$0xff]
        %v1861 = vld [vmem:[%s1071 + $0x8] sm:$0xff]
        %v1862 = vld [vmem:[%s1071 + $0x10] sm:$0xff]
        %v1863 = vld [vmem:[%s1071 + $0x18] sm:$0xff]
        %v1864 = vld [vmem:[%s1071 + $0x20] sm:$0xff]
        %v1865 = vld [vmem:[%s1071 + $0x28] sm:$0xff]
        %v1866 = vld [vmem:[%s1071 + $0x30] sm:$0xff]
        %v1867 = vld [vmem:[%s1071 + $0x38] sm:$0xff]
        %v1868 = vld [vmem:[%s1071 + $0x40] sm:$0xff]
        %v1869 = vld [vmem:[%s1071 + $0x48] sm:$0xff]
        %v1870 = vld [vmem:[%s1071 + $0x50] sm:$0xff]
        %v1871 = vld [vmem:[%s1071 + $0x58] sm:$0xff]
        %v1872 = vld [vmem:[%s1071 + $0x60] sm:$0xff]
        %v1873 = vld [vmem:[%s1071 + $0x68] sm:$0xff]
        %v1874 = vld [vmem:[%s1071 + $0x70] sm:$0xff]
        %v1875 = vld [vmem:[%s1071 + $0x78] sm:$0xff]
        %v1876 = vld [vmem:[%s1071 + $0x80] sm:$0xff]
        %v1877 = vld [vmem:[%s1071 + $0x88] sm:$0xff]
        %v1878 = vld [vmem:[%s1071 + $0x90] sm:$0xff]
        %v1879 = vld [vmem:[%s1071 + $0x98] sm:$0xff]
        %v1880 = vld [vmem:[%s1071 + $0xa0] sm:$0xff]
        %v1881 = vld [vmem:[%s1071 + $0xa8] sm:$0xff]
        %v1882 = vld [vmem:[%s1071 + $0xb0] sm:$0xff]
        %v1883 = vld [vmem:[%s1071 + $0xb8] sm:$0xff]
        %v1884 = vld [vmem:[%s1071 + $0xc0] sm:$0xff]
        %v1885 = vld [vmem:[%s1071 + $0xc8] sm:$0xff]
        %v1886 = vld [vmem:[%s1071 + $0xd0] sm:$0xff]
        %v1887 = vld [vmem:[%s1071 + $0xd8] sm:$0xff]
        %v1888 = vld [vmem:[%s1071 + $0xe0] sm:$0xff]
        %v1889 = vld [vmem:[%s1071 + $0xe8] sm:$0xff]
        %v1890 = vld [vmem:[%s1071 + $0xf0] sm:$0xff]
        %v1891 = vld [vmem:[%s1071 + $0xf8] sm:$0xff]
        %v1892 = vld [vmem:[%s1081] sm:$0x3]
        %v1894 = vperm.slane %v1892, 0
        %v1895 = vperm.slane %v1892, 1
        %v1930 = vunpack.c.l.b16 %v1860
        %v1931 = vunpack.c.h.b16 %v1860
        %v1932 = vunpack.c.l.b16 %v1861
        %v1933 = vunpack.c.h.b16 %v1861
        %v1934 = vunpack.c.l.b16 %v1862
        %v1935 = vunpack.c.h.b16 %v1862
        %v1936 = vunpack.c.l.b16 %v1863
        %v1937 = vunpack.c.h.b16 %v1863
        %v1938 = vunpack.c.l.b16 %v1864
        %v1939 = vunpack.c.h.b16 %v1864
        %v1940 = vunpack.c.l.b16 %v1865
        %v1941 = vunpack.c.h.b16 %v1865
        %v1942 = vunpack.c.l.b16 %v1866
        %v1943 = vunpack.c.h.b16 %v1866
        %v1944 = vunpack.c.l.b16 %v1867
        %v1945 = vunpack.c.h.b16 %v1867
        %v1946 = vunpack.c.l.b16 %v1868
        %v1947 = vunpack.c.h.b16 %v1868
        %v1948 = vunpack.c.l.b16 %v1869
        %v1949 = vunpack.c.h.b16 %v1869
        %v1950 = vunpack.c.l.b16 %v1870
        %v1951 = vunpack.c.h.b16 %v1870
        %v1952 = vunpack.c.l.b16 %v1871
        %v1953 = vunpack.c.h.b16 %v1871
        %v1954 = vunpack.c.l.b16 %v1872
        %v1955 = vunpack.c.h.b16 %v1872
        %v1956 = vunpack.c.l.b16 %v1873
        %v1957 = vunpack.c.h.b16 %v1873
        %v1958 = vunpack.c.l.b16 %v1874
        %v1959 = vunpack.c.h.b16 %v1874
        %v1960 = vunpack.c.l.b16 %v1875
        %v1961 = vunpack.c.h.b16 %v1875
        %v1962 = vunpack.c.l.b16 %v1876
        %v1963 = vunpack.c.h.b16 %v1876
        %v1964 = vunpack.c.l.b16 %v1877
        %v1965 = vunpack.c.h.b16 %v1877
        %v1966 = vunpack.c.l.b16 %v1878
        %v1967 = vunpack.c.h.b16 %v1878
        %v1968 = vunpack.c.l.b16 %v1879
        %v1969 = vunpack.c.h.b16 %v1879
        %v1970 = vunpack.c.l.b16 %v1880
        %v1971 = vunpack.c.h.b16 %v1880
        %v1972 = vunpack.c.l.b16 %v1881
        %v1973 = vunpack.c.h.b16 %v1881
        %v1974 = vunpack.c.l.b16 %v1882
        %v1975 = vunpack.c.h.b16 %v1882
        %v1976 = vunpack.c.l.b16 %v1883
        %v1977 = vunpack.c.h.b16 %v1883
        %v1978 = vunpack.c.l.b16 %v1884
        %v1979 = vunpack.c.h.b16 %v1884
        %v1980 = vunpack.c.l.b16 %v1885
        %v1981 = vunpack.c.h.b16 %v1885
        %v1982 = vunpack.c.l.b16 %v1886
        %v1983 = vunpack.c.h.b16 %v1886
        %v1984 = vunpack.c.l.b16 %v1887
        %v1985 = vunpack.c.h.b16 %v1887
        %v1986 = vunpack.c.l.b16 %v1888
        %v1987 = vunpack.c.h.b16 %v1888
        %v1988 = vunpack.c.l.b16 %v1889
        %v1989 = vunpack.c.h.b16 %v1889
        %v1990 = vunpack.c.l.b16 %v1890
        %v1991 = vunpack.c.h.b16 %v1890
        %v1992 = vunpack.c.l.b16 %v1891
        %v1993 = vunpack.c.h.b16 %v1891
        %v1994 = vpack.c.b16 %v1932, %v1930
        %v1995 = vpack.c.b16 %v1933, %v1931
        %v1996 = vpack.c.b16 %v1936, %v1934
        %v1997 = vpack.c.b16 %v1937, %v1935
        %v1998 = vpack.c.b16 %v1940, %v1938
        %v1999 = vpack.c.b16 %v1941, %v1939
        %v2000 = vpack.c.b16 %v1944, %v1942
        %v2001 = vpack.c.b16 %v1945, %v1943
        %v2002 = vpack.c.b16 %v1948, %v1946
        %v2003 = vpack.c.b16 %v1949, %v1947
        %v2004 = vpack.c.b16 %v1952, %v1950
        %v2005 = vpack.c.b16 %v1953, %v1951
        %v2006 = vpack.c.b16 %v1956, %v1954
        %v2007 = vpack.c.b16 %v1957, %v1955
        %v2008 = vpack.c.b16 %v1960, %v1958
        %v2009 = vpack.c.b16 %v1961, %v1959
        %v2010 = vpack.c.b16 %v1964, %v1962
        %v2011 = vpack.c.b16 %v1965, %v1963
        %v2012 = vpack.c.b16 %v1968, %v1966
        %v2013 = vpack.c.b16 %v1969, %v1967
        %v2014 = vpack.c.b16 %v1972, %v1970
        %v2015 = vpack.c.b16 %v1973, %v1971
        %v2016 = vpack.c.b16 %v1976, %v1974
        %v2017 = vpack.c.b16 %v1977, %v1975
        %v2018 = vpack.c.b16 %v1980, %v1978
        %v2019 = vpack.c.b16 %v1981, %v1979
        %v2020 = vpack.c.b16 %v1984, %v1982
        %v2021 = vpack.c.b16 %v1985, %v1983
        %v2022 = vpack.c.b16 %v1988, %v1986
        %v2023 = vpack.c.b16 %v1989, %v1987
        %v2024 = vpack.c.b16 %v1992, %v1990
        %v2025 = vpack.c.b16 %v1993, %v1991
        %2058 = vmatpush.bf16.msra.mxu0 %v2008
        %2059 = vmatpush.bf16.msra.mxu0 %v2006
        %2060 = vmatpush.bf16.msra.mxu0 %v2004
        %2061 = vmatpush.bf16.msra.mxu0 %v2002
        %2062 = vmatpush.bf16.msra.mxu0 %v2000
        %2063 = vmatpush.bf16.msra.mxu0 %v1998
        %2064 = vmatpush.bf16.msra.mxu0 %v1996
        %2065 = vmatpush.bf16.msra.mxu0 %v1994
        %2066 = vmatmul.bf16.gmra.mxu0 %v1350
        %v2067 = vpop.f32.mrf.mxu0
        %v2068 = vadd.f32 %v1894, %v2067
        %v2069 = vpop.f32.mrf.mxu0
        %v2070 = vadd.f32 %v1894, %v2069
        %2071 = vdwg.mxu0
        %2072 = vmatpush.bf16.msra.mxu0 %v2024
        %2073 = vmatpush.bf16.msra.mxu0 %v2022
        %2074 = vmatpush.bf16.msra.mxu0 %v2020
        %2075 = vmatpush.bf16.msra.mxu0 %v2018
        %2076 = vmatpush.bf16.msra.mxu0 %v2016
        %2077 = vmatpush.bf16.msra.mxu0 %v2014
        %2078 = vmatpush.bf16.msra.mxu0 %v2012
        %2079 = vmatpush.bf16.msra.mxu0 %v2010
        %2080 = vmatmul.bf16.gmra.mxu0 %v1351
        %v2081 = vpop.f32.mrf.mxu0
        %v2082 = vadd.f32 %v2068, %v2081
        %v2083 = vpop.f32.mrf.mxu0
        %v2084 = vadd.f32 %v2070, %v2083
        %2085 = vdwg.mxu0
        %2086 = vmatpush.bf16.msra.mxu0 %v2009
        %2087 = vmatpush.bf16.msra.mxu0 %v2007
        %2088 = vmatpush.bf16.msra.mxu0 %v2005
        %2089 = vmatpush.bf16.msra.mxu0 %v2003
        %2090 = vmatpush.bf16.msra.mxu0 %v2001
        %2091 = vmatpush.bf16.msra.mxu0 %v1999
        %2092 = vmatpush.bf16.msra.mxu0 %v1997
        %2093 = vmatpush.bf16.msra.mxu0 %v1995
        %2094 = vmatmul.bf16.gmra.mxu0 %v1350
        %v2095 = vpop.f32.mrf.mxu0
        %v2096 = vadd.f32 %v1895, %v2095
        %v2097 = vpop.f32.mrf.mxu0
        %v2098 = vadd.f32 %v1895, %v2097
        %2099 = vdwg.mxu0
        %2100 = vmatpush.bf16.msra.mxu0 %v2025
        %2101 = vmatpush.bf16.msra.mxu0 %v2023
        %2102 = vmatpush.bf16.msra.mxu0 %v2021
        %2103 = vmatpush.bf16.msra.mxu0 %v2019
        %2104 = vmatpush.bf16.msra.mxu0 %v2017
        %2105 = vmatpush.bf16.msra.mxu0 %v2015
        %2106 = vmatpush.bf16.msra.mxu0 %v2013
        %2107 = vmatpush.bf16.msra.mxu0 %v2011
        %2108 = vmatmul.bf16.gmra.mxu0 %v1351
        %v2109 = vpop.f32.mrf.mxu0
        %v2110 = vadd.f32 %v2096, %v2109
        %v2111 = vpop.f32.mrf.mxu0
        %v2112 = vadd.f32 %v2098, %v2111
        %2113 = vdwg.mxu0
        %v2114 = vld [vmem:[%s1] sm:$0x1]
        %v2115 = vld [vmem:[%s1 + $0x1] sm:$0x1]
        %v2116 = vpack.c.bf16 %v1574, %v1574
        %v2117 = vpack.c.bf16 %v1576, %v1576
        %v2118 = vpack.c.bf16 %v1828, %v1828
        %v2119 = vpack.c.bf16 %v1830, %v1830
        %v2120 = vpack.c.bf16 %v2082, %v2082
        %v2121 = vpack.c.bf16 %v2084, %v2084
        %v2124 = vperm.slane %v2114, 0
        %v2125 = vperm.slane %v2115, 0
        %vm2128 = vcmask 523264
        %v2130 = vsel %vm2128, %v2116, 0
        %v2133 = vsel %vm2128, %v2118, 0
        %2135 = vmatpush.bf16.xpose.msra.mxu0 0
        %2136 = vmatpush.bf16.xpose.msra.mxu0 0
        %2137 = vmatpush.bf16.xpose.msra.mxu0 0
        %2138 = vmatpush.bf16.xpose.msra.mxu0 0
        %2139 = vmatpush.bf16.xpose.msra.mxu0 0
        %2140 = vmatpush.bf16.xpose.msra.mxu0 0
        %2141 = vmatpush.bf16.xpose.msra.mxu0 0
        %2142 = vmatpush.bf16.xpose.msra.mxu0 %v2133
        %2143 = vmatmul.bf16.gmra.mxu0 %v2130
        %v2144 = vpop.f32.mrf.mxu0
        %v2145 = vadd.f32 %v2124, %v2144
        %v2146 = vpop.f32.mrf.mxu0
        %2147 = vdwg.mxu0
        %v2149 = vsel %vm2128, %v2117, 0
        %v2152 = vsel %vm2128, %v2119, 0
        %2154 = vmatpush.bf16.xpose.msra.mxu0 0
        %2155 = vmatpush.bf16.xpose.msra.mxu0 0
        %2156 = vmatpush.bf16.xpose.msra.mxu0 0
        %2157 = vmatpush.bf16.xpose.msra.mxu0 0
        %2158 = vmatpush.bf16.xpose.msra.mxu0 0
        %2159 = vmatpush.bf16.xpose.msra.mxu0 0
        %2160 = vmatpush.bf16.xpose.msra.mxu0 0
        %2161 = vmatpush.bf16.xpose.msra.mxu0 %v2152
        %2162 = vmatmul.bf16.gmra.mxu0 %v2149
        %v2163 = vpop.f32.mrf.mxu0
        %v2164 = vadd.f32 %v2125, %v2163
        %v2165 = vpop.f32.mrf.mxu0
        %2166 = vdwg.mxu0
        %vm2167 = vcmask 64512
        %v2168 = vsel %vm2167, %v2145, -inf
        %2169 = vmax.xlane.f32.xlu0 %v2168
        %v2170 = vpop.xlane.xlu0 %2169
        %v2171 = vsel %vm2167, %v2164, -inf
        %2172 = vmax.xlane.f32.xlu0 %v2171
        %v2173 = vpop.xlane.xlu0 %2172
        %v2174 = vsub.f32 %v2145, %v2170
        %v2175 = vsub.f32 %v2164, %v2173
        %v2176 = vmul.f32 %v2174, 1.442695
        %v2177 = vpow.pop %v2176
        %v2178 = vmul.f32 %v2175, 1.442695
        %v2179 = vpow.pop %v2178
        %v2180 = vsel %vm2167, %v2177, 0.0
        %2181 = vadd.xlane.f32.xlu0 %v2180
        %v2182 = vpop.xlane.xlu0 %2181
        %v2183 = vsel %vm2167, %v2179, 0.0
        %2184 = vadd.xlane.f32.xlu0 %v2183
        %v2185 = vpop.xlane.xlu0 %2184
        %v2186 = vrcp.pop %v2182
        %v2187 = vrcp.pop %v2185
        %v2188 = vmul.f32 %v2177, %v2186
        %v2189 = vmul.f32 %v2179, %v2187
        %v2190 = vpack.c.bf16 %v2188, %v2188
        %v2191 = vpack.c.bf16 %v2189, %v2189
        %v2193 = vsel %vm2167, %v2190, 0
        %vm2195 = vcmask 1043456
        %v2197 = vsel %vm2195, %v2120, 0
        %2199 = vmatpush.bf16.msra.mxu0 0
        %2200 = vmatpush.bf16.msra.mxu0 0
        %2201 = vmatpush.bf16.msra.mxu0 0
        %2202 = vmatpush.bf16.msra.mxu0 0
        %2203 = vmatpush.bf16.msra.mxu0 0
        %2204 = vmatpush.bf16.msra.mxu0 0
        %2205 = vmatpush.bf16.msra.mxu0 0
        %2206 = vmatpush.bf16.msra.mxu0 %v2197
        %2207 = vmatmul.bf16.gmra.mxu0 %v2193
        %v2208 = vpop.f32.mrf.mxu0
        %v2209 = vadd.f32 0.0, %v2208
        %v2210 = vpop.f32.mrf.mxu0
        %2211 = vdwg.mxu0
        %v2213 = vsel %vm2167, %v2191, 0
        %v2216 = vsel %vm2195, %v2121, 0
        %2218 = vmatpush.bf16.msra.mxu0 0
        %2219 = vmatpush.bf16.msra.mxu0 0
        %2220 = vmatpush.bf16.msra.mxu0 0
        %2221 = vmatpush.bf16.msra.mxu0 0
        %2222 = vmatpush.bf16.msra.mxu0 0
        %2223 = vmatpush.bf16.msra.mxu0 0
        %2224 = vmatpush.bf16.msra.mxu0 0
        %2225 = vmatpush.bf16.msra.mxu0 %v2216
        %2226 = vmatmul.bf16.gmra.mxu0 %v2213
        %v2227 = vpop.f32.mrf.mxu0
        %v2228 = vadd.f32 0.0, %v2227
        %v2229 = vpop.f32.mrf.mxu0
        %2230 = vdwg.mxu0
        %v2232 = vunpack.c.l.b16 %v2116
        %v2233 = vpack.c.b16 %v2232, %v2232
        %2234 = vrot.lane.b32.xlu0 %v2233, 64
        %v2235 = vpop.permute.xlu0 %2234
        %v2237 = vunpack.c.l.b16 %v2118
        %v2238 = vpack.c.b16 %v2237, %v2237
        %2239 = vrot.lane.b32.xlu0 %v2238, 64
        %v2240 = vpop.permute.xlu0 %2239
        %v2242 = vsel %vm2128, %v2235, 0
        %v2245 = vsel %vm2128, %v2240, 0
        %2247 = vmatpush.bf16.xpose.msra.mxu0 0
        %2248 = vmatpush.bf16.xpose.msra.mxu0 0
        %2249 = vmatpush.bf16.xpose.msra.mxu0 0
        %2250 = vmatpush.bf16.xpose.msra.mxu0 0
        %2251 = vmatpush.bf16.xpose.msra.mxu0 0
        %2252 = vmatpush.bf16.xpose.msra.mxu0 0
        %2253 = vmatpush.bf16.xpose.msra.mxu0 0
        %2254 = vmatpush.bf16.xpose.msra.mxu0 %v2245
        %2255 = vmatmul.bf16.gmra.mxu0 %v2242
        %v2256 = vpop.f32.mrf.mxu0
        %v2257 = vadd.f32 %v2124, %v2256
        %v2258 = vpop.f32.mrf.mxu0
        %2259 = vdwg.mxu0
        %v2261 = vunpack.c.l.b16 %v2117
        %v2262 = vpack.c.b16 %v2261, %v2261
        %2263 = vrot.lane.b32.xlu0 %v2262, 64
        %v2264 = vpop.permute.xlu0 %2263
        %v2266 = vunpack.c.l.b16 %v2119
        %v2267 = vpack.c.b16 %v2266, %v2266
        %2268 = vrot.lane.b32.xlu0 %v2267, 64
        %v2269 = vpop.permute.xlu0 %2268
        %v2271 = vsel %vm2128, %v2264, 0
        %v2274 = vsel %vm2128, %v2269, 0
        %2276 = vmatpush.bf16.xpose.msra.mxu0 0
        %2277 = vmatpush.bf16.xpose.msra.mxu0 0
        %2278 = vmatpush.bf16.xpose.msra.mxu0 0
        %2279 = vmatpush.bf16.xpose.msra.mxu0 0
        %2280 = vmatpush.bf16.xpose.msra.mxu0 0
        %2281 = vmatpush.bf16.xpose.msra.mxu0 0
        %2282 = vmatpush.bf16.xpose.msra.mxu0 0
        %2283 = vmatpush.bf16.xpose.msra.mxu0 %v2274
        %2284 = vmatmul.bf16.gmra.mxu0 %v2271
        %v2285 = vpop.f32.mrf.mxu0
        %v2286 = vadd.f32 %v2125, %v2285
        %v2287 = vpop.f32.mrf.mxu0
        %2288 = vdwg.mxu0
        %v2289 = vsel %vm2167, %v2257, -inf
        %2290 = vmax.xlane.f32.xlu0 %v2289
        %v2291 = vpop.xlane.xlu0 %2290
        %v2292 = vsel %vm2167, %v2286, -inf
        %2293 = vmax.xlane.f32.xlu0 %v2292
        %v2294 = vpop.xlane.xlu0 %2293
        %v2295 = vsub.f32 %v2257, %v2291
        %v2296 = vsub.f32 %v2286, %v2294
        %v2297 = vmul.f32 %v2295, 1.442695
        %v2298 = vpow.pop %v2297
        %v2299 = vmul.f32 %v2296, 1.442695
        %v2300 = vpow.pop %v2299
        %v2301 = vsel %vm2167, %v2298, 0.0
        %2302 = vadd.xlane.f32.xlu0 %v2301
        %v2303 = vpop.xlane.xlu0 %2302
        %v2304 = vsel %vm2167, %v2300, 0.0
        %2305 = vadd.xlane.f32.xlu0 %v2304
        %v2306 = vpop.xlane.xlu0 %2305
        %v2307 = vrcp.pop %v2303
        %v2308 = vrcp.pop %v2306
        %v2309 = vmul.f32 %v2298, %v2307
        %v2310 = vmul.f32 %v2300, %v2308
        %v2311 = vpack.c.bf16 %v2309, %v2309
        %v2312 = vpack.c.bf16 %v2310, %v2310
        %v2314 = vunpack.c.l.b16 %v2120
        %v2315 = vpack.c.b16 %v2314, %v2314
        %2316 = vrot.lane.b32.xlu0 %v2315, 64
        %v2317 = vpop.permute.xlu0 %2316
        %v2319 = vsel %vm2167, %v2311, 0
        %v2322 = vsel %vm2195, %v2317, 0
        %2324 = vmatpush.bf16.msra.mxu0 0
        %2325 = vmatpush.bf16.msra.mxu0 0
        %2326 = vmatpush.bf16.msra.mxu0 0
        %2327 = vmatpush.bf16.msra.mxu0 0
        %2328 = vmatpush.bf16.msra.mxu0 0
        %2329 = vmatpush.bf16.msra.mxu0 0
        %2330 = vmatpush.bf16.msra.mxu0 0
        %2331 = vmatpush.bf16.msra.mxu0 %v2322
        %2332 = vmatmul.bf16.gmra.mxu0 %v2319
        %v2333 = vpop.f32.mrf.mxu0
        %v2334 = vadd.f32 0.0, %v2333
        %v2335 = vpop.f32.mrf.mxu0
        %2336 = vdwg.mxu0
        %v2338 = vunpack.c.l.b16 %v2121
        %v2339 = vpack.c.b16 %v2338, %v2338
        %2340 = vrot.lane.b32.xlu0 %v2339, 64
        %v2341 = vpop.permute.xlu0 %2340
        %v2343 = vsel %vm2167, %v2312, 0
        %v2346 = vsel %vm2195, %v2341, 0
        %2348 = vmatpush.bf16.msra.mxu0 0
        %2349 = vmatpush.bf16.msra.mxu0 0
        %2350 = vmatpush.bf16.msra.mxu0 0
        %2351 = vmatpush.bf16.msra.mxu0 0
        %2352 = vmatpush.bf16.msra.mxu0 0
        %2353 = vmatpush.bf16.msra.mxu0 0
        %2354 = vmatpush.bf16.msra.mxu0 0
        %2355 = vmatpush.bf16.msra.mxu0 %v2346
        %2356 = vmatmul.bf16.gmra.mxu0 %v2343
        %v2357 = vpop.f32.mrf.mxu0
        %v2358 = vadd.f32 0.0, %v2357
        %v2359 = vpop.f32.mrf.mxu0
        %2360 = vdwg.mxu0
        %v2361 = vpack.c.bf16 %v1602, %v1602
        %v2362 = vpack.c.bf16 %v1604, %v1604
        %v2363 = vpack.c.bf16 %v1856, %v1856
        %v2364 = vpack.c.bf16 %v1858, %v1858
        %v2365 = vpack.c.bf16 %v2110, %v2110
        %v2366 = vpack.c.bf16 %v2112, %v2112
        %v2368 = vsel %vm2128, %v2361, 0
        %v2371 = vsel %vm2128, %v2363, 0
        %2373 = vmatpush.bf16.xpose.msra.mxu0 0
        %2374 = vmatpush.bf16.xpose.msra.mxu0 0
        %2375 = vmatpush.bf16.xpose.msra.mxu0 0
        %2376 = vmatpush.bf16.xpose.msra.mxu0 0
        %2377 = vmatpush.bf16.xpose.msra.mxu0 0
        %2378 = vmatpush.bf16.xpose.msra.mxu0 0
        %2379 = vmatpush.bf16.xpose.msra.mxu0 0
        %2380 = vmatpush.bf16.xpose.msra.mxu0 %v2371
        %2381 = vmatmul.bf16.gmra.mxu0 %v2368
        %v2382 = vpop.f32.mrf.mxu0
        %v2383 = vadd.f32 %v2124, %v2382
        %v2384 = vpop.f32.mrf.mxu0
        %2385 = vdwg.mxu0
        %v2387 = vsel %vm2128, %v2362, 0
        %v2390 = vsel %vm2128, %v2364, 0
        %2392 = vmatpush.bf16.xpose.msra.mxu0 0
        %2393 = vmatpush.bf16.xpose.msra.mxu0 0
        %2394 = vmatpush.bf16.xpose.msra.mxu0 0
        %2395 = vmatpush.bf16.xpose.msra.mxu0 0
        %2396 = vmatpush.bf16.xpose.msra.mxu0 0
        %2397 = vmatpush.bf16.xpose.msra.mxu0 0
        %2398 = vmatpush.bf16.xpose.msra.mxu0 0
        %2399 = vmatpush.bf16.xpose.msra.mxu0 %v2390
        %2400 = vmatmul.bf16.gmra.mxu0 %v2387
        %v2401 = vpop.f32.mrf.mxu0
        %v2402 = vadd.f32 %v2125, %v2401
        %v2403 = vpop.f32.mrf.mxu0
        %2404 = vdwg.mxu0
        %v2405 = vsel %vm2167, %v2383, -inf
        %2406 = vmax.xlane.f32.xlu0 %v2405
        %v2407 = vpop.xlane.xlu0 %2406
        %v2408 = vsel %vm2167, %v2402, -inf
        %2409 = vmax.xlane.f32.xlu0 %v2408
        %v2410 = vpop.xlane.xlu0 %2409
        %v2411 = vsub.f32 %v2383, %v2407
        %v2412 = vsub.f32 %v2402, %v2410
        %v2413 = vmul.f32 %v2411, 1.442695
        %v2414 = vpow.pop %v2413
        %v2415 = vmul.f32 %v2412, 1.442695
        %v2416 = vpow.pop %v2415
        %v2417 = vsel %vm2167, %v2414, 0.0
        %2418 = vadd.xlane.f32.xlu0 %v2417
        %v2419 = vpop.xlane.xlu0 %2418
        %v2420 = vsel %vm2167, %v2416, 0.0
        %2421 = vadd.xlane.f32.xlu0 %v2420
        %v2422 = vpop.xlane.xlu0 %2421
        %v2423 = vrcp.pop %v2419
        %v2424 = vrcp.pop %v2422
        %v2425 = vmul.f32 %v2414, %v2423
        %v2426 = vmul.f32 %v2416, %v2424
        %v2427 = vpack.c.bf16 %v2425, %v2425
        %v2428 = vpack.c.bf16 %v2426, %v2426
        %v2430 = vsel %vm2167, %v2427, 0
        %v2433 = vsel %vm2195, %v2365, 0
        %2435 = vmatpush.bf16.msra.mxu0 0
        %2436 = vmatpush.bf16.msra.mxu0 0
        %2437 = vmatpush.bf16.msra.mxu0 0
        %2438 = vmatpush.bf16.msra.mxu0 0
        %2439 = vmatpush.bf16.msra.mxu0 0
        %2440 = vmatpush.bf16.msra.mxu0 0
        %2441 = vmatpush.bf16.msra.mxu0 0
        %2442 = vmatpush.bf16.msra.mxu0 %v2433
        %2443 = vmatmul.bf16.gmra.mxu0 %v2430
        %v2444 = vpop.f32.mrf.mxu0
        %v2445 = vadd.f32 0.0, %v2444
        %v2446 = vpop.f32.mrf.mxu0
        %2447 = vdwg.mxu0
        %v2449 = vsel %vm2167, %v2428, 0
        %v2452 = vsel %vm2195, %v2366, 0
        %2454 = vmatpush.bf16.msra.mxu0 0
        %2455 = vmatpush.bf16.msra.mxu0 0
        %2456 = vmatpush.bf16.msra.mxu0 0
        %2457 = vmatpush.bf16.msra.mxu0 0
        %2458 = vmatpush.bf16.msra.mxu0 0
        %2459 = vmatpush.bf16.msra.mxu0 0
        %2460 = vmatpush.bf16.msra.mxu0 0
        %2461 = vmatpush.bf16.msra.mxu0 %v2452
        %2462 = vmatmul.bf16.gmra.mxu0 %v2449
        %v2463 = vpop.f32.mrf.mxu0
        %v2464 = vadd.f32 0.0, %v2463
        %v2465 = vpop.f32.mrf.mxu0
        %2466 = vdwg.mxu0
        %v2468 = vunpack.c.l.b16 %v2361
        %v2469 = vpack.c.b16 %v2468, %v2468
        %2470 = vrot.lane.b32.xlu0 %v2469, 64
        %v2471 = vpop.permute.xlu0 %2470
        %v2473 = vunpack.c.l.b16 %v2363
        %v2474 = vpack.c.b16 %v2473, %v2473
        %2475 = vrot.lane.b32.xlu0 %v2474, 64
        %v2476 = vpop.permute.xlu0 %2475
        %v2478 = vsel %vm2128, %v2471, 0
        %v2481 = vsel %vm2128, %v2476, 0
        %2483 = vmatpush.bf16.xpose.msra.mxu0 0
        %2484 = vmatpush.bf16.xpose.msra.mxu0 0
        %2485 = vmatpush.bf16.xpose.msra.mxu0 0
        %2486 = vmatpush.bf16.xpose.msra.mxu0 0
        %2487 = vmatpush.bf16.xpose.msra.mxu0 0
        %2488 = vmatpush.bf16.xpose.msra.mxu0 0
        %2489 = vmatpush.bf16.xpose.msra.mxu0 0
        %2490 = vmatpush.bf16.xpose.msra.mxu0 %v2481
        %2491 = vmatmul.bf16.gmra.mxu0 %v2478
        %v2492 = vpop.f32.mrf.mxu0
        %v2493 = vadd.f32 %v2124, %v2492
        %v2494 = vpop.f32.mrf.mxu0
        %2495 = vdwg.mxu0
        %v2497 = vunpack.c.l.b16 %v2362
        %v2498 = vpack.c.b16 %v2497, %v2497
        %2499 = vrot.lane.b32.xlu0 %v2498, 64
        %v2500 = vpop.permute.xlu0 %2499
        %v2502 = vunpack.c.l.b16 %v2364
        %v2503 = vpack.c.b16 %v2502, %v2502
        %2504 = vrot.lane.b32.xlu0 %v2503, 64
        %v2505 = vpop.permute.xlu0 %2504
        %v2507 = vsel %vm2128, %v2500, 0
        %v2510 = vsel %vm2128, %v2505, 0
        %2512 = vmatpush.bf16.xpose.msra.mxu0 0
        %2513 = vmatpush.bf16.xpose.msra.mxu0 0
        %2514 = vmatpush.bf16.xpose.msra.mxu0 0
        %2515 = vmatpush.bf16.xpose.msra.mxu0 0
        %2516 = vmatpush.bf16.xpose.msra.mxu0 0
        %2517 = vmatpush.bf16.xpose.msra.mxu0 0
        %2518 = vmatpush.bf16.xpose.msra.mxu0 0
        %2519 = vmatpush.bf16.xpose.msra.mxu0 %v2510
        %2520 = vmatmul.bf16.gmra.mxu0 %v2507
        %v2521 = vpop.f32.mrf.mxu0
        %v2522 = vadd.f32 %v2125, %v2521
        %v2523 = vpop.f32.mrf.mxu0
        %2524 = vdwg.mxu0
        %v2525 = vsel %vm2167, %v2493, -inf
        %2526 = vmax.xlane.f32.xlu0 %v2525
        %v2527 = vpop.xlane.xlu0 %2526
        %v2528 = vsel %vm2167, %v2522, -inf
        %2529 = vmax.xlane.f32.xlu0 %v2528
        %v2530 = vpop.xlane.xlu0 %2529
        %v2531 = vsub.f32 %v2493, %v2527
        %v2532 = vsub.f32 %v2522, %v2530
        %v2533 = vmul.f32 %v2531, 1.442695
        %v2534 = vpow.pop %v2533
        %v2535 = vmul.f32 %v2532, 1.442695
        %v2536 = vpow.pop %v2535
        %v2537 = vsel %vm2167, %v2534, 0.0
        %2538 = vadd.xlane.f32.xlu0 %v2537
        %v2539 = vpop.xlane.xlu0 %2538
        %v2540 = vsel %vm2167, %v2536, 0.0
        %2541 = vadd.xlane.f32.xlu0 %v2540
        %v2542 = vpop.xlane.xlu0 %2541
        %v2543 = vrcp.pop %v2539
        %v2544 = vrcp.pop %v2542
        %v2545 = vmul.f32 %v2534, %v2543
        %v2546 = vmul.f32 %v2536, %v2544
        %v2547 = vpack.c.bf16 %v2545, %v2545
        %v2548 = vpack.c.bf16 %v2546, %v2546
        %v2550 = vunpack.c.l.b16 %v2365
        %v2551 = vpack.c.b16 %v2550, %v2550
        %2552 = vrot.lane.b32.xlu0 %v2551, 64
        %v2553 = vpop.permute.xlu0 %2552
        %v2555 = vsel %vm2167, %v2547, 0
        %v2558 = vsel %vm2195, %v2553, 0
        %2560 = vmatpush.bf16.msra.mxu0 0
        %2561 = vmatpush.bf16.msra.mxu0 0
        %2562 = vmatpush.bf16.msra.mxu0 0
        %2563 = vmatpush.bf16.msra.mxu0 0
        %2564 = vmatpush.bf16.msra.mxu0 0
        %2565 = vmatpush.bf16.msra.mxu0 0
        %2566 = vmatpush.bf16.msra.mxu0 0
        %2567 = vmatpush.bf16.msra.mxu0 %v2558
        %2568 = vmatmul.bf16.gmra.mxu0 %v2555
        %v2569 = vpop.f32.mrf.mxu0
        %v2570 = vadd.f32 0.0, %v2569
        %v2571 = vpop.f32.mrf.mxu0
        %2572 = vdwg.mxu0
        %v2574 = vunpack.c.l.b16 %v2366
        %v2575 = vpack.c.b16 %v2574, %v2574
        %2576 = vrot.lane.b32.xlu0 %v2575, 64
        %v2577 = vpop.permute.xlu0 %2576
        %v2579 = vsel %vm2167, %v2548, 0
        %v2582 = vsel %vm2195, %v2577, 0
        %2584 = vmatpush.bf16.msra.mxu0 0
        %2585 = vmatpush.bf16.msra.mxu0 0
        %2586 = vmatpush.bf16.msra.mxu0 0
        %2587 = vmatpush.bf16.msra.mxu0 0
        %2588 = vmatpush.bf16.msra.mxu0 0
        %2589 = vmatpush.bf16.msra.mxu0 0
        %2590 = vmatpush.bf16.msra.mxu0 0
        %2591 = vmatpush.bf16.msra.mxu0 %v2582
        %2592 = vmatmul.bf16.gmra.mxu0 %v2579
        %v2593 = vpop.f32.mrf.mxu0
        %v2594 = vadd.f32 0.0, %v2593
        %v2595 = vpop.f32.mrf.mxu0
        %2596 = vdwg.mxu0
        %2599 = vrot.lane.b32.xlu0 %v2334, 64
        %v2600 = vpop.permute.xlu0 %2599
        %2601 = vrot.lane.b32.xlu0 %v2358, 64
        %v2602 = vpop.permute.xlu0 %2601
        %2607 = vrot.lane.b32.xlu0 %v2570, 64
        %v2608 = vpop.permute.xlu0 %2607
        %2609 = vrot.lane.b32.xlu0 %v2594, 64
        %v2610 = vpop.permute.xlu0 %2609
        %v2613 = vsel %vm2128, %v2209, %v2600
        %v2614 = vsel %vm2128, %v2228, %v2602
        %v2615 = vsel %vm2128, %v2445, %v2608
        %v2616 = vsel %vm2128, %v2464, %v2610
        %v2617 = vpack.c.bf16 %v2614, %v2613
        %v2618 = vpack.c.bf16 %v2616, %v2615
        %v2619 = vld [vmem:[%s1091] sm:$0xff]
        %v2620 = vld [vmem:[%s1091 + $0x8] sm:$0xff]
        %v2621 = vld [vmem:[%s1091 + $0x10] sm:$0xff]
        %v2622 = vld [vmem:[%s1091 + $0x18] sm:$0xff]
        %v2623 = vld [vmem:[%s1091 + $0x20] sm:$0xff]
        %v2624 = vld [vmem:[%s1091 + $0x28] sm:$0xff]
        %v2625 = vld [vmem:[%s1091 + $0x30] sm:$0xff]
        %v2626 = vld [vmem:[%s1091 + $0x38] sm:$0xff]
        %v2627 = vld [vmem:[%s1091 + $0x40] sm:$0xff]
        %v2628 = vld [vmem:[%s1091 + $0x48] sm:$0xff]
        %v2629 = vld [vmem:[%s1091 + $0x50] sm:$0xff]
        %v2630 = vld [vmem:[%s1091 + $0x58] sm:$0xff]
        %v2631 = vld [vmem:[%s1091 + $0x60] sm:$0xff]
        %v2632 = vld [vmem:[%s1091 + $0x68] sm:$0xff]
        %v2633 = vld [vmem:[%s1091 + $0x70] sm:$0xff]
        %v2634 = vld [vmem:[%s1091 + $0x78] sm:$0xff]
        %v2635 = vld [vmem:[%s1091 + $0x80] sm:$0xff]
        %v2636 = vld [vmem:[%s1091 + $0x88] sm:$0xff]
        %v2637 = vld [vmem:[%s1091 + $0x90] sm:$0xff]
        %v2638 = vld [vmem:[%s1091 + $0x98] sm:$0xff]
        %v2639 = vld [vmem:[%s1091 + $0xa0] sm:$0xff]
        %v2640 = vld [vmem:[%s1091 + $0xa8] sm:$0xff]
        %v2641 = vld [vmem:[%s1091 + $0xb0] sm:$0xff]
        %v2642 = vld [vmem:[%s1091 + $0xb8] sm:$0xff]
        %v2643 = vld [vmem:[%s1091 + $0xc0] sm:$0xff]
        %v2644 = vld [vmem:[%s1091 + $0xc8] sm:$0xff]
        %v2645 = vld [vmem:[%s1091 + $0xd0] sm:$0xff]
        %v2646 = vld [vmem:[%s1091 + $0xd8] sm:$0xff]
        %v2647 = vld [vmem:[%s1091 + $0xe0] sm:$0xff]
        %v2648 = vld [vmem:[%s1091 + $0xe8] sm:$0xff]
        %v2649 = vld [vmem:[%s1091 + $0xf0] sm:$0xff]
        %v2650 = vld [vmem:[%s1091 + $0xf8] sm:$0xff]
        %v2651 = vld [vmem:[%s1101] sm:$0x3]
        %v2653 = vperm.slane %v2651, 0
        %v2654 = vperm.slane %v2651, 1
        %v2689 = vunpack.c.l.b16 %v2619
        %v2690 = vunpack.c.h.b16 %v2619
        %v2691 = vunpack.c.l.b16 %v2620
        %v2692 = vunpack.c.h.b16 %v2620
        %v2693 = vunpack.c.l.b16 %v2621
        %v2694 = vunpack.c.h.b16 %v2621
        %v2695 = vunpack.c.l.b16 %v2622
        %v2696 = vunpack.c.h.b16 %v2622
        %v2697 = vunpack.c.l.b16 %v2623
        %v2698 = vunpack.c.h.b16 %v2623
        %v2699 = vunpack.c.l.b16 %v2624
        %v2700 = vunpack.c.h.b16 %v2624
        %v2701 = vunpack.c.l.b16 %v2625
        %v2702 = vunpack.c.h.b16 %v2625
        %v2703 = vunpack.c.l.b16 %v2626
        %v2704 = vunpack.c.h.b16 %v2626
        %v2705 = vunpack.c.l.b16 %v2627
        %v2706 = vunpack.c.h.b16 %v2627
        %v2707 = vunpack.c.l.b16 %v2628
        %v2708 = vunpack.c.h.b16 %v2628
        %v2709 = vunpack.c.l.b16 %v2629
        %v2710 = vunpack.c.h.b16 %v2629
        %v2711 = vunpack.c.l.b16 %v2630
        %v2712 = vunpack.c.h.b16 %v2630
        %v2713 = vunpack.c.l.b16 %v2631
        %v2714 = vunpack.c.h.b16 %v2631
        %v2715 = vunpack.c.l.b16 %v2632
        %v2716 = vunpack.c.h.b16 %v2632
        %v2717 = vunpack.c.l.b16 %v2633
        %v2718 = vunpack.c.h.b16 %v2633
        %v2719 = vunpack.c.l.b16 %v2634
        %v2720 = vunpack.c.h.b16 %v2634
        %v2721 = vunpack.c.l.b16 %v2635
        %v2722 = vunpack.c.h.b16 %v2635
        %v2723 = vunpack.c.l.b16 %v2636
        %v2724 = vunpack.c.h.b16 %v2636
        %v2725 = vunpack.c.l.b16 %v2637
        %v2726 = vunpack.c.h.b16 %v2637
        %v2727 = vunpack.c.l.b16 %v2638
        %v2728 = vunpack.c.h.b16 %v2638
        %v2729 = vunpack.c.l.b16 %v2639
        %v2730 = vunpack.c.h.b16 %v2639
        %v2731 = vunpack.c.l.b16 %v2640
        %v2732 = vunpack.c.h.b16 %v2640
        %v2733 = vunpack.c.l.b16 %v2641
        %v2734 = vunpack.c.h.b16 %v2641
        %v2735 = vunpack.c.l.b16 %v2642
        %v2736 = vunpack.c.h.b16 %v2642
        %v2737 = vunpack.c.l.b16 %v2643
        %v2738 = vunpack.c.h.b16 %v2643
        %v2739 = vunpack.c.l.b16 %v2644
        %v2740 = vunpack.c.h.b16 %v2644
        %v2741 = vunpack.c.l.b16 %v2645
        %v2742 = vunpack.c.h.b16 %v2645
        %v2743 = vunpack.c.l.b16 %v2646
        %v2744 = vunpack.c.h.b16 %v2646
        %v2745 = vunpack.c.l.b16 %v2647
        %v2746 = vunpack.c.h.b16 %v2647
        %v2747 = vunpack.c.l.b16 %v2648
        %v2748 = vunpack.c.h.b16 %v2648
        %v2749 = vunpack.c.l.b16 %v2649
        %v2750 = vunpack.c.h.b16 %v2649
        %v2751 = vunpack.c.l.b16 %v2650
        %v2752 = vunpack.c.h.b16 %v2650
        %v2753 = vpack.c.b16 %v2691, %v2689
        %v2754 = vpack.c.b16 %v2692, %v2690
        %v2755 = vpack.c.b16 %v2695, %v2693
        %v2756 = vpack.c.b16 %v2696, %v2694
        %v2757 = vpack.c.b16 %v2699, %v2697
        %v2758 = vpack.c.b16 %v2700, %v2698
        %v2759 = vpack.c.b16 %v2703, %v2701
        %v2760 = vpack.c.b16 %v2704, %v2702
        %v2761 = vpack.c.b16 %v2707, %v2705
        %v2762 = vpack.c.b16 %v2708, %v2706
        %v2763 = vpack.c.b16 %v2711, %v2709
        %v2764 = vpack.c.b16 %v2712, %v2710
        %v2765 = vpack.c.b16 %v2715, %v2713
        %v2766 = vpack.c.b16 %v2716, %v2714
        %v2767 = vpack.c.b16 %v2719, %v2717
        %v2768 = vpack.c.b16 %v2720, %v2718
        %v2769 = vpack.c.b16 %v2723, %v2721
        %v2770 = vpack.c.b16 %v2724, %v2722
        %v2771 = vpack.c.b16 %v2727, %v2725
        %v2772 = vpack.c.b16 %v2728, %v2726
        %v2773 = vpack.c.b16 %v2731, %v2729
        %v2774 = vpack.c.b16 %v2732, %v2730
        %v2775 = vpack.c.b16 %v2735, %v2733
        %v2776 = vpack.c.b16 %v2736, %v2734
        %v2777 = vpack.c.b16 %v2739, %v2737
        %v2778 = vpack.c.b16 %v2740, %v2738
        %v2779 = vpack.c.b16 %v2743, %v2741
        %v2780 = vpack.c.b16 %v2744, %v2742
        %v2781 = vpack.c.b16 %v2747, %v2745
        %v2782 = vpack.c.b16 %v2748, %v2746
        %v2783 = vpack.c.b16 %v2751, %v2749
        %v2784 = vpack.c.b16 %v2752, %v2750
        %2817 = vmatpush.bf16.msra.mxu0 %v2767
        %2818 = vmatpush.bf16.msra.mxu0 %v2765
        %2819 = vmatpush.bf16.msra.mxu0 %v2763
        %2820 = vmatpush.bf16.msra.mxu0 %v2761
        %2821 = vmatpush.bf16.msra.mxu0 %v2759
        %2822 = vmatpush.bf16.msra.mxu0 %v2757
        %2823 = vmatpush.bf16.msra.mxu0 %v2755
        %2824 = vmatpush.bf16.msra.mxu0 %v2753
        %2825 = vmatmul.bf16.gmra.mxu0 %v2617
        %v2826 = vpop.f32.mrf.mxu0
        %v2827 = vadd.f32 %v2653, %v2826
        %v2828 = vpop.f32.mrf.mxu0
        %v2829 = vadd.f32 %v2653, %v2828
        %2830 = vdwg.mxu0
        %2831 = vmatpush.bf16.msra.mxu0 %v2783
        %2832 = vmatpush.bf16.msra.mxu0 %v2781
        %2833 = vmatpush.bf16.msra.mxu0 %v2779
        %2834 = vmatpush.bf16.msra.mxu0 %v2777
        %2835 = vmatpush.bf16.msra.mxu0 %v2775
        %2836 = vmatpush.bf16.msra.mxu0 %v2773
        %2837 = vmatpush.bf16.msra.mxu0 %v2771
        %2838 = vmatpush.bf16.msra.mxu0 %v2769
        %2839 = vmatmul.bf16.gmra.mxu0 %v2618
        %v2840 = vpop.f32.mrf.mxu0
        %v2841 = vadd.f32 %v2827, %v2840
        %v2842 = vpop.f32.mrf.mxu0
        %v2843 = vadd.f32 %v2829, %v2842
        %2844 = vdwg.mxu0
        %2845 = vmatpush.bf16.msra.mxu0 %v2768
        %2846 = vmatpush.bf16.msra.mxu0 %v2766
        %2847 = vmatpush.bf16.msra.mxu0 %v2764
        %2848 = vmatpush.bf16.msra.mxu0 %v2762
        %2849 = vmatpush.bf16.msra.mxu0 %v2760
        %2850 = vmatpush.bf16.msra.mxu0 %v2758
        %2851 = vmatpush.bf16.msra.mxu0 %v2756
        %2852 = vmatpush.bf16.msra.mxu0 %v2754
        %2853 = vmatmul.bf16.gmra.mxu0 %v2617
        %v2854 = vpop.f32.mrf.mxu0
        %v2855 = vadd.f32 %v2654, %v2854
        %v2856 = vpop.f32.mrf.mxu0
        %v2857 = vadd.f32 %v2654, %v2856
        %2858 = vdwg.mxu0
        %2859 = vmatpush.bf16.msra.mxu0 %v2784
        %2860 = vmatpush.bf16.msra.mxu0 %v2782
        %2861 = vmatpush.bf16.msra.mxu0 %v2780
        %2862 = vmatpush.bf16.msra.mxu0 %v2778
        %2863 = vmatpush.bf16.msra.mxu0 %v2776
        %2864 = vmatpush.bf16.msra.mxu0 %v2774
        %2865 = vmatpush.bf16.msra.mxu0 %v2772
        %2866 = vmatpush.bf16.msra.mxu0 %v2770
        %2867 = vmatmul.bf16.gmra.mxu0 %v2618
        %v2868 = vpop.f32.mrf.mxu0
        %v2869 = vadd.f32 %v2855, %v2868
        %v2870 = vpop.f32.mrf.mxu0
        %v2871 = vadd.f32 %v2857, %v2870
        %2872 = vdwg.mxu0
        %v2873 = vadd.f32 %v1346, %v2841
        %v2874 = vadd.f32 %v1347, %v2869
        %v2875 = vadd.f32 %v1348, %v2843
        %v2876 = vadd.f32 %v1349, %v2871
        %v2877 = vld [vmem:[%s1111] sm:$0x3]
        %v2878 = vld [vmem:[%s1121] sm:$0x3]
        %v2879 = vadd.f32 %v2873, %v2874
        %2880 = vadd.xlane.f32.xlu0 %v2879
        %v2881 = vpop.xlane.xlu0 %2880
        %v2882 = vadd.f32 %v2875, %v2876
        %2883 = vadd.xlane.f32.xlu0 %v2882
        %v2884 = vpop.xlane.xlu0 %2883
        %v2885 = vrcp.pop 256.0
        %v2886 = vmul.f32 256.0, %v2885
        %v2887 = vsub.f32 1.0, %v2886
        %v2888 = vmul.f32 %v2885, %v2887
        %v2889 = vadd.f32 %v2885, %v2888
        %vm2890 = vweird.f32 %v2885
        %v2891 = vsel %vm2890, %v2885, %v2889
        %v2892 = vmul.f32 %v2881, %v2891
        %v2893 = vmul.f32 %v2884, %v2891
        %v2894 = vsub.f32 %v2873, %v2892
        %v2895 = vsub.f32 %v2874, %v2892
        %v2896 = vsub.f32 %v2875, %v2893
        %v2897 = vsub.f32 %v2876, %v2893
        %v2898 = vmul.f32 %v2894, %v2894
        %v2899 = vmul.f32 %v2895, %v2895
        %v2900 = vmul.f32 %v2896, %v2896
        %v2901 = vmul.f32 %v2897, %v2897
        %v2902 = vadd.f32 %v2898, %v2899
        %2903 = vadd.xlane.f32.xlu0 %v2902
        %v2904 = vpop.xlane.xlu0 %2903
        %v2905 = vadd.f32 %v2900, %v2901
        %2906 = vadd.xlane.f32.xlu0 %v2905
        %v2907 = vpop.xlane.xlu0 %2906
        %v2908 = vmul.f32 %v2904, %v2891
        %v2909 = vmul.f32 %v2907, %v2891
        %v2910 = vadd.f32 %v2908, 1e-12
        %v2911 = vadd.f32 %v2909, 1e-12
        %v2912 = vrsqrt.pop %v2910
        %v2913 = vmul.f32 %v2912, %v2910
        %v2914 = vmul.f32 %v2913, %v2912
        %v2915 = vmul.f32 0.5, %v2914
        %v2916 = vsub.f32 1.5, %v2915
        %v2917 = vmul.f32 %v2912, %v2916
        %vm2918 = vweird.f32 %v2910
        %vm2919 = vweird.f32 %v2912
        %vm2920 = vmor %vm2918, %vm2919
        %v2921 = vsel %vm2920, %v2912, %v2917
        %v2922 = vrsqrt.pop %v2911
        %v2923 = vmul.f32 %v2922, %v2911
        %v2924 = vmul.f32 %v2923, %v2922
        %v2925 = vmul.f32 0.5, %v2924
        %v2926 = vsub.f32 1.5, %v2925
        %v2927 = vmul.f32 %v2922, %v2926
        %vm2928 = vweird.f32 %v2911
        %vm2929 = vweird.f32 %v2922
        %vm2930 = vmor %vm2928, %vm2929
        %v2931 = vsel %vm2930, %v2922, %v2927
        %v2932 = vmul.f32 %v2894, %v2921
        %v2933 = vmul.f32 %v2895, %v2921
        %v2934 = vmul.f32 %v2896, %v2931
        %v2935 = vmul.f32 %v2897, %v2931
        %v2937 = vperm.slane %v2877, 0
        %v2938 = vperm.slane %v2877, 1
        %v2941 = vmul.f32 %v2932, %v2937
        %v2942 = vmul.f32 %v2933, %v2938
        %v2943 = vmul.f32 %v2934, %v2937
        %v2944 = vmul.f32 %v2935, %v2938
        %v2946 = vperm.slane %v2878, 0
        %v2947 = vperm.slane %v2878, 1
        %v2950 = vadd.f32 %v2941, %v2946
        %v2951 = vadd.f32 %v2942, %v2947
        %v2952 = vadd.f32 %v2943, %v2946
        %v2953 = vadd.f32 %v2944, %v2947
        %v2954 = vpack.c.bf16 %v2952, %v2950
        %v2955 = vpack.c.bf16 %v2953, %v2951
        %v2956 = vld [vmem:[%s1131] sm:$0xff]
        %v2957 = vld [vmem:[%s1131 + $0x8] sm:$0xff]
        %v2958 = vld [vmem:[%s1131 + $0x10] sm:$0xff]
        %v2959 = vld [vmem:[%s1131 + $0x18] sm:$0xff]
        %v2960 = vld [vmem:[%s1131 + $0x20] sm:$0xff]
        %v2961 = vld [vmem:[%s1131 + $0x28] sm:$0xff]
        %v2962 = vld [vmem:[%s1131 + $0x30] sm:$0xff]
        %v2963 = vld [vmem:[%s1131 + $0x38] sm:$0xff]
        %v2964 = vld [vmem:[%s1131 + $0x40] sm:$0xff]
        %v2965 = vld [vmem:[%s1131 + $0x48] sm:$0xff]
        %v2966 = vld [vmem:[%s1131 + $0x50] sm:$0xff]
        %v2967 = vld [vmem:[%s1131 + $0x58] sm:$0xff]
        %v2968 = vld [vmem:[%s1131 + $0x60] sm:$0xff]
        %v2969 = vld [vmem:[%s1131 + $0x68] sm:$0xff]
        %v2970 = vld [vmem:[%s1131 + $0x70] sm:$0xff]
        %v2971 = vld [vmem:[%s1131 + $0x78] sm:$0xff]
        %v2972 = vld [vmem:[%s1131 + $0x80] sm:$0xff]
        %v2973 = vld [vmem:[%s1131 + $0x88] sm:$0xff]
        %v2974 = vld [vmem:[%s1131 + $0x90] sm:$0xff]
        %v2975 = vld [vmem:[%s1131 + $0x98] sm:$0xff]
        %v2976 = vld [vmem:[%s1131 + $0xa0] sm:$0xff]
        %v2977 = vld [vmem:[%s1131 + $0xa8] sm:$0xff]
        %v2978 = vld [vmem:[%s1131 + $0xb0] sm:$0xff]
        %v2979 = vld [vmem:[%s1131 + $0xb8] sm:$0xff]
        %v2980 = vld [vmem:[%s1131 + $0xc0] sm:$0xff]
        %v2981 = vld [vmem:[%s1131 + $0xc8] sm:$0xff]
        %v2982 = vld [vmem:[%s1131 + $0xd0] sm:$0xff]
        %v2983 = vld [vmem:[%s1131 + $0xd8] sm:$0xff]
        %v2984 = vld [vmem:[%s1131 + $0xe0] sm:$0xff]
        %v2985 = vld [vmem:[%s1131 + $0xe8] sm:$0xff]
        %v2986 = vld [vmem:[%s1131 + $0xf0] sm:$0xff]
        %v2987 = vld [vmem:[%s1131 + $0xf8] sm:$0xff]
        %v2988 = vld [vmem:[%s1131 + $0x100] sm:$0xff]
        %v2989 = vld [vmem:[%s1131 + $0x108] sm:$0xff]
        %v2990 = vld [vmem:[%s1131 + $0x110] sm:$0xff]
        %v2991 = vld [vmem:[%s1131 + $0x118] sm:$0xff]
        %v2992 = vld [vmem:[%s1131 + $0x120] sm:$0xff]
        %v2993 = vld [vmem:[%s1131 + $0x128] sm:$0xff]
        %v2994 = vld [vmem:[%s1131 + $0x130] sm:$0xff]
        %v2995 = vld [vmem:[%s1131 + $0x138] sm:$0xff]
        %v2996 = vld [vmem:[%s1131 + $0x140] sm:$0xff]
        %v2997 = vld [vmem:[%s1131 + $0x148] sm:$0xff]
        %v2998 = vld [vmem:[%s1131 + $0x150] sm:$0xff]
        %v2999 = vld [vmem:[%s1131 + $0x158] sm:$0xff]
        %v3000 = vld [vmem:[%s1131 + $0x160] sm:$0xff]
        %v3001 = vld [vmem:[%s1131 + $0x168] sm:$0xff]
        %v3002 = vld [vmem:[%s1131 + $0x170] sm:$0xff]
        %v3003 = vld [vmem:[%s1131 + $0x178] sm:$0xff]
        %v3004 = vld [vmem:[%s1131 + $0x180] sm:$0xff]
        %v3005 = vld [vmem:[%s1131 + $0x188] sm:$0xff]
        %v3006 = vld [vmem:[%s1131 + $0x190] sm:$0xff]
        %v3007 = vld [vmem:[%s1131 + $0x198] sm:$0xff]
        %v3008 = vld [vmem:[%s1131 + $0x1a0] sm:$0xff]
        %v3009 = vld [vmem:[%s1131 + $0x1a8] sm:$0xff]
        %v3010 = vld [vmem:[%s1131 + $0x1b0] sm:$0xff]
        %v3011 = vld [vmem:[%s1131 + $0x1b8] sm:$0xff]
        %v3012 = vld [vmem:[%s1131 + $0x1c0] sm:$0xff]
        %v3013 = vld [vmem:[%s1131 + $0x1c8] sm:$0xff]
        %v3014 = vld [vmem:[%s1131 + $0x1d0] sm:$0xff]
        %v3015 = vld [vmem:[%s1131 + $0x1d8] sm:$0xff]
        %v3016 = vld [vmem:[%s1131 + $0x1e0] sm:$0xff]
        %v3017 = vld [vmem:[%s1131 + $0x1e8] sm:$0xff]
        %v3018 = vld [vmem:[%s1131 + $0x1f0] sm:$0xff]
        %v3019 = vld [vmem:[%s1131 + $0x1f8] sm:$0xff]
        %v3020 = vld [vmem:[%s1131 + $0x200] sm:$0xff]
        %v3021 = vld [vmem:[%s1131 + $0x208] sm:$0xff]
        %v3022 = vld [vmem:[%s1131 + $0x210] sm:$0xff]
        %v3023 = vld [vmem:[%s1131 + $0x218] sm:$0xff]
        %v3024 = vld [vmem:[%s1131 + $0x220] sm:$0xff]
        %v3025 = vld [vmem:[%s1131 + $0x228] sm:$0xff]
        %v3026 = vld [vmem:[%s1131 + $0x230] sm:$0xff]
        %v3027 = vld [vmem:[%s1131 + $0x238] sm:$0xff]
        %v3028 = vld [vmem:[%s1131 + $0x240] sm:$0xff]
        %v3029 = vld [vmem:[%s1131 + $0x248] sm:$0xff]
        %v3030 = vld [vmem:[%s1131 + $0x250] sm:$0xff]
        %v3031 = vld [vmem:[%s1131 + $0x258] sm:$0xff]
        %v3032 = vld [vmem:[%s1131 + $0x260] sm:$0xff]
        %v3033 = vld [vmem:[%s1131 + $0x268] sm:$0xff]
        %v3034 = vld [vmem:[%s1131 + $0x270] sm:$0xff]
        %v3035 = vld [vmem:[%s1131 + $0x278] sm:$0xff]
        %v3036 = vld [vmem:[%s1131 + $0x280] sm:$0xff]
        %v3037 = vld [vmem:[%s1131 + $0x288] sm:$0xff]
        %v3038 = vld [vmem:[%s1131 + $0x290] sm:$0xff]
        %v3039 = vld [vmem:[%s1131 + $0x298] sm:$0xff]
        %v3040 = vld [vmem:[%s1131 + $0x2a0] sm:$0xff]
        %v3041 = vld [vmem:[%s1131 + $0x2a8] sm:$0xff]
        %v3042 = vld [vmem:[%s1131 + $0x2b0] sm:$0xff]
        %v3043 = vld [vmem:[%s1131 + $0x2b8] sm:$0xff]
        %v3044 = vld [vmem:[%s1131 + $0x2c0] sm:$0xff]
        %v3045 = vld [vmem:[%s1131 + $0x2c8] sm:$0xff]
        %v3046 = vld [vmem:[%s1131 + $0x2d0] sm:$0xff]
        %v3047 = vld [vmem:[%s1131 + $0x2d8] sm:$0xff]
        %v3048 = vld [vmem:[%s1131 + $0x2e0] sm:$0xff]
        %v3049 = vld [vmem:[%s1131 + $0x2e8] sm:$0xff]
        %v3050 = vld [vmem:[%s1131 + $0x2f0] sm:$0xff]
        %v3051 = vld [vmem:[%s1131 + $0x2f8] sm:$0xff]
        %v3052 = vld [vmem:[%s1131 + $0x300] sm:$0xff]
        %v3053 = vld [vmem:[%s1131 + $0x308] sm:$0xff]
        %v3054 = vld [vmem:[%s1131 + $0x310] sm:$0xff]
        %v3055 = vld [vmem:[%s1131 + $0x318] sm:$0xff]
        %v3056 = vld [vmem:[%s1131 + $0x320] sm:$0xff]
        %v3057 = vld [vmem:[%s1131 + $0x328] sm:$0xff]
        %v3058 = vld [vmem:[%s1131 + $0x330] sm:$0xff]
        %v3059 = vld [vmem:[%s1131 + $0x338] sm:$0xff]
        %v3060 = vld [vmem:[%s1131 + $0x340] sm:$0xff]
        %v3061 = vld [vmem:[%s1131 + $0x348] sm:$0xff]
        %v3062 = vld [vmem:[%s1131 + $0x350] sm:$0xff]
        %v3063 = vld [vmem:[%s1131 + $0x358] sm:$0xff]
        %v3064 = vld [vmem:[%s1131 + $0x360] sm:$0xff]
        %v3065 = vld [vmem:[%s1131 + $0x368] sm:$0xff]
        %v3066 = vld [vmem:[%s1131 + $0x370] sm:$0xff]
        %v3067 = vld [vmem:[%s1131 + $0x378] sm:$0xff]
        %v3068 = vld [vmem:[%s1131 + $0x380] sm:$0xff]
        %v3069 = vld [vmem:[%s1131 + $0x388] sm:$0xff]
        %v3070 = vld [vmem:[%s1131 + $0x390] sm:$0xff]
        %v3071 = vld [vmem:[%s1131 + $0x398] sm:$0xff]
        %v3072 = vld [vmem:[%s1131 + $0x3a0] sm:$0xff]
        %v3073 = vld [vmem:[%s1131 + $0x3a8] sm:$0xff]
        %v3074 = vld [vmem:[%s1131 + $0x3b0] sm:$0xff]
        %v3075 = vld [vmem:[%s1131 + $0x3b8] sm:$0xff]
        %v3076 = vld [vmem:[%s1131 + $0x3c0] sm:$0xff]
        %v3077 = vld [vmem:[%s1131 + $0x3c8] sm:$0xff]
        %v3078 = vld [vmem:[%s1131 + $0x3d0] sm:$0xff]
        %v3079 = vld [vmem:[%s1131 + $0x3d8] sm:$0xff]
        %v3080 = vld [vmem:[%s1131 + $0x3e0] sm:$0xff]
        %v3081 = vld [vmem:[%s1131 + $0x3e8] sm:$0xff]
        %v3082 = vld [vmem:[%s1131 + $0x3f0] sm:$0xff]
        %v3083 = vld [vmem:[%s1131 + $0x3f8] sm:$0xff]
        %v3084 = vld [vmem:[%s1141] sm:$0xff]
        %v3086 = vperm.slane %v3084, 0
        %v3087 = vperm.slane %v3084, 1
        %v3088 = vperm.slane %v3084, 2
        %v3089 = vperm.slane %v3084, 3
        %v3090 = vperm.slane %v3084, 4
        %v3091 = vperm.slane %v3084, 5
        %v3092 = vperm.slane %v3084, 6
        %v3093 = vperm.slane %v3084, 7
        %v3230 = vunpack.c.l.b16 %v2956
        %v3231 = vunpack.c.h.b16 %v2956
        %v3232 = vunpack.c.l.b16 %v2957
        %v3233 = vunpack.c.h.b16 %v2957
        %v3234 = vunpack.c.l.b16 %v2958
        %v3235 = vunpack.c.h.b16 %v2958
        %v3236 = vunpack.c.l.b16 %v2959
        %v3237 = vunpack.c.h.b16 %v2959
        %v3238 = vunpack.c.l.b16 %v2960
        %v3239 = vunpack.c.h.b16 %v2960
        %v3240 = vunpack.c.l.b16 %v2961
        %v3241 = vunpack.c.h.b16 %v2961
        %v3242 = vunpack.c.l.b16 %v2962
        %v3243 = vunpack.c.h.b16 %v2962
        %v3244 = vunpack.c.l.b16 %v2963
        %v3245 = vunpack.c.h.b16 %v2963
        %v3246 = vunpack.c.l.b16 %v2964
        %v3247 = vunpack.c.h.b16 %v2964
        %v3248 = vunpack.c.l.b16 %v2965
        %v3249 = vunpack.c.h.b16 %v2965
        %v3250 = vunpack.c.l.b16 %v2966
        %v3251 = vunpack.c.h.b16 %v2966
        %v3252 = vunpack.c.l.b16 %v2967
        %v3253 = vunpack.c.h.b16 %v2967
        %v3254 = vunpack.c.l.b16 %v2968
        %v3255 = vunpack.c.h.b16 %v2968
        %v3256 = vunpack.c.l.b16 %v2969
        %v3257 = vunpack.c.h.b16 %v2969
        %v3258 = vunpack.c.l.b16 %v2970
        %v3259 = vunpack.c.h.b16 %v2970
        %v3260 = vunpack.c.l.b16 %v2971
        %v3261 = vunpack.c.h.b16 %v2971
        %v3262 = vunpack.c.l.b16 %v2972
        %v3263 = vunpack.c.h.b16 %v2972
        %v3264 = vunpack.c.l.b16 %v2973
        %v3265 = vunpack.c.h.b16 %v2973
        %v3266 = vunpack.c.l.b16 %v2974
        %v3267 = vunpack.c.h.b16 %v2974
        %v3268 = vunpack.c.l.b16 %v2975
        %v3269 = vunpack.c.h.b16 %v2975
        %v3270 = vunpack.c.l.b16 %v2976
        %v3271 = vunpack.c.h.b16 %v2976
        %v3272 = vunpack.c.l.b16 %v2977
        %v3273 = vunpack.c.h.b16 %v2977
        %v3274 = vunpack.c.l.b16 %v2978
        %v3275 = vunpack.c.h.b16 %v2978
        %v3276 = vunpack.c.l.b16 %v2979
        %v3277 = vunpack.c.h.b16 %v2979
        %v3278 = vunpack.c.l.b16 %v2980
        %v3279 = vunpack.c.h.b16 %v2980
        %v3280 = vunpack.c.l.b16 %v2981
        %v3281 = vunpack.c.h.b16 %v2981
        %v3282 = vunpack.c.l.b16 %v2982
        %v3283 = vunpack.c.h.b16 %v2982
        %v3284 = vunpack.c.l.b16 %v2983
        %v3285 = vunpack.c.h.b16 %v2983
        %v3286 = vunpack.c.l.b16 %v2984
        %v3287 = vunpack.c.h.b16 %v2984
        %v3288 = vunpack.c.l.b16 %v2985
        %v3289 = vunpack.c.h.b16 %v2985
        %v3290 = vunpack.c.l.b16 %v2986
        %v3291 = vunpack.c.h.b16 %v2986
        %v3292 = vunpack.c.l.b16 %v2987
        %v3293 = vunpack.c.h.b16 %v2987
        %v3294 = vunpack.c.l.b16 %v2988
        %v3295 = vunpack.c.h.b16 %v2988
        %v3296 = vunpack.c.l.b16 %v2989
        %v3297 = vunpack.c.h.b16 %v2989
        %v3298 = vunpack.c.l.b16 %v2990
        %v3299 = vunpack.c.h.b16 %v2990
        %v3300 = vunpack.c.l.b16 %v2991
        %v3301 = vunpack.c.h.b16 %v2991
        %v3302 = vunpack.c.l.b16 %v2992
        %v3303 = vunpack.c.h.b16 %v2992
        %v3304 = vunpack.c.l.b16 %v2993
        %v3305 = vunpack.c.h.b16 %v2993
        %v3306 = vunpack.c.l.b16 %v2994
        %v3307 = vunpack.c.h.b16 %v2994
        %v3308 = vunpack.c.l.b16 %v2995
        %v3309 = vunpack.c.h.b16 %v2995
        %v3310 = vunpack.c.l.b16 %v2996
        %v3311 = vunpack.c.h.b16 %v2996
        %v3312 = vunpack.c.l.b16 %v2997
        %v3313 = vunpack.c.h.b16 %v2997
        %v3314 = vunpack.c.l.b16 %v2998
        %v3315 = vunpack.c.h.b16 %v2998
        %v3316 = vunpack.c.l.b16 %v2999
        %v3317 = vunpack.c.h.b16 %v2999
        %v3318 = vunpack.c.l.b16 %v3000
        %v3319 = vunpack.c.h.b16 %v3000
        %v3320 = vunpack.c.l.b16 %v3001
        %v3321 = vunpack.c.h.b16 %v3001
        %v3322 = vunpack.c.l.b16 %v3002
        %v3323 = vunpack.c.h.b16 %v3002
        %v3324 = vunpack.c.l.b16 %v3003
        %v3325 = vunpack.c.h.b16 %v3003
        %v3326 = vunpack.c.l.b16 %v3004
        %v3327 = vunpack.c.h.b16 %v3004
        %v3328 = vunpack.c.l.b16 %v3005
        %v3329 = vunpack.c.h.b16 %v3005
        %v3330 = vunpack.c.l.b16 %v3006
        %v3331 = vunpack.c.h.b16 %v3006
        %v3332 = vunpack.c.l.b16 %v3007
        %v3333 = vunpack.c.h.b16 %v3007
        %v3334 = vunpack.c.l.b16 %v3008
        %v3335 = vunpack.c.h.b16 %v3008
        %v3336 = vunpack.c.l.b16 %v3009
        %v3337 = vunpack.c.h.b16 %v3009
        %v3338 = vunpack.c.l.b16 %v3010
        %v3339 = vunpack.c.h.b16 %v3010
        %v3340 = vunpack.c.l.b16 %v3011
        %v3341 = vunpack.c.h.b16 %v3011
        %v3342 = vunpack.c.l.b16 %v3012
        %v3343 = vunpack.c.h.b16 %v3012
        %v3344 = vunpack.c.l.b16 %v3013
        %v3345 = vunpack.c.h.b16 %v3013
        %v3346 = vunpack.c.l.b16 %v3014
        %v3347 = vunpack.c.h.b16 %v3014
        %v3348 = vunpack.c.l.b16 %v3015
        %v3349 = vunpack.c.h.b16 %v3015
        %v3350 = vunpack.c.l.b16 %v3016
        %v3351 = vunpack.c.h.b16 %v3016
        %v3352 = vunpack.c.l.b16 %v3017
        %v3353 = vunpack.c.h.b16 %v3017
        %v3354 = vunpack.c.l.b16 %v3018
        %v3355 = vunpack.c.h.b16 %v3018
        %v3356 = vunpack.c.l.b16 %v3019
        %v3357 = vunpack.c.h.b16 %v3019
        %v3358 = vunpack.c.l.b16 %v3020
        %v3359 = vunpack.c.h.b16 %v3020
        %v3360 = vunpack.c.l.b16 %v3021
        %v3361 = vunpack.c.h.b16 %v3021
        %v3362 = vunpack.c.l.b16 %v3022
        %v3363 = vunpack.c.h.b16 %v3022
        %v3364 = vunpack.c.l.b16 %v3023
        %v3365 = vunpack.c.h.b16 %v3023
        %v3366 = vunpack.c.l.b16 %v3024
        %v3367 = vunpack.c.h.b16 %v3024
        %v3368 = vunpack.c.l.b16 %v3025
        %v3369 = vunpack.c.h.b16 %v3025
        %v3370 = vunpack.c.l.b16 %v3026
        %v3371 = vunpack.c.h.b16 %v3026
        %v3372 = vunpack.c.l.b16 %v3027
        %v3373 = vunpack.c.h.b16 %v3027
        %v3374 = vunpack.c.l.b16 %v3028
        %v3375 = vunpack.c.h.b16 %v3028
        %v3376 = vunpack.c.l.b16 %v3029
        %v3377 = vunpack.c.h.b16 %v3029
        %v3378 = vunpack.c.l.b16 %v3030
        %v3379 = vunpack.c.h.b16 %v3030
        %v3380 = vunpack.c.l.b16 %v3031
        %v3381 = vunpack.c.h.b16 %v3031
        %v3382 = vunpack.c.l.b16 %v3032
        %v3383 = vunpack.c.h.b16 %v3032
        %v3384 = vunpack.c.l.b16 %v3033
        %v3385 = vunpack.c.h.b16 %v3033
        %v3386 = vunpack.c.l.b16 %v3034
        %v3387 = vunpack.c.h.b16 %v3034
        %v3388 = vunpack.c.l.b16 %v3035
        %v3389 = vunpack.c.h.b16 %v3035
        %v3390 = vunpack.c.l.b16 %v3036
        %v3391 = vunpack.c.h.b16 %v3036
        %v3392 = vunpack.c.l.b16 %v3037
        %v3393 = vunpack.c.h.b16 %v3037
        %v3394 = vunpack.c.l.b16 %v3038
        %v3395 = vunpack.c.h.b16 %v3038
        %v3396 = vunpack.c.l.b16 %v3039
        %v3397 = vunpack.c.h.b16 %v3039
        %v3398 = vunpack.c.l.b16 %v3040
        %v3399 = vunpack.c.h.b16 %v3040
        %v3400 = vunpack.c.l.b16 %v3041
        %v3401 = vunpack.c.h.b16 %v3041
        %v3402 = vunpack.c.l.b16 %v3042
        %v3403 = vunpack.c.h.b16 %v3042
        %v3404 = vunpack.c.l.b16 %v3043
        %v3405 = vunpack.c.h.b16 %v3043
        %v3406 = vunpack.c.l.b16 %v3044
        %v3407 = vunpack.c.h.b16 %v3044
        %v3408 = vunpack.c.l.b16 %v3045
        %v3409 = vunpack.c.h.b16 %v3045
        %v3410 = vunpack.c.l.b16 %v3046
        %v3411 = vunpack.c.h.b16 %v3046
        %v3412 = vunpack.c.l.b16 %v3047
        %v3413 = vunpack.c.h.b16 %v3047
        %v3414 = vunpack.c.l.b16 %v3048
        %v3415 = vunpack.c.h.b16 %v3048
        %v3416 = vunpack.c.l.b16 %v3049
        %v3417 = vunpack.c.h.b16 %v3049
        %v3418 = vunpack.c.l.b16 %v3050
        %v3419 = vunpack.c.h.b16 %v3050
        %v3420 = vunpack.c.l.b16 %v3051
        %v3421 = vunpack.c.h.b16 %v3051
        %v3422 = vunpack.c.l.b16 %v3052
        %v3423 = vunpack.c.h.b16 %v3052
        %v3424 = vunpack.c.l.b16 %v3053
        %v3425 = vunpack.c.h.b16 %v3053
        %v3426 = vunpack.c.l.b16 %v3054
        %v3427 = vunpack.c.h.b16 %v3054
        %v3428 = vunpack.c.l.b16 %v3055
        %v3429 = vunpack.c.h.b16 %v3055
        %v3430 = vunpack.c.l.b16 %v3056
        %v3431 = vunpack.c.h.b16 %v3056
        %v3432 = vunpack.c.l.b16 %v3057
        %v3433 = vunpack.c.h.b16 %v3057
        %v3434 = vunpack.c.l.b16 %v3058
        %v3435 = vunpack.c.h.b16 %v3058
        %v3436 = vunpack.c.l.b16 %v3059
        %v3437 = vunpack.c.h.b16 %v3059
        %v3438 = vunpack.c.l.b16 %v3060
        %v3439 = vunpack.c.h.b16 %v3060
        %v3440 = vunpack.c.l.b16 %v3061
        %v3441 = vunpack.c.h.b16 %v3061
        %v3442 = vunpack.c.l.b16 %v3062
        %v3443 = vunpack.c.h.b16 %v3062
        %v3444 = vunpack.c.l.b16 %v3063
        %v3445 = vunpack.c.h.b16 %v3063
        %v3446 = vunpack.c.l.b16 %v3064
        %v3447 = vunpack.c.h.b16 %v3064
        %v3448 = vunpack.c.l.b16 %v3065
        %v3449 = vunpack.c.h.b16 %v3065
        %v3450 = vunpack.c.l.b16 %v3066
        %v3451 = vunpack.c.h.b16 %v3066
        %v3452 = vunpack.c.l.b16 %v3067
        %v3453 = vunpack.c.h.b16 %v3067
        %v3454 = vunpack.c.l.b16 %v3068
        %v3455 = vunpack.c.h.b16 %v3068
        %v3456 = vunpack.c.l.b16 %v3069
        %v3457 = vunpack.c.h.b16 %v3069
        %v3458 = vunpack.c.l.b16 %v3070
        %v3459 = vunpack.c.h.b16 %v3070
        %v3460 = vunpack.c.l.b16 %v3071
        %v3461 = vunpack.c.h.b16 %v3071
        %v3462 = vunpack.c.l.b16 %v3072
        %v3463 = vunpack.c.h.b16 %v3072
        %v3464 = vunpack.c.l.b16 %v3073
        %v3465 = vunpack.c.h.b16 %v3073
        %v3466 = vunpack.c.l.b16 %v3074
        %v3467 = vunpack.c.h.b16 %v3074
        %v3468 = vunpack.c.l.b16 %v3075
        %v3469 = vunpack.c.h.b16 %v3075
        %v3470 = vunpack.c.l.b16 %v3076
        %v3471 = vunpack.c.h.b16 %v3076
        %v3472 = vunpack.c.l.b16 %v3077
        %v3473 = vunpack.c.h.b16 %v3077
        %v3474 = vunpack.c.l.b16 %v3078
        %v3475 = vunpack.c.h.b16 %v3078
        %v3476 = vunpack.c.l.b16 %v3079
        %v3477 = vunpack.c.h.b16 %v3079
        %v3478 = vunpack.c.l.b16 %v3080
        %v3479 = vunpack.c.h.b16 %v3080
        %v3480 = vunpack.c.l.b16 %v3081
        %v3481 = vunpack.c.h.b16 %v3081
        %v3482 = vunpack.c.l.b16 %v3082
        %v3483 = vunpack.c.h.b16 %v3082
        %v3484 = vunpack.c.l.b16 %v3083
        %v3485 = vunpack.c.h.b16 %v3083
        %v3486 = vpack.c.b16 %v3238, %v3230
        %v3487 = vpack.c.b16 %v3239, %v3231
        %v3488 = vpack.c.b16 %v3240, %v3232
        %v3489 = vpack.c.b16 %v3241, %v3233
        %v3490 = vpack.c.b16 %v3242, %v3234
        %v3491 = vpack.c.b16 %v3243, %v3235
        %v3492 = vpack.c.b16 %v3244, %v3236
        %v3493 = vpack.c.b16 %v3245, %v3237
        %v3494 = vpack.c.b16 %v3254, %v3246
        %v3495 = vpack.c.b16 %v3255, %v3247
        %v3496 = vpack.c.b16 %v3256, %v3248
        %v3497 = vpack.c.b16 %v3257, %v3249
        %v3498 = vpack.c.b16 %v3258, %v3250
        %v3499 = vpack.c.b16 %v3259, %v3251
        %v3500 = vpack.c.b16 %v3260, %v3252
        %v3501 = vpack.c.b16 %v3261, %v3253
        %v3502 = vpack.c.b16 %v3270, %v3262
        %v3503 = vpack.c.b16 %v3271, %v3263
        %v3504 = vpack.c.b16 %v3272, %v3264
        %v3505 = vpack.c.b16 %v3273, %v3265
        %v3506 = vpack.c.b16 %v3274, %v3266
        %v3507 = vpack.c.b16 %v3275, %v3267
        %v3508 = vpack.c.b16 %v3276, %v3268
        %v3509 = vpack.c.b16 %v3277, %v3269
        %v3510 = vpack.c.b16 %v3286, %v3278
        %v3511 = vpack.c.b16 %v3287, %v3279
        %v3512 = vpack.c.b16 %v3288, %v3280
        %v3513 = vpack.c.b16 %v3289, %v3281
        %v3514 = vpack.c.b16 %v3290, %v3282
        %v3515 = vpack.c.b16 %v3291, %v3283
        %v3516 = vpack.c.b16 %v3292, %v3284
        %v3517 = vpack.c.b16 %v3293, %v3285
        %v3518 = vpack.c.b16 %v3302, %v3294
        %v3519 = vpack.c.b16 %v3303, %v3295
        %v3520 = vpack.c.b16 %v3304, %v3296
        %v3521 = vpack.c.b16 %v3305, %v3297
        %v3522 = vpack.c.b16 %v3306, %v3298
        %v3523 = vpack.c.b16 %v3307, %v3299
        %v3524 = vpack.c.b16 %v3308, %v3300
        %v3525 = vpack.c.b16 %v3309, %v3301
        %v3526 = vpack.c.b16 %v3318, %v3310
        %v3527 = vpack.c.b16 %v3319, %v3311
        %v3528 = vpack.c.b16 %v3320, %v3312
        %v3529 = vpack.c.b16 %v3321, %v3313
        %v3530 = vpack.c.b16 %v3322, %v3314
        %v3531 = vpack.c.b16 %v3323, %v3315
        %v3532 = vpack.c.b16 %v3324, %v3316
        %v3533 = vpack.c.b16 %v3325, %v3317
        %v3534 = vpack.c.b16 %v3334, %v3326
        %v3535 = vpack.c.b16 %v3335, %v3327
        %v3536 = vpack.c.b16 %v3336, %v3328
        %v3537 = vpack.c.b16 %v3337, %v3329
        %v3538 = vpack.c.b16 %v3338, %v3330
        %v3539 = vpack.c.b16 %v3339, %v3331
        %v3540 = vpack.c.b16 %v3340, %v3332
        %v3541 = vpack.c.b16 %v3341, %v3333
        %v3542 = vpack.c.b16 %v3350, %v3342
        %v3543 = vpack.c.b16 %v3351, %v3343
        %v3544 = vpack.c.b16 %v3352, %v3344
        %v3545 = vpack.c.b16 %v3353, %v3345
        %v3546 = vpack.c.b16 %v3354, %v3346
        %v3547 = vpack.c.b16 %v3355, %v3347
        %v3548 = vpack.c.b16 %v3356, %v3348
        %v3549 = vpack.c.b16 %v3357, %v3349
        %v3550 = vpack.c.b16 %v3366, %v3358
        %v3551 = vpack.c.b16 %v3367, %v3359
        %v3552 = vpack.c.b16 %v3368, %v3360
        %v3553 = vpack.c.b16 %v3369, %v3361
        %v3554 = vpack.c.b16 %v3370, %v3362
        %v3555 = vpack.c.b16 %v3371, %v3363
        %v3556 = vpack.c.b16 %v3372, %v3364
        %v3557 = vpack.c.b16 %v3373, %v3365
        %v3558 = vpack.c.b16 %v3382, %v3374
        %v3559 = vpack.c.b16 %v3383, %v3375
        %v3560 = vpack.c.b16 %v3384, %v3376
        %v3561 = vpack.c.b16 %v3385, %v3377
        %v3562 = vpack.c.b16 %v3386, %v3378
        %v3563 = vpack.c.b16 %v3387, %v3379
        %v3564 = vpack.c.b16 %v3388, %v3380
        %v3565 = vpack.c.b16 %v3389, %v3381
        %v3566 = vpack.c.b16 %v3398, %v3390
        %v3567 = vpack.c.b16 %v3399, %v3391
        %v3568 = vpack.c.b16 %v3400, %v3392
        %v3569 = vpack.c.b16 %v3401, %v3393
        %v3570 = vpack.c.b16 %v3402, %v3394
        %v3571 = vpack.c.b16 %v3403, %v3395
        %v3572 = vpack.c.b16 %v3404, %v3396
        %v3573 = vpack.c.b16 %v3405, %v3397
        %v3574 = vpack.c.b16 %v3414, %v3406
        %v3575 = vpack.c.b16 %v3415, %v3407
        %v3576 = vpack.c.b16 %v3416, %v3408
        %v3577 = vpack.c.b16 %v3417, %v3409
        %v3578 = vpack.c.b16 %v3418, %v3410
        %v3579 = vpack.c.b16 %v3419, %v3411
        %v3580 = vpack.c.b16 %v3420, %v3412
        %v3581 = vpack.c.b16 %v3421, %v3413
        %v3582 = vpack.c.b16 %v3430, %v3422
        %v3583 = vpack.c.b16 %v3431, %v3423
        %v3584 = vpack.c.b16 %v3432, %v3424
        %v3585 = vpack.c.b16 %v3433, %v3425
        %v3586 = vpack.c.b16 %v3434, %v3426
        %v3587 = vpack.c.b16 %v3435, %v3427
        %v3588 = vpack.c.b16 %v3436, %v3428
        %v3589 = vpack.c.b16 %v3437, %v3429
        %v3590 = vpack.c.b16 %v3446, %v3438
        %v3591 = vpack.c.b16 %v3447, %v3439
        %v3592 = vpack.c.b16 %v3448, %v3440
        %v3593 = vpack.c.b16 %v3449, %v3441
        %v3594 = vpack.c.b16 %v3450, %v3442
        %v3595 = vpack.c.b16 %v3451, %v3443
        %v3596 = vpack.c.b16 %v3452, %v3444
        %v3597 = vpack.c.b16 %v3453, %v3445
        %v3598 = vpack.c.b16 %v3462, %v3454
        %v3599 = vpack.c.b16 %v3463, %v3455
        %v3600 = vpack.c.b16 %v3464, %v3456
        %v3601 = vpack.c.b16 %v3465, %v3457
        %v3602 = vpack.c.b16 %v3466, %v3458
        %v3603 = vpack.c.b16 %v3467, %v3459
        %v3604 = vpack.c.b16 %v3468, %v3460
        %v3605 = vpack.c.b16 %v3469, %v3461
        %v3606 = vpack.c.b16 %v3478, %v3470
        %v3607 = vpack.c.b16 %v3479, %v3471
        %v3608 = vpack.c.b16 %v3480, %v3472
        %v3609 = vpack.c.b16 %v3481, %v3473
        %v3610 = vpack.c.b16 %v3482, %v3474
        %v3611 = vpack.c.b16 %v3483, %v3475
        %v3612 = vpack.c.b16 %v3484, %v3476
        %v3613 = vpack.c.b16 %v3485, %v3477
        %3742 = vmatpush.bf16.msra.mxu0 %v3542
        %3743 = vmatpush.bf16.msra.mxu0 %v3534
        %3744 = vmatpush.bf16.msra.mxu0 %v3526
        %3745 = vmatpush.bf16.msra.mxu0 %v3518
        %3746 = vmatpush.bf16.msra.mxu0 %v3510
        %3747 = vmatpush.bf16.msra.mxu0 %v3502
        %3748 = vmatpush.bf16.msra.mxu0 %v3494
        %3749 = vmatpush.bf16.msra.mxu0 %v3486
        %3750 = vmatmul.bf16.gmra.mxu0 %v2954
        %v3751 = vpop.f32.mrf.mxu0
        %v3752 = vadd.f32 %v3086, %v3751
        %v3753 = vpop.f32.mrf.mxu0
        %v3754 = vadd.f32 %v3086, %v3753
        %3755 = vdwg.mxu0
        %3756 = vmatpush.bf16.msra.mxu0 %v3606
        %3757 = vmatpush.bf16.msra.mxu0 %v3598
        %3758 = vmatpush.bf16.msra.mxu0 %v3590
        %3759 = vmatpush.bf16.msra.mxu0 %v3582
        %3760 = vmatpush.bf16.msra.mxu0 %v3574
        %3761 = vmatpush.bf16.msra.mxu0 %v3566
        %3762 = vmatpush.bf16.msra.mxu0 %v3558
        %3763 = vmatpush.bf16.msra.mxu0 %v3550
        %3764 = vmatmul.bf16.gmra.mxu0 %v2955
        %v3765 = vpop.f32.mrf.mxu0
        %v3766 = vadd.f32 %v3752, %v3765
        %v3767 = vpop.f32.mrf.mxu0
        %v3768 = vadd.f32 %v3754, %v3767
        %3769 = vdwg.mxu0
        %3770 = vmatpush.bf16.msra.mxu0 %v3543
        %3771 = vmatpush.bf16.msra.mxu0 %v3535
        %3772 = vmatpush.bf16.msra.mxu0 %v3527
        %3773 = vmatpush.bf16.msra.mxu0 %v3519
        %3774 = vmatpush.bf16.msra.mxu0 %v3511
        %3775 = vmatpush.bf16.msra.mxu0 %v3503
        %3776 = vmatpush.bf16.msra.mxu0 %v3495
        %3777 = vmatpush.bf16.msra.mxu0 %v3487
        %3778 = vmatmul.bf16.gmra.mxu0 %v2954
        %v3779 = vpop.f32.mrf.mxu0
        %v3780 = vadd.f32 %v3087, %v3779
        %v3781 = vpop.f32.mrf.mxu0
        %v3782 = vadd.f32 %v3087, %v3781
        %3783 = vdwg.mxu0
        %3784 = vmatpush.bf16.msra.mxu0 %v3607
        %3785 = vmatpush.bf16.msra.mxu0 %v3599
        %3786 = vmatpush.bf16.msra.mxu0 %v3591
        %3787 = vmatpush.bf16.msra.mxu0 %v3583
        %3788 = vmatpush.bf16.msra.mxu0 %v3575
        %3789 = vmatpush.bf16.msra.mxu0 %v3567
        %3790 = vmatpush.bf16.msra.mxu0 %v3559
        %3791 = vmatpush.bf16.msra.mxu0 %v3551
        %3792 = vmatmul.bf16.gmra.mxu0 %v2955
        %v3793 = vpop.f32.mrf.mxu0
        %v3794 = vadd.f32 %v3780, %v3793
        %v3795 = vpop.f32.mrf.mxu0
        %v3796 = vadd.f32 %v3782, %v3795
        %3797 = vdwg.mxu0
        %3798 = vmatpush.bf16.msra.mxu0 %v3544
        %3799 = vmatpush.bf16.msra.mxu0 %v3536
        %3800 = vmatpush.bf16.msra.mxu0 %v3528
        %3801 = vmatpush.bf16.msra.mxu0 %v3520
        %3802 = vmatpush.bf16.msra.mxu0 %v3512
        %3803 = vmatpush.bf16.msra.mxu0 %v3504
        %3804 = vmatpush.bf16.msra.mxu0 %v3496
        %3805 = vmatpush.bf16.msra.mxu0 %v3488
        %3806 = vmatmul.bf16.gmra.mxu0 %v2954
        %v3807 = vpop.f32.mrf.mxu0
        %v3808 = vadd.f32 %v3088, %v3807
        %v3809 = vpop.f32.mrf.mxu0
        %v3810 = vadd.f32 %v3088, %v3809
        %3811 = vdwg.mxu0
        %3812 = vmatpush.bf16.msra.mxu0 %v3608
        %3813 = vmatpush.bf16.msra.mxu0 %v3600
        %3814 = vmatpush.bf16.msra.mxu0 %v3592
        %3815 = vmatpush.bf16.msra.mxu0 %v3584
        %3816 = vmatpush.bf16.msra.mxu0 %v3576
        %3817 = vmatpush.bf16.msra.mxu0 %v3568
        %3818 = vmatpush.bf16.msra.mxu0 %v3560
        %3819 = vmatpush.bf16.msra.mxu0 %v3552
        %3820 = vmatmul.bf16.gmra.mxu0 %v2955
        %v3821 = vpop.f32.mrf.mxu0
        %v3822 = vadd.f32 %v3808, %v3821
        %v3823 = vpop.f32.mrf.mxu0
        %v3824 = vadd.f32 %v3810, %v3823
        %3825 = vdwg.mxu0
        %3826 = vmatpush.bf16.msra.mxu0 %v3545
        %3827 = vmatpush.bf16.msra.mxu0 %v3537
        %3828 = vmatpush.bf16.msra.mxu0 %v3529
        %3829 = vmatpush.bf16.msra.mxu0 %v3521
        %3830 = vmatpush.bf16.msra.mxu0 %v3513
        %3831 = vmatpush.bf16.msra.mxu0 %v3505
        %3832 = vmatpush.bf16.msra.mxu0 %v3497
        %3833 = vmatpush.bf16.msra.mxu0 %v3489
        %3834 = vmatmul.bf16.gmra.mxu0 %v2954
        %v3835 = vpop.f32.mrf.mxu0
        %v3836 = vadd.f32 %v3089, %v3835
        %v3837 = vpop.f32.mrf.mxu0
        %v3838 = vadd.f32 %v3089, %v3837
        %3839 = vdwg.mxu0
        %3840 = vmatpush.bf16.msra.mxu0 %v3609
        %3841 = vmatpush.bf16.msra.mxu0 %v3601
        %3842 = vmatpush.bf16.msra.mxu0 %v3593
        %3843 = vmatpush.bf16.msra.mxu0 %v3585
        %3844 = vmatpush.bf16.msra.mxu0 %v3577
        %3845 = vmatpush.bf16.msra.mxu0 %v3569
        %3846 = vmatpush.bf16.msra.mxu0 %v3561
        %3847 = vmatpush.bf16.msra.mxu0 %v3553
        %3848 = vmatmul.bf16.gmra.mxu0 %v2955
        %v3849 = vpop.f32.mrf.mxu0
        %v3850 = vadd.f32 %v3836, %v3849
        %v3851 = vpop.f32.mrf.mxu0
        %v3852 = vadd.f32 %v3838, %v3851
        %3853 = vdwg.mxu0
        %3854 = vmatpush.bf16.msra.mxu0 %v3546
        %3855 = vmatpush.bf16.msra.mxu0 %v3538
        %3856 = vmatpush.bf16.msra.mxu0 %v3530
        %3857 = vmatpush.bf16.msra.mxu0 %v3522
        %3858 = vmatpush.bf16.msra.mxu0 %v3514
        %3859 = vmatpush.bf16.msra.mxu0 %v3506
        %3860 = vmatpush.bf16.msra.mxu0 %v3498
        %3861 = vmatpush.bf16.msra.mxu0 %v3490
        %3862 = vmatmul.bf16.gmra.mxu0 %v2954
        %v3863 = vpop.f32.mrf.mxu0
        %v3864 = vadd.f32 %v3090, %v3863
        %v3865 = vpop.f32.mrf.mxu0
        %v3866 = vadd.f32 %v3090, %v3865
        %3867 = vdwg.mxu0
        %3868 = vmatpush.bf16.msra.mxu0 %v3610
        %3869 = vmatpush.bf16.msra.mxu0 %v3602
        %3870 = vmatpush.bf16.msra.mxu0 %v3594
        %3871 = vmatpush.bf16.msra.mxu0 %v3586
        %3872 = vmatpush.bf16.msra.mxu0 %v3578
        %3873 = vmatpush.bf16.msra.mxu0 %v3570
        %3874 = vmatpush.bf16.msra.mxu0 %v3562
        %3875 = vmatpush.bf16.msra.mxu0 %v3554
        %3876 = vmatmul.bf16.gmra.mxu0 %v2955
        %v3877 = vpop.f32.mrf.mxu0
        %v3878 = vadd.f32 %v3864, %v3877
        %v3879 = vpop.f32.mrf.mxu0
        %v3880 = vadd.f32 %v3866, %v3879
        %3881 = vdwg.mxu0
        %3882 = vmatpush.bf16.msra.mxu0 %v3547
        %3883 = vmatpush.bf16.msra.mxu0 %v3539
        %3884 = vmatpush.bf16.msra.mxu0 %v3531
        %3885 = vmatpush.bf16.msra.mxu0 %v3523
        %3886 = vmatpush.bf16.msra.mxu0 %v3515
        %3887 = vmatpush.bf16.msra.mxu0 %v3507
        %3888 = vmatpush.bf16.msra.mxu0 %v3499
        %3889 = vmatpush.bf16.msra.mxu0 %v3491
        %3890 = vmatmul.bf16.gmra.mxu0 %v2954
        %v3891 = vpop.f32.mrf.mxu0
        %v3892 = vadd.f32 %v3091, %v3891
        %v3893 = vpop.f32.mrf.mxu0
        %v3894 = vadd.f32 %v3091, %v3893
        %3895 = vdwg.mxu0
        %3896 = vmatpush.bf16.msra.mxu0 %v3611
        %3897 = vmatpush.bf16.msra.mxu0 %v3603
        %3898 = vmatpush.bf16.msra.mxu0 %v3595
        %3899 = vmatpush.bf16.msra.mxu0 %v3587
        %3900 = vmatpush.bf16.msra.mxu0 %v3579
        %3901 = vmatpush.bf16.msra.mxu0 %v3571
        %3902 = vmatpush.bf16.msra.mxu0 %v3563
        %3903 = vmatpush.bf16.msra.mxu0 %v3555
        %3904 = vmatmul.bf16.gmra.mxu0 %v2955
        %v3905 = vpop.f32.mrf.mxu0
        %v3906 = vadd.f32 %v3892, %v3905
        %v3907 = vpop.f32.mrf.mxu0
        %v3908 = vadd.f32 %v3894, %v3907
        %3909 = vdwg.mxu0
        %3910 = vmatpush.bf16.msra.mxu0 %v3548
        %3911 = vmatpush.bf16.msra.mxu0 %v3540
        %3912 = vmatpush.bf16.msra.mxu0 %v3532
        %3913 = vmatpush.bf16.msra.mxu0 %v3524
        %3914 = vmatpush.bf16.msra.mxu0 %v3516
        %3915 = vmatpush.bf16.msra.mxu0 %v3508
        %3916 = vmatpush.bf16.msra.mxu0 %v3500
        %3917 = vmatpush.bf16.msra.mxu0 %v3492
        %3918 = vmatmul.bf16.gmra.mxu0 %v2954
        %v3919 = vpop.f32.mrf.mxu0
        %v3920 = vadd.f32 %v3092, %v3919
        %v3921 = vpop.f32.mrf.mxu0
        %v3922 = vadd.f32 %v3092, %v3921
        %3923 = vdwg.mxu0
        %3924 = vmatpush.bf16.msra.mxu0 %v3612
        %3925 = vmatpush.bf16.msra.mxu0 %v3604
        %3926 = vmatpush.bf16.msra.mxu0 %v3596
        %3927 = vmatpush.bf16.msra.mxu0 %v3588
        %3928 = vmatpush.bf16.msra.mxu0 %v3580
        %3929 = vmatpush.bf16.msra.mxu0 %v3572
        %3930 = vmatpush.bf16.msra.mxu0 %v3564
        %3931 = vmatpush.bf16.msra.mxu0 %v3556
        %3932 = vmatmul.bf16.gmra.mxu0 %v2955
        %v3933 = vpop.f32.mrf.mxu0
        %v3934 = vadd.f32 %v3920, %v3933
        %v3935 = vpop.f32.mrf.mxu0
        %v3936 = vadd.f32 %v3922, %v3935
        %3937 = vdwg.mxu0
        %3938 = vmatpush.bf16.msra.mxu0 %v3549
        %3939 = vmatpush.bf16.msra.mxu0 %v3541
        %3940 = vmatpush.bf16.msra.mxu0 %v3533
        %3941 = vmatpush.bf16.msra.mxu0 %v3525
        %3942 = vmatpush.bf16.msra.mxu0 %v3517
        %3943 = vmatpush.bf16.msra.mxu0 %v3509
        %3944 = vmatpush.bf16.msra.mxu0 %v3501
        %3945 = vmatpush.bf16.msra.mxu0 %v3493
        %3946 = vmatmul.bf16.gmra.mxu0 %v2954
        %v3947 = vpop.f32.mrf.mxu0
        %v3948 = vadd.f32 %v3093, %v3947
        %v3949 = vpop.f32.mrf.mxu0
        %v3950 = vadd.f32 %v3093, %v3949
        %3951 = vdwg.mxu0
        %3952 = vmatpush.bf16.msra.mxu0 %v3613
        %3953 = vmatpush.bf16.msra.mxu0 %v3605
        %3954 = vmatpush.bf16.msra.mxu0 %v3597
        %3955 = vmatpush.bf16.msra.mxu0 %v3589
        %3956 = vmatpush.bf16.msra.mxu0 %v3581
        %3957 = vmatpush.bf16.msra.mxu0 %v3573
        %3958 = vmatpush.bf16.msra.mxu0 %v3565
        %3959 = vmatpush.bf16.msra.mxu0 %v3557
        %3960 = vmatmul.bf16.gmra.mxu0 %v2955
        %v3961 = vpop.f32.mrf.mxu0
        %v3962 = vadd.f32 %v3948, %v3961
        %v3963 = vpop.f32.mrf.mxu0
        %v3964 = vadd.f32 %v3950, %v3963
        %3965 = vdwg.mxu0
        %v3966 = vmul.f32 %v3766, %v3766
        %v3967 = vmul.f32 %v3794, %v3794
        %v3968 = vmul.f32 %v3822, %v3822
        %v3969 = vmul.f32 %v3850, %v3850
        %v3970 = vmul.f32 %v3878, %v3878
        %v3971 = vmul.f32 %v3906, %v3906
        %v3972 = vmul.f32 %v3934, %v3934
        %v3973 = vmul.f32 %v3962, %v3962
        %v3974 = vmul.f32 %v3768, %v3768
        %v3975 = vmul.f32 %v3796, %v3796
        %v3976 = vmul.f32 %v3824, %v3824
        %v3977 = vmul.f32 %v3852, %v3852
        %v3978 = vmul.f32 %v3880, %v3880
        %v3979 = vmul.f32 %v3908, %v3908
        %v3980 = vmul.f32 %v3936, %v3936
        %v3981 = vmul.f32 %v3964, %v3964
        %v3982 = vmul.f32 %v3766, %v3966
        %v3983 = vmul.f32 %v3794, %v3967
        %v3984 = vmul.f32 %v3822, %v3968
        %v3985 = vmul.f32 %v3850, %v3969
        %v3986 = vmul.f32 %v3878, %v3970
        %v3987 = vmul.f32 %v3906, %v3971
        %v3988 = vmul.f32 %v3934, %v3972
        %v3989 = vmul.f32 %v3962, %v3973
        %v3990 = vmul.f32 %v3768, %v3974
        %v3991 = vmul.f32 %v3796, %v3975
        %v3992 = vmul.f32 %v3824, %v3976
        %v3993 = vmul.f32 %v3852, %v3977
        %v3994 = vmul.f32 %v3880, %v3978
        %v3995 = vmul.f32 %v3908, %v3979
        %v3996 = vmul.f32 %v3936, %v3980
        %v3997 = vmul.f32 %v3964, %v3981
        %v3998 = vmul.f32 %v3982, 0.044715
        %v3999 = vmul.f32 %v3983, 0.044715
        %v4000 = vmul.f32 %v3984, 0.044715
        %v4001 = vmul.f32 %v3985, 0.044715
        %v4002 = vmul.f32 %v3986, 0.044715
        %v4003 = vmul.f32 %v3987, 0.044715
        %v4004 = vmul.f32 %v3988, 0.044715
        %v4005 = vmul.f32 %v3989, 0.044715
        %v4006 = vmul.f32 %v3990, 0.044715
        %v4007 = vmul.f32 %v3991, 0.044715
        %v4008 = vmul.f32 %v3992, 0.044715
        %v4009 = vmul.f32 %v3993, 0.044715
        %v4010 = vmul.f32 %v3994, 0.044715
        %v4011 = vmul.f32 %v3995, 0.044715
        %v4012 = vmul.f32 %v3996, 0.044715
        %v4013 = vmul.f32 %v3997, 0.044715
        %v4014 = vadd.f32 %v3766, %v3998
        %v4015 = vadd.f32 %v3794, %v3999
        %v4016 = vadd.f32 %v3822, %v4000
        %v4017 = vadd.f32 %v3850, %v4001
        %v4018 = vadd.f32 %v3878, %v4002
        %v4019 = vadd.f32 %v3906, %v4003
        %v4020 = vadd.f32 %v3934, %v4004
        %v4021 = vadd.f32 %v3962, %v4005
        %v4022 = vadd.f32 %v3768, %v4006
        %v4023 = vadd.f32 %v3796, %v4007
        %v4024 = vadd.f32 %v3824, %v4008
        %v4025 = vadd.f32 %v3852, %v4009
        %v4026 = vadd.f32 %v3880, %v4010
        %v4027 = vadd.f32 %v3908, %v4011
        %v4028 = vadd.f32 %v3936, %v4012
        %v4029 = vadd.f32 %v3964, %v4013
        %v4030 = vmul.f32 %v4014, 0.7978846
        %v4031 = vmul.f32 %v4015, 0.7978846
        %v4032 = vmul.f32 %v4016, 0.7978846
        %v4033 = vmul.f32 %v4017, 0.7978846
        %v4034 = vmul.f32 %v4018, 0.7978846
        %v4035 = vmul.f32 %v4019, 0.7978846
        %v4036 = vmul.f32 %v4020, 0.7978846
        %v4037 = vmul.f32 %v4021, 0.7978846
        %v4038 = vmul.f32 %v4022, 0.7978846
        %v4039 = vmul.f32 %v4023, 0.7978846
        %v4040 = vmul.f32 %v4024, 0.7978846
        %v4041 = vmul.f32 %v4025, 0.7978846
        %v4042 = vmul.f32 %v4026, 0.7978846
        %v4043 = vmul.f32 %v4027, 0.7978846
        %v4044 = vmul.f32 %v4028, 0.7978846
        %v4045 = vmul.f32 %v4029, 0.7978846
        %v4046 = vtanh.pop %v4030
        %v4047 = vtanh.pop %v4031
        %v4048 = vtanh.pop %v4032
        %v4049 = vtanh.pop %v4033
        %v4050 = vtanh.pop %v4034
        %v4051 = vtanh.pop %v4035
        %v4052 = vtanh.pop %v4036
        %v4053 = vtanh.pop %v4037
        %v4054 = vtanh.pop %v4038
        %v4055 = vtanh.pop %v4039
        %v4056 = vtanh.pop %v4040
        %v4057 = vtanh.pop %v4041
        %v4058 = vtanh.pop %v4042
        %v4059 = vtanh.pop %v4043
        %v4060 = vtanh.pop %v4044
        %v4061 = vtanh.pop %v4045
        %v4062 = vadd.f32 %v4046, 1.0
        %v4063 = vadd.f32 %v4047, 1.0
        %v4064 = vadd.f32 %v4048, 1.0
        %v4065 = vadd.f32 %v4049, 1.0
        %v4066 = vadd.f32 %v4050, 1.0
        %v4067 = vadd.f32 %v4051, 1.0
        %v4068 = vadd.f32 %v4052, 1.0
        %v4069 = vadd.f32 %v4053, 1.0
        %v4070 = vadd.f32 %v4054, 1.0
        %v4071 = vadd.f32 %v4055, 1.0
        %v4072 = vadd.f32 %v4056, 1.0
        %v4073 = vadd.f32 %v4057, 1.0
        %v4074 = vadd.f32 %v4058, 1.0
        %v4075 = vadd.f32 %v4059, 1.0
        %v4076 = vadd.f32 %v4060, 1.0
        %v4077 = vadd.f32 %v4061, 1.0
        %v4078 = vmul.f32 %v4062, 0.5
        %v4079 = vmul.f32 %v4063, 0.5
        %v4080 = vmul.f32 %v4064, 0.5
        %v4081 = vmul.f32 %v4065, 0.5
        %v4082 = vmul.f32 %v4066, 0.5
        %v4083 = vmul.f32 %v4067, 0.5
        %v4084 = vmul.f32 %v4068, 0.5
        %v4085 = vmul.f32 %v4069, 0.5
        %v4086 = vmul.f32 %v4070, 0.5
        %v4087 = vmul.f32 %v4071, 0.5
        %v4088 = vmul.f32 %v4072, 0.5
        %v4089 = vmul.f32 %v4073, 0.5
        %v4090 = vmul.f32 %v4074, 0.5
        %v4091 = vmul.f32 %v4075, 0.5
        %v4092 = vmul.f32 %v4076, 0.5
        %v4093 = vmul.f32 %v4077, 0.5
        %v4094 = vmul.f32 %v3766, %v4078
        %v4095 = vmul.f32 %v3794, %v4079
        %v4096 = vmul.f32 %v3822, %v4080
        %v4097 = vmul.f32 %v3850, %v4081
        %v4098 = vmul.f32 %v3878, %v4082
        %v4099 = vmul.f32 %v3906, %v4083
        %v4100 = vmul.f32 %v3934, %v4084
        %v4101 = vmul.f32 %v3962, %v4085
        %v4102 = vmul.f32 %v3768, %v4086
        %v4103 = vmul.f32 %v3796, %v4087
        %v4104 = vmul.f32 %v3824, %v4088
        %v4105 = vmul.f32 %v3852, %v4089
        %v4106 = vmul.f32 %v3880, %v4090
        %v4107 = vmul.f32 %v3908, %v4091
        %v4108 = vmul.f32 %v3936, %v4092
        %v4109 = vmul.f32 %v3964, %v4093
        %v4110 = vpack.c.bf16 %v4102, %v4094
        %v4111 = vpack.c.bf16 %v4103, %v4095
        %v4112 = vpack.c.bf16 %v4104, %v4096
        %v4113 = vpack.c.bf16 %v4105, %v4097
        %v4114 = vpack.c.bf16 %v4106, %v4098
        %v4115 = vpack.c.bf16 %v4107, %v4099
        %v4116 = vpack.c.bf16 %v4108, %v4100
        %v4117 = vpack.c.bf16 %v4109, %v4101
        %v4118 = vld [vmem:[%s1151] sm:$0xff]
        %v4119 = vld [vmem:[%s1151 + $0x8] sm:$0xff]
        %v4120 = vld [vmem:[%s1151 + $0x10] sm:$0xff]
        %v4121 = vld [vmem:[%s1151 + $0x18] sm:$0xff]
        %v4122 = vld [vmem:[%s1151 + $0x20] sm:$0xff]
        %v4123 = vld [vmem:[%s1151 + $0x28] sm:$0xff]
        %v4124 = vld [vmem:[%s1151 + $0x30] sm:$0xff]
        %v4125 = vld [vmem:[%s1151 + $0x38] sm:$0xff]
        %v4126 = vld [vmem:[%s1151 + $0x40] sm:$0xff]
        %v4127 = vld [vmem:[%s1151 + $0x48] sm:$0xff]
        %v4128 = vld [vmem:[%s1151 + $0x50] sm:$0xff]
        %v4129 = vld [vmem:[%s1151 + $0x58] sm:$0xff]
        %v4130 = vld [vmem:[%s1151 + $0x60] sm:$0xff]
        %v4131 = vld [vmem:[%s1151 + $0x68] sm:$0xff]
        %v4132 = vld [vmem:[%s1151 + $0x70] sm:$0xff]
        %v4133 = vld [vmem:[%s1151 + $0x78] sm:$0xff]
        %v4134 = vld [vmem:[%s1151 + $0x80] sm:$0xff]
        %v4135 = vld [vmem:[%s1151 + $0x88] sm:$0xff]
        %v4136 = vld [vmem:[%s1151 + $0x90] sm:$0xff]
        %v4137 = vld [vmem:[%s1151 + $0x98] sm:$0xff]
        %v4138 = vld [vmem:[%s1151 + $0xa0] sm:$0xff]
        %v4139 = vld [vmem:[%s1151 + $0xa8] sm:$0xff]
        %v4140 = vld [vmem:[%s1151 + $0xb0] sm:$0xff]
        %v4141 = vld [vmem:[%s1151 + $0xb8] sm:$0xff]
        %v4142 = vld [vmem:[%s1151 + $0xc0] sm:$0xff]
        %v4143 = vld [vmem:[%s1151 + $0xc8] sm:$0xff]
        %v4144 = vld [vmem:[%s1151 + $0xd0] sm:$0xff]
        %v4145 = vld [vmem:[%s1151 + $0xd8] sm:$0xff]
        %v4146 = vld [vmem:[%s1151 + $0xe0] sm:$0xff]
        %v4147 = vld [vmem:[%s1151 + $0xe8] sm:$0xff]
        %v4148 = vld [vmem:[%s1151 + $0xf0] sm:$0xff]
        %v4149 = vld [vmem:[%s1151 + $0xf8] sm:$0xff]
        %v4150 = vld [vmem:[%s1151 + $0x100] sm:$0xff]
        %v4151 = vld [vmem:[%s1151 + $0x108] sm:$0xff]
        %v4152 = vld [vmem:[%s1151 + $0x110] sm:$0xff]
        %v4153 = vld [vmem:[%s1151 + $0x118] sm:$0xff]
        %v4154 = vld [vmem:[%s1151 + $0x120] sm:$0xff]
        %v4155 = vld [vmem:[%s1151 + $0x128] sm:$0xff]
        %v4156 = vld [vmem:[%s1151 + $0x130] sm:$0xff]
        %v4157 = vld [vmem:[%s1151 + $0x138] sm:$0xff]
        %v4158 = vld [vmem:[%s1151 + $0x140] sm:$0xff]
        %v4159 = vld [vmem:[%s1151 + $0x148] sm:$0xff]
        %v4160 = vld [vmem:[%s1151 + $0x150] sm:$0xff]
        %v4161 = vld [vmem:[%s1151 + $0x158] sm:$0xff]
        %v4162 = vld [vmem:[%s1151 + $0x160] sm:$0xff]
        %v4163 = vld [vmem:[%s1151 + $0x168] sm:$0xff]
        %v4164 = vld [vmem:[%s1151 + $0x170] sm:$0xff]
        %v4165 = vld [vmem:[%s1151 + $0x178] sm:$0xff]
        %v4166 = vld [vmem:[%s1151 + $0x180] sm:$0xff]
        %v4167 = vld [vmem:[%s1151 + $0x188] sm:$0xff]
        %v4168 = vld [vmem:[%s1151 + $0x190] sm:$0xff]
        %v4169 = vld [vmem:[%s1151 + $0x198] sm:$0xff]
        %v4170 = vld [vmem:[%s1151 + $0x1a0] sm:$0xff]
        %v4171 = vld [vmem:[%s1151 + $0x1a8] sm:$0xff]
        %v4172 = vld [vmem:[%s1151 + $0x1b0] sm:$0xff]
        %v4173 = vld [vmem:[%s1151 + $0x1b8] sm:$0xff]
        %v4174 = vld [vmem:[%s1151 + $0x1c0] sm:$0xff]
        %v4175 = vld [vmem:[%s1151 + $0x1c8] sm:$0xff]
        %v4176 = vld [vmem:[%s1151 + $0x1d0] sm:$0xff]
        %v4177 = vld [vmem:[%s1151 + $0x1d8] sm:$0xff]
        %v4178 = vld [vmem:[%s1151 + $0x1e0] sm:$0xff]
        %v4179 = vld [vmem:[%s1151 + $0x1e8] sm:$0xff]
        %v4180 = vld [vmem:[%s1151 + $0x1f0] sm:$0xff]
        %v4181 = vld [vmem:[%s1151 + $0x1f8] sm:$0xff]
        %v4182 = vld [vmem:[%s1151 + $0x200] sm:$0xff]
        %v4183 = vld [vmem:[%s1151 + $0x208] sm:$0xff]
        %v4184 = vld [vmem:[%s1151 + $0x210] sm:$0xff]
        %v4185 = vld [vmem:[%s1151 + $0x218] sm:$0xff]
        %v4186 = vld [vmem:[%s1151 + $0x220] sm:$0xff]
        %v4187 = vld [vmem:[%s1151 + $0x228] sm:$0xff]
        %v4188 = vld [vmem:[%s1151 + $0x230] sm:$0xff]
        %v4189 = vld [vmem:[%s1151 + $0x238] sm:$0xff]
        %v4190 = vld [vmem:[%s1151 + $0x240] sm:$0xff]
        %v4191 = vld [vmem:[%s1151 + $0x248] sm:$0xff]
        %v4192 = vld [vmem:[%s1151 + $0x250] sm:$0xff]
        %v4193 = vld [vmem:[%s1151 + $0x258] sm:$0xff]
        %v4194 = vld [vmem:[%s1151 + $0x260] sm:$0xff]
        %v4195 = vld [vmem:[%s1151 + $0x268] sm:$0xff]
        %v4196 = vld [vmem:[%s1151 + $0x270] sm:$0xff]
        %v4197 = vld [vmem:[%s1151 + $0x278] sm:$0xff]
        %v4198 = vld [vmem:[%s1151 + $0x280] sm:$0xff]
        %v4199 = vld [vmem:[%s1151 + $0x288] sm:$0xff]
        %v4200 = vld [vmem:[%s1151 + $0x290] sm:$0xff]
        %v4201 = vld [vmem:[%s1151 + $0x298] sm:$0xff]
        %v4202 = vld [vmem:[%s1151 + $0x2a0] sm:$0xff]
        %v4203 = vld [vmem:[%s1151 + $0x2a8] sm:$0xff]
        %v4204 = vld [vmem:[%s1151 + $0x2b0] sm:$0xff]
        %v4205 = vld [vmem:[%s1151 + $0x2b8] sm:$0xff]
        %v4206 = vld [vmem:[%s1151 + $0x2c0] sm:$0xff]
        %v4207 = vld [vmem:[%s1151 + $0x2c8] sm:$0xff]
        %v4208 = vld [vmem:[%s1151 + $0x2d0] sm:$0xff]
        %v4209 = vld [vmem:[%s1151 + $0x2d8] sm:$0xff]
        %v4210 = vld [vmem:[%s1151 + $0x2e0] sm:$0xff]
        %v4211 = vld [vmem:[%s1151 + $0x2e8] sm:$0xff]
        %v4212 = vld [vmem:[%s1151 + $0x2f0] sm:$0xff]
        %v4213 = vld [vmem:[%s1151 + $0x2f8] sm:$0xff]
        %v4214 = vld [vmem:[%s1151 + $0x300] sm:$0xff]
        %v4215 = vld [vmem:[%s1151 + $0x308] sm:$0xff]
        %v4216 = vld [vmem:[%s1151 + $0x310] sm:$0xff]
        %v4217 = vld [vmem:[%s1151 + $0x318] sm:$0xff]
        %v4218 = vld [vmem:[%s1151 + $0x320] sm:$0xff]
        %v4219 = vld [vmem:[%s1151 + $0x328] sm:$0xff]
        %v4220 = vld [vmem:[%s1151 + $0x330] sm:$0xff]
        %v4221 = vld [vmem:[%s1151 + $0x338] sm:$0xff]
        %v4222 = vld [vmem:[%s1151 + $0x340] sm:$0xff]
        %v4223 = vld [vmem:[%s1151 + $0x348] sm:$0xff]
        %v4224 = vld [vmem:[%s1151 + $0x350] sm:$0xff]
        %v4225 = vld [vmem:[%s1151 + $0x358] sm:$0xff]
        %v4226 = vld [vmem:[%s1151 + $0x360] sm:$0xff]
        %v4227 = vld [vmem:[%s1151 + $0x368] sm:$0xff]
        %v4228 = vld [vmem:[%s1151 + $0x370] sm:$0xff]
        %v4229 = vld [vmem:[%s1151 + $0x378] sm:$0xff]
        %v4230 = vld [vmem:[%s1151 + $0x380] sm:$0xff]
        %v4231 = vld [vmem:[%s1151 + $0x388] sm:$0xff]
        %v4232 = vld [vmem:[%s1151 + $0x390] sm:$0xff]
        %v4233 = vld [vmem:[%s1151 + $0x398] sm:$0xff]
        %v4234 = vld [vmem:[%s1151 + $0x3a0] sm:$0xff]
        %v4235 = vld [vmem:[%s1151 + $0x3a8] sm:$0xff]
        %v4236 = vld [vmem:[%s1151 + $0x3b0] sm:$0xff]
        %v4237 = vld [vmem:[%s1151 + $0x3b8] sm:$0xff]
        %v4238 = vld [vmem:[%s1151 + $0x3c0] sm:$0xff]
        %v4239 = vld [vmem:[%s1151 + $0x3c8] sm:$0xff]
        %v4240 = vld [vmem:[%s1151 + $0x3d0] sm:$0xff]
        %v4241 = vld [vmem:[%s1151 + $0x3d8] sm:$0xff]
        %v4242 = vld [vmem:[%s1151 + $0x3e0] sm:$0xff]
        %v4243 = vld [vmem:[%s1151 + $0x3e8] sm:$0xff]
        %v4244 = vld [vmem:[%s1151 + $0x3f0] sm:$0xff]
        %v4245 = vld [vmem:[%s1151 + $0x3f8] sm:$0xff]
        %v4246 = vld [vmem:[%s1161] sm:$0x3]
        %v4248 = vperm.slane %v4246, 0
        %v4249 = vperm.slane %v4246, 1
        %v4380 = vunpack.c.l.b16 %v4118
        %v4381 = vunpack.c.h.b16 %v4118
        %v4382 = vunpack.c.l.b16 %v4119
        %v4383 = vunpack.c.h.b16 %v4119
        %v4384 = vunpack.c.l.b16 %v4120
        %v4385 = vunpack.c.h.b16 %v4120
        %v4386 = vunpack.c.l.b16 %v4121
        %v4387 = vunpack.c.h.b16 %v4121
        %v4388 = vunpack.c.l.b16 %v4122
        %v4389 = vunpack.c.h.b16 %v4122
        %v4390 = vunpack.c.l.b16 %v4123
        %v4391 = vunpack.c.h.b16 %v4123
        %v4392 = vunpack.c.l.b16 %v4124
        %v4393 = vunpack.c.h.b16 %v4124
        %v4394 = vunpack.c.l.b16 %v4125
        %v4395 = vunpack.c.h.b16 %v4125
        %v4396 = vunpack.c.l.b16 %v4126
        %v4397 = vunpack.c.h.b16 %v4126
        %v4398 = vunpack.c.l.b16 %v4127
        %v4399 = vunpack.c.h.b16 %v4127
        %v4400 = vunpack.c.l.b16 %v4128
        %v4401 = vunpack.c.h.b16 %v4128
        %v4402 = vunpack.c.l.b16 %v4129
        %v4403 = vunpack.c.h.b16 %v4129
        %v4404 = vunpack.c.l.b16 %v4130
        %v4405 = vunpack.c.h.b16 %v4130
        %v4406 = vunpack.c.l.b16 %v4131
        %v4407 = vunpack.c.h.b16 %v4131
        %v4408 = vunpack.c.l.b16 %v4132
        %v4409 = vunpack.c.h.b16 %v4132
        %v4410 = vunpack.c.l.b16 %v4133
        %v4411 = vunpack.c.h.b16 %v4133
        %v4412 = vunpack.c.l.b16 %v4134
        %v4413 = vunpack.c.h.b16 %v4134
        %v4414 = vunpack.c.l.b16 %v4135
        %v4415 = vunpack.c.h.b16 %v4135
        %v4416 = vunpack.c.l.b16 %v4136
        %v4417 = vunpack.c.h.b16 %v4136
        %v4418 = vunpack.c.l.b16 %v4137
        %v4419 = vunpack.c.h.b16 %v4137
        %v4420 = vunpack.c.l.b16 %v4138
        %v4421 = vunpack.c.h.b16 %v4138
        %v4422 = vunpack.c.l.b16 %v4139
        %v4423 = vunpack.c.h.b16 %v4139
        %v4424 = vunpack.c.l.b16 %v4140
        %v4425 = vunpack.c.h.b16 %v4140
        %v4426 = vunpack.c.l.b16 %v4141
        %v4427 = vunpack.c.h.b16 %v4141
        %v4428 = vunpack.c.l.b16 %v4142
        %v4429 = vunpack.c.h.b16 %v4142
        %v4430 = vunpack.c.l.b16 %v4143
        %v4431 = vunpack.c.h.b16 %v4143
        %v4432 = vunpack.c.l.b16 %v4144
        %v4433 = vunpack.c.h.b16 %v4144
        %v4434 = vunpack.c.l.b16 %v4145
        %v4435 = vunpack.c.h.b16 %v4145
        %v4436 = vunpack.c.l.b16 %v4146
        %v4437 = vunpack.c.h.b16 %v4146
        %v4438 = vunpack.c.l.b16 %v4147
        %v4439 = vunpack.c.h.b16 %v4147
        %v4440 = vunpack.c.l.b16 %v4148
        %v4441 = vunpack.c.h.b16 %v4148
        %v4442 = vunpack.c.l.b16 %v4149
        %v4443 = vunpack.c.h.b16 %v4149
        %v4444 = vunpack.c.l.b16 %v4150
        %v4445 = vunpack.c.h.b16 %v4150
        %v4446 = vunpack.c.l.b16 %v4151
        %v4447 = vunpack.c.h.b16 %v4151
        %v4448 = vunpack.c.l.b16 %v4152
        %v4449 = vunpack.c.h.b16 %v4152
        %v4450 = vunpack.c.l.b16 %v4153
        %v4451 = vunpack.c.h.b16 %v4153
        %v4452 = vunpack.c.l.b16 %v4154
        %v4453 = vunpack.c.h.b16 %v4154
        %v4454 = vunpack.c.l.b16 %v4155
        %v4455 = vunpack.c.h.b16 %v4155
        %v4456 = vunpack.c.l.b16 %v4156
        %v4457 = vunpack.c.h.b16 %v4156
        %v4458 = vunpack.c.l.b16 %v4157
        %v4459 = vunpack.c.h.b16 %v4157
        %v4460 = vunpack.c.l.b16 %v4158
        %v4461 = vunpack.c.h.b16 %v4158
        %v4462 = vunpack.c.l.b16 %v4159
        %v4463 = vunpack.c.h.b16 %v4159
        %v4464 = vunpack.c.l.b16 %v4160
        %v4465 = vunpack.c.h.b16 %v4160
        %v4466 = vunpack.c.l.b16 %v4161
        %v4467 = vunpack.c.h.b16 %v4161
        %v4468 = vunpack.c.l.b16 %v4162
        %v4469 = vunpack.c.h.b16 %v4162
        %v4470 = vunpack.c.l.b16 %v4163
        %v4471 = vunpack.c.h.b16 %v4163
        %v4472 = vunpack.c.l.b16 %v4164
        %v4473 = vunpack.c.h.b16 %v4164
        %v4474 = vunpack.c.l.b16 %v4165
        %v4475 = vunpack.c.h.b16 %v4165
        %v4476 = vunpack.c.l.b16 %v4166
        %v4477 = vunpack.c.h.b16 %v4166
        %v4478 = vunpack.c.l.b16 %v4167
        %v4479 = vunpack.c.h.b16 %v4167
        %v4480 = vunpack.c.l.b16 %v4168
        %v4481 = vunpack.c.h.b16 %v4168
        %v4482 = vunpack.c.l.b16 %v4169
        %v4483 = vunpack.c.h.b16 %v4169
        %v4484 = vunpack.c.l.b16 %v4170
        %v4485 = vunpack.c.h.b16 %v4170
        %v4486 = vunpack.c.l.b16 %v4171
        %v4487 = vunpack.c.h.b16 %v4171
        %v4488 = vunpack.c.l.b16 %v4172
        %v4489 = vunpack.c.h.b16 %v4172
        %v4490 = vunpack.c.l.b16 %v4173
        %v4491 = vunpack.c.h.b16 %v4173
        %v4492 = vunpack.c.l.b16 %v4174
        %v4493 = vunpack.c.h.b16 %v4174
        %v4494 = vunpack.c.l.b16 %v4175
        %v4495 = vunpack.c.h.b16 %v4175
        %v4496 = vunpack.c.l.b16 %v4176
        %v4497 = vunpack.c.h.b16 %v4176
        %v4498 = vunpack.c.l.b16 %v4177
        %v4499 = vunpack.c.h.b16 %v4177
        %v4500 = vunpack.c.l.b16 %v4178
        %v4501 = vunpack.c.h.b16 %v4178
        %v4502 = vunpack.c.l.b16 %v4179
        %v4503 = vunpack.c.h.b16 %v4179
        %v4504 = vunpack.c.l.b16 %v4180
        %v4505 = vunpack.c.h.b16 %v4180
        %v4506 = vunpack.c.l.b16 %v4181
        %v4507 = vunpack.c.h.b16 %v4181
        %v4508 = vunpack.c.l.b16 %v4182
        %v4509 = vunpack.c.h.b16 %v4182
        %v4510 = vunpack.c.l.b16 %v4183
        %v4511 = vunpack.c.h.b16 %v4183
        %v4512 = vunpack.c.l.b16 %v4184
        %v4513 = vunpack.c.h.b16 %v4184
        %v4514 = vunpack.c.l.b16 %v4185
        %v4515 = vunpack.c.h.b16 %v4185
        %v4516 = vunpack.c.l.b16 %v4186
        %v4517 = vunpack.c.h.b16 %v4186
        %v4518 = vunpack.c.l.b16 %v4187
        %v4519 = vunpack.c.h.b16 %v4187
        %v4520 = vunpack.c.l.b16 %v4188
        %v4521 = vunpack.c.h.b16 %v4188
        %v4522 = vunpack.c.l.b16 %v4189
        %v4523 = vunpack.c.h.b16 %v4189
        %v4524 = vunpack.c.l.b16 %v4190
        %v4525 = vunpack.c.h.b16 %v4190
        %v4526 = vunpack.c.l.b16 %v4191
        %v4527 = vunpack.c.h.b16 %v4191
        %v4528 = vunpack.c.l.b16 %v4192
        %v4529 = vunpack.c.h.b16 %v4192
        %v4530 = vunpack.c.l.b16 %v4193
        %v4531 = vunpack.c.h.b16 %v4193
        %v4532 = vunpack.c.l.b16 %v4194
        %v4533 = vunpack.c.h.b16 %v4194
        %v4534 = vunpack.c.l.b16 %v4195
        %v4535 = vunpack.c.h.b16 %v4195
        %v4536 = vunpack.c.l.b16 %v4196
        %v4537 = vunpack.c.h.b16 %v4196
        %v4538 = vunpack.c.l.b16 %v4197
        %v4539 = vunpack.c.h.b16 %v4197
        %v4540 = vunpack.c.l.b16 %v4198
        %v4541 = vunpack.c.h.b16 %v4198
        %v4542 = vunpack.c.l.b16 %v4199
        %v4543 = vunpack.c.h.b16 %v4199
        %v4544 = vunpack.c.l.b16 %v4200
        %v4545 = vunpack.c.h.b16 %v4200
        %v4546 = vunpack.c.l.b16 %v4201
        %v4547 = vunpack.c.h.b16 %v4201
        %v4548 = vunpack.c.l.b16 %v4202
        %v4549 = vunpack.c.h.b16 %v4202
        %v4550 = vunpack.c.l.b16 %v4203
        %v4551 = vunpack.c.h.b16 %v4203
        %v4552 = vunpack.c.l.b16 %v4204
        %v4553 = vunpack.c.h.b16 %v4204
        %v4554 = vunpack.c.l.b16 %v4205
        %v4555 = vunpack.c.h.b16 %v4205
        %v4556 = vunpack.c.l.b16 %v4206
        %v4557 = vunpack.c.h.b16 %v4206
        %v4558 = vunpack.c.l.b16 %v4207
        %v4559 = vunpack.c.h.b16 %v4207
        %v4560 = vunpack.c.l.b16 %v4208
        %v4561 = vunpack.c.h.b16 %v4208
        %v4562 = vunpack.c.l.b16 %v4209
        %v4563 = vunpack.c.h.b16 %v4209
        %v4564 = vunpack.c.l.b16 %v4210
        %v4565 = vunpack.c.h.b16 %v4210
        %v4566 = vunpack.c.l.b16 %v4211
        %v4567 = vunpack.c.h.b16 %v4211
        %v4568 = vunpack.c.l.b16 %v4212
        %v4569 = vunpack.c.h.b16 %v4212
        %v4570 = vunpack.c.l.b16 %v4213
        %v4571 = vunpack.c.h.b16 %v4213
        %v4572 = vunpack.c.l.b16 %v4214
        %v4573 = vunpack.c.h.b16 %v4214
        %v4574 = vunpack.c.l.b16 %v4215
        %v4575 = vunpack.c.h.b16 %v4215
        %v4576 = vunpack.c.l.b16 %v4216
        %v4577 = vunpack.c.h.b16 %v4216
        %v4578 = vunpack.c.l.b16 %v4217
        %v4579 = vunpack.c.h.b16 %v4217
        %v4580 = vunpack.c.l.b16 %v4218
        %v4581 = vunpack.c.h.b16 %v4218
        %v4582 = vunpack.c.l.b16 %v4219
        %v4583 = vunpack.c.h.b16 %v4219
        %v4584 = vunpack.c.l.b16 %v4220
        %v4585 = vunpack.c.h.b16 %v4220
        %v4586 = vunpack.c.l.b16 %v4221
        %v4587 = vunpack.c.h.b16 %v4221
        %v4588 = vunpack.c.l.b16 %v4222
        %v4589 = vunpack.c.h.b16 %v4222
        %v4590 = vunpack.c.l.b16 %v4223
        %v4591 = vunpack.c.h.b16 %v4223
        %v4592 = vunpack.c.l.b16 %v4224
        %v4593 = vunpack.c.h.b16 %v4224
        %v4594 = vunpack.c.l.b16 %v4225
        %v4595 = vunpack.c.h.b16 %v4225
        %v4596 = vunpack.c.l.b16 %v4226
        %v4597 = vunpack.c.h.b16 %v4226
        %v4598 = vunpack.c.l.b16 %v4227
        %v4599 = vunpack.c.h.b16 %v4227
        %v4600 = vunpack.c.l.b16 %v4228
        %v4601 = vunpack.c.h.b16 %v4228
        %v4602 = vunpack.c.l.b16 %v4229
        %v4603 = vunpack.c.h.b16 %v4229
        %v4604 = vunpack.c.l.b16 %v4230
        %v4605 = vunpack.c.h.b16 %v4230
        %v4606 = vunpack.c.l.b16 %v4231
        %v4607 = vunpack.c.h.b16 %v4231
        %v4608 = vunpack.c.l.b16 %v4232
        %v4609 = vunpack.c.h.b16 %v4232
        %v4610 = vunpack.c.l.b16 %v4233
        %v4611 = vunpack.c.h.b16 %v4233
        %v4612 = vunpack.c.l.b16 %v4234
        %v4613 = vunpack.c.h.b16 %v4234
        %v4614 = vunpack.c.l.b16 %v4235
        %v4615 = vunpack.c.h.b16 %v4235
        %v4616 = vunpack.c.l.b16 %v4236
        %v4617 = vunpack.c.h.b16 %v4236
        %v4618 = vunpack.c.l.b16 %v4237
        %v4619 = vunpack.c.h.b16 %v4237
        %v4620 = vunpack.c.l.b16 %v4238
        %v4621 = vunpack.c.h.b16 %v4238
        %v4622 = vunpack.c.l.b16 %v4239
        %v4623 = vunpack.c.h.b16 %v4239
        %v4624 = vunpack.c.l.b16 %v4240
        %v4625 = vunpack.c.h.b16 %v4240
        %v4626 = vunpack.c.l.b16 %v4241
        %v4627 = vunpack.c.h.b16 %v4241
        %v4628 = vunpack.c.l.b16 %v4242
        %v4629 = vunpack.c.h.b16 %v4242
        %v4630 = vunpack.c.l.b16 %v4243
        %v4631 = vunpack.c.h.b16 %v4243
        %v4632 = vunpack.c.l.b16 %v4244
        %v4633 = vunpack.c.h.b16 %v4244
        %v4634 = vunpack.c.l.b16 %v4245
        %v4635 = vunpack.c.h.b16 %v4245
        %v4636 = vpack.c.b16 %v4382, %v4380
        %v4637 = vpack.c.b16 %v4383, %v4381
        %v4638 = vpack.c.b16 %v4386, %v4384
        %v4639 = vpack.c.b16 %v4387, %v4385
        %v4640 = vpack.c.b16 %v4390, %v4388
        %v4641 = vpack.c.b16 %v4391, %v4389
        %v4642 = vpack.c.b16 %v4394, %v4392
        %v4643 = vpack.c.b16 %v4395, %v4393
        %v4644 = vpack.c.b16 %v4398, %v4396
        %v4645 = vpack.c.b16 %v4399, %v4397
        %v4646 = vpack.c.b16 %v4402, %v4400
        %v4647 = vpack.c.b16 %v4403, %v4401
        %v4648 = vpack.c.b16 %v4406, %v4404
        %v4649 = vpack.c.b16 %v4407, %v4405
        %v4650 = vpack.c.b16 %v4410, %v4408
        %v4651 = vpack.c.b16 %v4411, %v4409
        %v4652 = vpack.c.b16 %v4414, %v4412
        %v4653 = vpack.c.b16 %v4415, %v4413
        %v4654 = vpack.c.b16 %v4418, %v4416
        %v4655 = vpack.c.b16 %v4419, %v4417
        %v4656 = vpack.c.b16 %v4422, %v4420
        %v4657 = vpack.c.b16 %v4423, %v4421
        %v4658 = vpack.c.b16 %v4426, %v4424
        %v4659 = vpack.c.b16 %v4427, %v4425
        %v4660 = vpack.c.b16 %v4430, %v4428
        %v4661 = vpack.c.b16 %v4431, %v4429
        %v4662 = vpack.c.b16 %v4434, %v4432
        %v4663 = vpack.c.b16 %v4435, %v4433
        %v4664 = vpack.c.b16 %v4438, %v4436
        %v4665 = vpack.c.b16 %v4439, %v4437
        %v4666 = vpack.c.b16 %v4442, %v4440
        %v4667 = vpack.c.b16 %v4443, %v4441
        %v4668 = vpack.c.b16 %v4446, %v4444
        %v4669 = vpack.c.b16 %v4447, %v4445
        %v4670 = vpack.c.b16 %v4450, %v4448
        %v4671 = vpack.c.b16 %v4451, %v4449
        %v4672 = vpack.c.b16 %v4454, %v4452
        %v4673 = vpack.c.b16 %v4455, %v4453
        %v4674 = vpack.c.b16 %v4458, %v4456
        %v4675 = vpack.c.b16 %v4459, %v4457
        %v4676 = vpack.c.b16 %v4462, %v4460
        %v4677 = vpack.c.b16 %v4463, %v4461
        %v4678 = vpack.c.b16 %v4466, %v4464
        %v4679 = vpack.c.b16 %v4467, %v4465
        %v4680 = vpack.c.b16 %v4470, %v4468
        %v4681 = vpack.c.b16 %v4471, %v4469
        %v4682 = vpack.c.b16 %v4474, %v4472
        %v4683 = vpack.c.b16 %v4475, %v4473
        %v4684 = vpack.c.b16 %v4478, %v4476
        %v4685 = vpack.c.b16 %v4479, %v4477
        %v4686 = vpack.c.b16 %v4482, %v4480
        %v4687 = vpack.c.b16 %v4483, %v4481
        %v4688 = vpack.c.b16 %v4486, %v4484
        %v4689 = vpack.c.b16 %v4487, %v4485
        %v4690 = vpack.c.b16 %v4490, %v4488
        %v4691 = vpack.c.b16 %v4491, %v4489
        %v4692 = vpack.c.b16 %v4494, %v4492
        %v4693 = vpack.c.b16 %v4495, %v4493
        %v4694 = vpack.c.b16 %v4498, %v4496
        %v4695 = vpack.c.b16 %v4499, %v4497
        %v4696 = vpack.c.b16 %v4502, %v4500
        %v4697 = vpack.c.b16 %v4503, %v4501
        %v4698 = vpack.c.b16 %v4506, %v4504
        %v4699 = vpack.c.b16 %v4507, %v4505
        %v4700 = vpack.c.b16 %v4510, %v4508
        %v4701 = vpack.c.b16 %v4511, %v4509
        %v4702 = vpack.c.b16 %v4514, %v4512
        %v4703 = vpack.c.b16 %v4515, %v4513
        %v4704 = vpack.c.b16 %v4518, %v4516
        %v4705 = vpack.c.b16 %v4519, %v4517
        %v4706 = vpack.c.b16 %v4522, %v4520
        %v4707 = vpack.c.b16 %v4523, %v4521
        %v4708 = vpack.c.b16 %v4526, %v4524
        %v4709 = vpack.c.b16 %v4527, %v4525
        %v4710 = vpack.c.b16 %v4530, %v4528
        %v4711 = vpack.c.b16 %v4531, %v4529
        %v4712 = vpack.c.b16 %v4534, %v4532
        %v4713 = vpack.c.b16 %v4535, %v4533
        %v4714 = vpack.c.b16 %v4538, %v4536
        %v4715 = vpack.c.b16 %v4539, %v4537
        %v4716 = vpack.c.b16 %v4542, %v4540
        %v4717 = vpack.c.b16 %v4543, %v4541
        %v4718 = vpack.c.b16 %v4546, %v4544
        %v4719 = vpack.c.b16 %v4547, %v4545
        %v4720 = vpack.c.b16 %v4550, %v4548
        %v4721 = vpack.c.b16 %v4551, %v4549
        %v4722 = vpack.c.b16 %v4554, %v4552
        %v4723 = vpack.c.b16 %v4555, %v4553
        %v4724 = vpack.c.b16 %v4558, %v4556
        %v4725 = vpack.c.b16 %v4559, %v4557
        %v4726 = vpack.c.b16 %v4562, %v4560
        %v4727 = vpack.c.b16 %v4563, %v4561
        %v4728 = vpack.c.b16 %v4566, %v4564
        %v4729 = vpack.c.b16 %v4567, %v4565
        %v4730 = vpack.c.b16 %v4570, %v4568
        %v4731 = vpack.c.b16 %v4571, %v4569
        %v4732 = vpack.c.b16 %v4574, %v4572
        %v4733 = vpack.c.b16 %v4575, %v4573
        %v4734 = vpack.c.b16 %v4578, %v4576
        %v4735 = vpack.c.b16 %v4579, %v4577
        %v4736 = vpack.c.b16 %v4582, %v4580
        %v4737 = vpack.c.b16 %v4583, %v4581
        %v4738 = vpack.c.b16 %v4586, %v4584
        %v4739 = vpack.c.b16 %v4587, %v4585
        %v4740 = vpack.c.b16 %v4590, %v4588
        %v4741 = vpack.c.b16 %v4591, %v4589
        %v4742 = vpack.c.b16 %v4594, %v4592
        %v4743 = vpack.c.b16 %v4595, %v4593
        %v4744 = vpack.c.b16 %v4598, %v4596
        %v4745 = vpack.c.b16 %v4599, %v4597
        %v4746 = vpack.c.b16 %v4602, %v4600
        %v4747 = vpack.c.b16 %v4603, %v4601
        %v4748 = vpack.c.b16 %v4606, %v4604
        %v4749 = vpack.c.b16 %v4607, %v4605
        %v4750 = vpack.c.b16 %v4610, %v4608
        %v4751 = vpack.c.b16 %v4611, %v4609
        %v4752 = vpack.c.b16 %v4614, %v4612
        %v4753 = vpack.c.b16 %v4615, %v4613
        %v4754 = vpack.c.b16 %v4618, %v4616
        %v4755 = vpack.c.b16 %v4619, %v4617
        %v4756 = vpack.c.b16 %v4622, %v4620
        %v4757 = vpack.c.b16 %v4623, %v4621
        %v4758 = vpack.c.b16 %v4626, %v4624
        %v4759 = vpack.c.b16 %v4627, %v4625
        %v4760 = vpack.c.b16 %v4630, %v4628
        %v4761 = vpack.c.b16 %v4631, %v4629
        %v4762 = vpack.c.b16 %v4634, %v4632
        %v4763 = vpack.c.b16 %v4635, %v4633
        %4892 = vmatpush.bf16.msra.mxu0 %v4650
        %4893 = vmatpush.bf16.msra.mxu0 %v4648
        %4894 = vmatpush.bf16.msra.mxu0 %v4646
        %4895 = vmatpush.bf16.msra.mxu0 %v4644
        %4896 = vmatpush.bf16.msra.mxu0 %v4642
        %4897 = vmatpush.bf16.msra.mxu0 %v4640
        %4898 = vmatpush.bf16.msra.mxu0 %v4638
        %4899 = vmatpush.bf16.msra.mxu0 %v4636
        %4900 = vmatmul.bf16.gmra.mxu0 %v4110
        %v4901 = vpop.f32.mrf.mxu0
        %v4902 = vadd.f32 %v4248, %v4901
        %v4903 = vpop.f32.mrf.mxu0
        %v4904 = vadd.f32 %v4248, %v4903
        %4905 = vdwg.mxu0
        %4906 = vmatpush.bf16.msra.mxu0 %v4666
        %4907 = vmatpush.bf16.msra.mxu0 %v4664
        %4908 = vmatpush.bf16.msra.mxu0 %v4662
        %4909 = vmatpush.bf16.msra.mxu0 %v4660
        %4910 = vmatpush.bf16.msra.mxu0 %v4658
        %4911 = vmatpush.bf16.msra.mxu0 %v4656
        %4912 = vmatpush.bf16.msra.mxu0 %v4654
        %4913 = vmatpush.bf16.msra.mxu0 %v4652
        %4914 = vmatmul.bf16.gmra.mxu0 %v4111
        %v4915 = vpop.f32.mrf.mxu0
        %v4916 = vadd.f32 %v4902, %v4915
        %v4917 = vpop.f32.mrf.mxu0
        %v4918 = vadd.f32 %v4904, %v4917
        %4919 = vdwg.mxu0
        %4920 = vmatpush.bf16.msra.mxu0 %v4682
        %4921 = vmatpush.bf16.msra.mxu0 %v4680
        %4922 = vmatpush.bf16.msra.mxu0 %v4678
        %4923 = vmatpush.bf16.msra.mxu0 %v4676
        %4924 = vmatpush.bf16.msra.mxu0 %v4674
        %4925 = vmatpush.bf16.msra.mxu0 %v4672
        %4926 = vmatpush.bf16.msra.mxu0 %v4670
        %4927 = vmatpush.bf16.msra.mxu0 %v4668
        %4928 = vmatmul.bf16.gmra.mxu0 %v4112
        %v4929 = vpop.f32.mrf.mxu0
        %v4930 = vadd.f32 %v4916, %v4929
        %v4931 = vpop.f32.mrf.mxu0
        %v4932 = vadd.f32 %v4918, %v4931
        %4933 = vdwg.mxu0
        %4934 = vmatpush.bf16.msra.mxu0 %v4698
        %4935 = vmatpush.bf16.msra.mxu0 %v4696
        %4936 = vmatpush.bf16.msra.mxu0 %v4694
        %4937 = vmatpush.bf16.msra.mxu0 %v4692
        %4938 = vmatpush.bf16.msra.mxu0 %v4690
        %4939 = vmatpush.bf16.msra.mxu0 %v4688
        %4940 = vmatpush.bf16.msra.mxu0 %v4686
        %4941 = vmatpush.bf16.msra.mxu0 %v4684
        %4942 = vmatmul.bf16.gmra.mxu0 %v4113
        %v4943 = vpop.f32.mrf.mxu0
        %v4944 = vadd.f32 %v4930, %v4943
        %v4945 = vpop.f32.mrf.mxu0
        %v4946 = vadd.f32 %v4932, %v4945
        %4947 = vdwg.mxu0
        %4948 = vmatpush.bf16.msra.mxu0 %v4714
        %4949 = vmatpush.bf16.msra.mxu0 %v4712
        %4950 = vmatpush.bf16.msra.mxu0 %v4710
        %4951 = vmatpush.bf16.msra.mxu0 %v4708
        %4952 = vmatpush.bf16.msra.mxu0 %v4706
        %4953 = vmatpush.bf16.msra.mxu0 %v4704
        %4954 = vmatpush.bf16.msra.mxu0 %v4702
        %4955 = vmatpush.bf16.msra.mxu0 %v4700
        %4956 = vmatmul.bf16.gmra.mxu0 %v4114
        %v4957 = vpop.f32.mrf.mxu0
        %v4958 = vadd.f32 %v4944, %v4957
        %v4959 = vpop.f32.mrf.mxu0
        %v4960 = vadd.f32 %v4946, %v4959
        %4961 = vdwg.mxu0
        %4962 = vmatpush.bf16.msra.mxu0 %v4730
        %4963 = vmatpush.bf16.msra.mxu0 %v4728
        %4964 = vmatpush.bf16.msra.mxu0 %v4726
        %4965 = vmatpush.bf16.msra.mxu0 %v4724
        %4966 = vmatpush.bf16.msra.mxu0 %v4722
        %4967 = vmatpush.bf16.msra.mxu0 %v4720
        %4968 = vmatpush.bf16.msra.mxu0 %v4718
        %4969 = vmatpush.bf16.msra.mxu0 %v4716
        %4970 = vmatmul.bf16.gmra.mxu0 %v4115
        %v4971 = vpop.f32.mrf.mxu0
        %v4972 = vadd.f32 %v4958, %v4971
        %v4973 = vpop.f32.mrf.mxu0
        %v4974 = vadd.f32 %v4960, %v4973
        %4975 = vdwg.mxu0
        %4976 = vmatpush.bf16.msra.mxu0 %v4746
        %4977 = vmatpush.bf16.msra.mxu0 %v4744
        %4978 = vmatpush.bf16.msra.mxu0 %v4742
        %4979 = vmatpush.bf16.msra.mxu0 %v4740
        %4980 = vmatpush.bf16.msra.mxu0 %v4738
        %4981 = vmatpush.bf16.msra.mxu0 %v4736
        %4982 = vmatpush.bf16.msra.mxu0 %v4734
        %4983 = vmatpush.bf16.msra.mxu0 %v4732
        %4984 = vmatmul.bf16.gmra.mxu0 %v4116
        %v4985 = vpop.f32.mrf.mxu0
        %v4986 = vadd.f32 %v4972, %v4985
        %v4987 = vpop.f32.mrf.mxu0
        %v4988 = vadd.f32 %v4974, %v4987
        %4989 = vdwg.mxu0
        %4990 = vmatpush.bf16.msra.mxu0 %v4762
        %4991 = vmatpush.bf16.msra.mxu0 %v4760
        %4992 = vmatpush.bf16.msra.mxu0 %v4758
        %4993 = vmatpush.bf16.msra.mxu0 %v4756
        %4994 = vmatpush.bf16.msra.mxu0 %v4754
        %4995 = vmatpush.bf16.msra.mxu0 %v4752
        %4996 = vmatpush.bf16.msra.mxu0 %v4750
        %4997 = vmatpush.bf16.msra.mxu0 %v4748
        %4998 = vmatmul.bf16.gmra.mxu0 %v4117
        %v4999 = vpop.f32.mrf.mxu0
        %v5000 = vadd.f32 %v4986, %v4999
        %v5001 = vpop.f32.mrf.mxu0
        %v5002 = vadd.f32 %v4988, %v5001
        %5003 = vdwg.mxu0
        %5004 = vmatpush.bf16.msra.mxu0 %v4651
        %5005 = vmatpush.bf16.msra.mxu0 %v4649
        %5006 = vmatpush.bf16.msra.mxu0 %v4647
        %5007 = vmatpush.bf16.msra.mxu0 %v4645
        %5008 = vmatpush.bf16.msra.mxu0 %v4643
        %5009 = vmatpush.bf16.msra.mxu0 %v4641
        %5010 = vmatpush.bf16.msra.mxu0 %v4639
        %5011 = vmatpush.bf16.msra.mxu0 %v4637
        %5012 = vmatmul.bf16.gmra.mxu0 %v4110
        %v5013 = vpop.f32.mrf.mxu0
        %v5014 = vadd.f32 %v4249, %v5013
        %v5015 = vpop.f32.mrf.mxu0
        %v5016 = vadd.f32 %v4249, %v5015
        %5017 = vdwg.mxu0
        %5018 = vmatpush.bf16.msra.mxu0 %v4667
        %5019 = vmatpush.bf16.msra.mxu0 %v4665
        %5020 = vmatpush.bf16.msra.mxu0 %v4663
        %5021 = vmatpush.bf16.msra.mxu0 %v4661
        %5022 = vmatpush.bf16.msra.mxu0 %v4659
        %5023 = vmatpush.bf16.msra.mxu0 %v4657
        %5024 = vmatpush.bf16.msra.mxu0 %v4655
        %5025 = vmatpush.bf16.msra.mxu0 %v4653
        %5026 = vmatmul.bf16.gmra.mxu0 %v4111
        %v5027 = vpop.f32.mrf.mxu0
        %v5028 = vadd.f32 %v5014, %v5027
        %v5029 = vpop.f32.mrf.mxu0
        %v5030 = vadd.f32 %v5016, %v5029
        %5031 = vdwg.mxu0
        %5032 = vmatpush.bf16.msra.mxu0 %v4683
        %5033 = vmatpush.bf16.msra.mxu0 %v4681
        %5034 = vmatpush.bf16.msra.mxu0 %v4679
        %5035 = vmatpush.bf16.msra.mxu0 %v4677
        %5036 = vmatpush.bf16.msra.mxu0 %v4675
        %5037 = vmatpush.bf16.msra.mxu0 %v4673
        %5038 = vmatpush.bf16.msra.mxu0 %v4671
        %5039 = vmatpush.bf16.msra.mxu0 %v4669
        %5040 = vmatmul.bf16.gmra.mxu0 %v4112
        %v5041 = vpop.f32.mrf.mxu0
        %v5042 = vadd.f32 %v5028, %v5041
        %v5043 = vpop.f32.mrf.mxu0
        %v5044 = vadd.f32 %v5030, %v5043
        %5045 = vdwg.mxu0
        %5046 = vmatpush.bf16.msra.mxu0 %v4699
        %5047 = vmatpush.bf16.msra.mxu0 %v4697
        %5048 = vmatpush.bf16.msra.mxu0 %v4695
        %5049 = vmatpush.bf16.msra.mxu0 %v4693
        %5050 = vmatpush.bf16.msra.mxu0 %v4691
        %5051 = vmatpush.bf16.msra.mxu0 %v4689
        %5052 = vmatpush.bf16.msra.mxu0 %v4687
        %5053 = vmatpush.bf16.msra.mxu0 %v4685
        %5054 = vmatmul.bf16.gmra.mxu0 %v4113
        %v5055 = vpop.f32.mrf.mxu0
        %v5056 = vadd.f32 %v5042, %v5055
        %v5057 = vpop.f32.mrf.mxu0
        %v5058 = vadd.f32 %v5044, %v5057
        %5059 = vdwg.mxu0
        %5060 = vmatpush.bf16.msra.mxu0 %v4715
        %5061 = vmatpush.bf16.msra.mxu0 %v4713
        %5062 = vmatpush.bf16.msra.mxu0 %v4711
        %5063 = vmatpush.bf16.msra.mxu0 %v4709
        %5064 = vmatpush.bf16.msra.mxu0 %v4707
        %5065 = vmatpush.bf16.msra.mxu0 %v4705
        %5066 = vmatpush.bf16.msra.mxu0 %v4703
        %5067 = vmatpush.bf16.msra.mxu0 %v4701
        %5068 = vmatmul.bf16.gmra.mxu0 %v4114
        %v5069 = vpop.f32.mrf.mxu0
        %v5070 = vadd.f32 %v5056, %v5069
        %v5071 = vpop.f32.mrf.mxu0
        %v5072 = vadd.f32 %v5058, %v5071
        %5073 = vdwg.mxu0
        %5074 = vmatpush.bf16.msra.mxu0 %v4731
        %5075 = vmatpush.bf16.msra.mxu0 %v4729
        %5076 = vmatpush.bf16.msra.mxu0 %v4727
        %5077 = vmatpush.bf16.msra.mxu0 %v4725
        %5078 = vmatpush.bf16.msra.mxu0 %v4723
        %5079 = vmatpush.bf16.msra.mxu0 %v4721
        %5080 = vmatpush.bf16.msra.mxu0 %v4719
        %5081 = vmatpush.bf16.msra.mxu0 %v4717
        %5082 = vmatmul.bf16.gmra.mxu0 %v4115
        %v5083 = vpop.f32.mrf.mxu0
        %v5084 = vadd.f32 %v5070, %v5083
        %v5085 = vpop.f32.mrf.mxu0
        %v5086 = vadd.f32 %v5072, %v5085
        %5087 = vdwg.mxu0
        %5088 = vmatpush.bf16.msra.mxu0 %v4747
        %5089 = vmatpush.bf16.msra.mxu0 %v4745
        %5090 = vmatpush.bf16.msra.mxu0 %v4743
        %5091 = vmatpush.bf16.msra.mxu0 %v4741
        %5092 = vmatpush.bf16.msra.mxu0 %v4739
        %5093 = vmatpush.bf16.msra.mxu0 %v4737
        %5094 = vmatpush.bf16.msra.mxu0 %v4735
        %5095 = vmatpush.bf16.msra.mxu0 %v4733
        %5096 = vmatmul.bf16.gmra.mxu0 %v4116
        %v5097 = vpop.f32.mrf.mxu0
        %v5098 = vadd.f32 %v5084, %v5097
        %v5099 = vpop.f32.mrf.mxu0
        %v5100 = vadd.f32 %v5086, %v5099
        %5101 = vdwg.mxu0
        %5102 = vmatpush.bf16.msra.mxu0 %v4763
        %5103 = vmatpush.bf16.msra.mxu0 %v4761
        %5104 = vmatpush.bf16.msra.mxu0 %v4759
        %5105 = vmatpush.bf16.msra.mxu0 %v4757
        %5106 = vmatpush.bf16.msra.mxu0 %v4755
        %5107 = vmatpush.bf16.msra.mxu0 %v4753
        %5108 = vmatpush.bf16.msra.mxu0 %v4751
        %5109 = vmatpush.bf16.msra.mxu0 %v4749
        %5110 = vmatmul.bf16.gmra.mxu0 %v4117
        %v5111 = vpop.f32.mrf.mxu0
        %v5112 = vadd.f32 %v5098, %v5111
        %v5113 = vpop.f32.mrf.mxu0
        %v5114 = vadd.f32 %v5100, %v5113
        %5115 = vdwg.mxu0
        %v5116 = vadd.f32 %v2950, %v5000
        %v5117 = vadd.f32 %v2951, %v5112
        %v5118 = vadd.f32 %v2952, %v5002
        %v5119 = vadd.f32 %v2953, %v5114
        %v5120 = vld [vmem:[%s1171] sm:$0x3]
        %v5121 = vld [vmem:[%s1181] sm:$0x3]
        %v5122 = vadd.f32 %v5116, %v5117
        %5123 = vadd.xlane.f32.xlu0 %v5122
        %v5124 = vpop.xlane.xlu0 %5123
        %v5125 = vadd.f32 %v5118, %v5119
        %5126 = vadd.xlane.f32.xlu0 %v5125
        %v5127 = vpop.xlane.xlu0 %5126
        %v5128 = vmul.f32 %v5124, %v2891
        %v5129 = vmul.f32 %v5127, %v2891
        %v5130 = vsub.f32 %v5116, %v5128
        %v5131 = vsub.f32 %v5117, %v5128
        %v5132 = vsub.f32 %v5118, %v5129
        %v5133 = vsub.f32 %v5119, %v5129
        %v5134 = vmul.f32 %v5130, %v5130
        %v5135 = vmul.f32 %v5131, %v5131
        %v5136 = vmul.f32 %v5132, %v5132
        %v5137 = vmul.f32 %v5133, %v5133
        %v5138 = vadd.f32 %v5134, %v5135
        %5139 = vadd.xlane.f32.xlu0 %v5138
        %v5140 = vpop.xlane.xlu0 %5139
        %v5141 = vadd.f32 %v5136, %v5137
        %5142 = vadd.xlane.f32.xlu0 %v5141
        %v5143 = vpop.xlane.xlu0 %5142
        %v5144 = vmul.f32 %v5140, %v2891
        %v5145 = vmul.f32 %v5143, %v2891
        %v5146 = vadd.f32 %v5144, 1e-12
        %v5147 = vadd.f32 %v5145, 1e-12
        %v5148 = vrsqrt.pop %v5146
        %v5149 = vmul.f32 %v5148, %v5146
        %v5150 = vmul.f32 %v5149, %v5148
        %v5151 = vmul.f32 0.5, %v5150
        %v5152 = vsub.f32 1.5, %v5151
        %v5153 = vmul.f32 %v5148, %v5152
        %vm5154 = vweird.f32 %v5146
        %vm5155 = vweird.f32 %v5148
        %vm5156 = vmor %vm5154, %vm5155
        %v5157 = vsel %vm5156, %v5148, %v5153
        %v5158 = vrsqrt.pop %v5147
        %v5159 = vmul.f32 %v5158, %v5147
        %v5160 = vmul.f32 %v5159, %v5158
        %v5161 = vmul.f32 0.5, %v5160
        %v5162 = vsub.f32 1.5, %v5161
        %v5163 = vmul.f32 %v5158, %v5162
        %vm5164 = vweird.f32 %v5147
        %vm5165 = vweird.f32 %v5158
        %vm5166 = vmor %vm5164, %vm5165
        %v5167 = vsel %vm5166, %v5158, %v5163
        %v5168 = vmul.f32 %v5130, %v5157
        %v5169 = vmul.f32 %v5131, %v5157
        %v5170 = vmul.f32 %v5132, %v5167
        %v5171 = vmul.f32 %v5133, %v5167
        %v5173 = vperm.slane %v5120, 0
        %v5174 = vperm.slane %v5120, 1
        %v5177 = vmul.f32 %v5168, %v5173
        %v5178 = vmul.f32 %v5169, %v5174
        %v5179 = vmul.f32 %v5170, %v5173
        %v5180 = vmul.f32 %v5171, %v5174
        %v5182 = vperm.slane %v5121, 0
        %v5183 = vperm.slane %v5121, 1
        %v5186 = vadd.f32 %v5177, %v5182
        %v5187 = vadd.f32 %v5178, %v5183
        %v5188 = vadd.f32 %v5179, %v5182
        %v5189 = vadd.f32 %v5180, %v5183
        %5190 = vst [vmem:[#allocation2] sm:$0xff] %v5186
        %5191 = vst [vmem:[#allocation2 + $0x8] sm:$0xff] %v5187
        %5192 = vst [vmem:[#allocation2 + $0x10] sm:$0xff] %v5188
        %5193 = vst [vmem:[#allocation2 + $0x18] sm:$0xff] %v5189
        %p5194 = scmp.eq.s32.totalorder %s63, 3
        // Predicated region
        $region193: #{bert_classifier_forward.1} parent=107 // pred_check
          %p5195 = pneg %p5194
        $region194: #{bert_classifier_forward.1} parent=107 // pred_check_branch
          %5197 = sbr.rel (%p5195) target = $region196
        $region195: #{bert_classifier_forward.1} parent=107 // pred_region
          %v5198 = vpack.c.bf16 %v5186, %v5186
          %v5199 = vpack.c.bf16 %v5187, %v5187
          %v5200 = vpack.c.bf16 %v5188, %v5188
          %v5201 = vpack.c.bf16 %v5189, %v5189
          %v5202 = vld [vmem:[#allocation29] sm:$0xf]
          %v5203 = vld [vmem:[#allocation29 + $0x4] sm:$0xf]
          %v5204 = vld [vmem:[#allocation29 + $0x8] sm:$0xf]
          %v5205 = vld [vmem:[#allocation29 + $0xc] sm:$0xf]
          %v5206 = vld [vmem:[#allocation29 + $0x10] sm:$0xf]
          %v5207 = vld [vmem:[#allocation29 + $0x14] sm:$0xf]
          %v5208 = vld [vmem:[#allocation29 + $0x18] sm:$0xf]
          %v5209 = vld [vmem:[#allocation29 + $0x1c] sm:$0xf]
          %v5210 = vld [vmem:[#allocation29 + $0x20] sm:$0xf]
          %v5211 = vld [vmem:[#allocation29 + $0x24] sm:$0xf]
          %v5212 = vld [vmem:[#allocation29 + $0x28] sm:$0xf]
          %v5213 = vld [vmem:[#allocation29 + $0x2c] sm:$0xf]
          %v5214 = vld [vmem:[#allocation29 + $0x30] sm:$0xf]
          %v5215 = vld [vmem:[#allocation29 + $0x34] sm:$0xf]
          %v5216 = vld [vmem:[#allocation29 + $0x38] sm:$0xf]
          %v5217 = vld [vmem:[#allocation29 + $0x3c] sm:$0xf]
          %v5218 = vld [vmem:[#allocation29 + $0x40] sm:$0xf]
          %v5219 = vld [vmem:[#allocation29 + $0x44] sm:$0xf]
          %v5220 = vld [vmem:[#allocation29 + $0x48] sm:$0xf]
          %v5221 = vld [vmem:[#allocation29 + $0x4c] sm:$0xf]
          %v5222 = vld [vmem:[#allocation29 + $0x50] sm:$0xf]
          %v5223 = vld [vmem:[#allocation29 + $0x54] sm:$0xf]
          %v5224 = vld [vmem:[#allocation29 + $0x58] sm:$0xf]
          %v5225 = vld [vmem:[#allocation29 + $0x5c] sm:$0xf]
          %v5226 = vld [vmem:[#allocation29 + $0x60] sm:$0xf]
          %v5227 = vld [vmem:[#allocation29 + $0x64] sm:$0xf]
          %v5228 = vld [vmem:[#allocation29 + $0x68] sm:$0xf]
          %v5229 = vld [vmem:[#allocation29 + $0x6c] sm:$0xf]
          %v5230 = vld [vmem:[#allocation29 + $0x70] sm:$0xf]
          %v5231 = vld [vmem:[#allocation29 + $0x74] sm:$0xf]
          %v5232 = vld [vmem:[#allocation29 + $0x78] sm:$0xf]
          %v5233 = vld [vmem:[#allocation29 + $0x7c] sm:$0xf]
          %v5234 = vld [vmem:[#allocation30] sm:$0x1]
          %v5236 = vperm.slane %v5234, 0
          %v5242 = vunpack.c.l.b16 %v5198
          %v5243 = vunpack.c.l.b16 %v5199
          %v5244 = vunpack.c.l.b16 %v5200
          %v5245 = vunpack.c.l.b16 %v5201
          %v5246 = vrot.slane %v5244, 7
          %vm5247 = vcmask 1041409
          %v5248 = vsel %vm5247, %v5246, %v5242
          %v5249 = vrot.slane %v5245, 7
          %v5250 = vsel %vm5247, %v5249, %v5243
          %v5251 = vpack.c.b16 %v5248, %v5248
          %v5252 = vpack.c.b16 %v5250, %v5250
          %v5287 = vunpack.c.l.b16 %v5202
          %v5288 = vunpack.c.l.b16 %v5203
          %v5289 = vunpack.c.l.b16 %v5204
          %v5290 = vunpack.c.l.b16 %v5205
          %v5291 = vunpack.c.l.b16 %v5206
          %v5292 = vunpack.c.l.b16 %v5207
          %v5293 = vunpack.c.l.b16 %v5208
          %v5294 = vunpack.c.l.b16 %v5209
          %v5295 = vunpack.c.l.b16 %v5210
          %v5296 = vunpack.c.l.b16 %v5211
          %v5297 = vunpack.c.l.b16 %v5212
          %v5298 = vunpack.c.l.b16 %v5213
          %v5299 = vunpack.c.l.b16 %v5214
          %v5300 = vunpack.c.l.b16 %v5215
          %v5301 = vunpack.c.l.b16 %v5216
          %v5302 = vunpack.c.l.b16 %v5217
          %v5303 = vunpack.c.l.b16 %v5218
          %v5304 = vunpack.c.l.b16 %v5219
          %v5305 = vunpack.c.l.b16 %v5220
          %v5306 = vunpack.c.l.b16 %v5221
          %v5307 = vunpack.c.l.b16 %v5222
          %v5308 = vunpack.c.l.b16 %v5223
          %v5309 = vunpack.c.l.b16 %v5224
          %v5310 = vunpack.c.l.b16 %v5225
          %v5311 = vunpack.c.l.b16 %v5226
          %v5312 = vunpack.c.l.b16 %v5227
          %v5313 = vunpack.c.l.b16 %v5228
          %v5314 = vunpack.c.l.b16 %v5229
          %v5315 = vunpack.c.l.b16 %v5230
          %v5316 = vunpack.c.l.b16 %v5231
          %v5317 = vunpack.c.l.b16 %v5232
          %v5318 = vunpack.c.l.b16 %v5233
          %v5319 = vpack.c.b16 %v5288, %v5287
          %v5320 = vpack.c.b16 %v5290, %v5289
          %v5321 = vpack.c.b16 %v5292, %v5291
          %v5322 = vpack.c.b16 %v5294, %v5293
          %v5323 = vpack.c.b16 %v5296, %v5295
          %v5324 = vpack.c.b16 %v5298, %v5297
          %v5325 = vpack.c.b16 %v5300, %v5299
          %v5326 = vpack.c.b16 %v5302, %v5301
          %v5327 = vpack.c.b16 %v5304, %v5303
          %v5328 = vpack.c.b16 %v5306, %v5305
          %v5329 = vpack.c.b16 %v5308, %v5307
          %v5330 = vpack.c.b16 %v5310, %v5309
          %v5331 = vpack.c.b16 %v5312, %v5311
          %v5332 = vpack.c.b16 %v5314, %v5313
          %v5333 = vpack.c.b16 %v5316, %v5315
          %v5334 = vpack.c.b16 %v5318, %v5317
          %5351 = vmatpush.bf16.msra.mxu0 %v5326
          %5352 = vmatpush.bf16.msra.mxu0 %v5325
          %5353 = vmatpush.bf16.msra.mxu0 %v5324
          %5354 = vmatpush.bf16.msra.mxu0 %v5323
          %5355 = vmatpush.bf16.msra.mxu0 %v5322
          %5356 = vmatpush.bf16.msra.mxu0 %v5321
          %5357 = vmatpush.bf16.msra.mxu0 %v5320
          %5358 = vmatpush.bf16.msra.mxu0 %v5319
          %5359 = vmatmul.bf16.gmra.mxu0 %v5251
          %v5360 = vpop.f32.mrf.mxu0
          %v5361 = vadd.f32 %v5236, %v5360
          %v5362 = vpop.f32.mrf.mxu0
          %5363 = vdwg.mxu0
          %5364 = vmatpush.bf16.msra.mxu0 %v5334
          %5365 = vmatpush.bf16.msra.mxu0 %v5333
          %5366 = vmatpush.bf16.msra.mxu0 %v5332
          %5367 = vmatpush.bf16.msra.mxu0 %v5331
          %5368 = vmatpush.bf16.msra.mxu0 %v5330
          %5369 = vmatpush.bf16.msra.mxu0 %v5329
          %5370 = vmatpush.bf16.msra.mxu0 %v5328
          %5371 = vmatpush.bf16.msra.mxu0 %v5327
          %5372 = vmatmul.bf16.gmra.mxu0 %v5252
          %v5373 = vpop.f32.mrf.mxu0
          %v5374 = vadd.f32 %v5361, %v5373
          %v5375 = vpop.f32.mrf.mxu0
          %5376 = vdwg.mxu0
          %v5377 = vmax.f32 %v5374, 0.0
          %v5378 = vpack.c.bf16 %v5377, %v5377
          %v5379 = vld [vmem:[#allocation32] sm:$0xf]
          %v5380 = vld [vmem:[#allocation32 + $0x4] sm:$0xf]
          %v5381 = vld [vmem:[#allocation32 + $0x8] sm:$0xf]
          %v5382 = vld [vmem:[#allocation32 + $0xc] sm:$0xf]
          %v5383 = vld [vmem:[#allocation32 + $0x10] sm:$0xf]
          %v5384 = vld [vmem:[#allocation32 + $0x14] sm:$0xf]
          %v5385 = vld [vmem:[#allocation32 + $0x18] sm:$0xf]
          %v5386 = vld [vmem:[#allocation32 + $0x1c] sm:$0xf]
          %v5387 = vld [vmem:[#allocation32 + $0x20] sm:$0xf]
          %v5388 = vld [vmem:[#allocation32 + $0x24] sm:$0xf]
          %v5389 = vld [vmem:[#allocation32 + $0x28] sm:$0xf]
          %v5390 = vld [vmem:[#allocation32 + $0x2c] sm:$0xf]
          %v5391 = vld [vmem:[#allocation32 + $0x30] sm:$0xf]
          %v5392 = vld [vmem:[#allocation32 + $0x34] sm:$0xf]
          %v5393 = vld [vmem:[#allocation32 + $0x38] sm:$0xf]
          %v5394 = vld [vmem:[#allocation32 + $0x3c] sm:$0xf]
          %v5395 = vld [vmem:[#allocation33] sm:$0x1]
          %v5397 = vperm.slane %v5395, 0
          %v5415 = vunpack.c.l.b16 %v5379
          %v5416 = vunpack.c.l.b16 %v5380
          %v5417 = vunpack.c.l.b16 %v5381
          %v5418 = vunpack.c.l.b16 %v5382
          %v5419 = vunpack.c.l.b16 %v5383
          %v5420 = vunpack.c.l.b16 %v5384
          %v5421 = vunpack.c.l.b16 %v5385
          %v5422 = vunpack.c.l.b16 %v5386
          %v5423 = vunpack.c.l.b16 %v5387
          %v5424 = vunpack.c.l.b16 %v5388
          %v5425 = vunpack.c.l.b16 %v5389
          %v5426 = vunpack.c.l.b16 %v5390
          %v5427 = vunpack.c.l.b16 %v5391
          %v5428 = vunpack.c.l.b16 %v5392
          %v5429 = vunpack.c.l.b16 %v5393
          %v5430 = vunpack.c.l.b16 %v5394
          %v5431 = vpack.c.b16 %v5416, %v5415
          %v5432 = vpack.c.b16 %v5418, %v5417
          %v5433 = vpack.c.b16 %v5420, %v5419
          %v5434 = vpack.c.b16 %v5422, %v5421
          %v5435 = vpack.c.b16 %v5424, %v5423
          %v5436 = vpack.c.b16 %v5426, %v5425
          %v5437 = vpack.c.b16 %v5428, %v5427
          %v5438 = vpack.c.b16 %v5430, %v5429
          %5447 = vmatpush.bf16.msra.mxu0 %v5438
          %5448 = vmatpush.bf16.msra.mxu0 %v5437
          %5449 = vmatpush.bf16.msra.mxu0 %v5436
          %5450 = vmatpush.bf16.msra.mxu0 %v5435
          %5451 = vmatpush.bf16.msra.mxu0 %v5434
          %5452 = vmatpush.bf16.msra.mxu0 %v5433
          %5453 = vmatpush.bf16.msra.mxu0 %v5432
          %5454 = vmatpush.bf16.msra.mxu0 %v5431
          %5455 = vmatmul.bf16.gmra.mxu0 %v5378
          %v5456 = vpop.f32.mrf.mxu0
          %v5457 = vadd.f32 %v5397, %v5456
          %v5458 = vpop.f32.mrf.mxu0
          %5459 = vdwg.mxu0
          %5460 = vst [vmem:[#allocation35] sm:$0x3] %v5457
        $region196: #{bert_classifier_forward.1} parent=107 // pred_fallthru
          _
        // Predicated region
        $region197: #{bert_classifier_forward.1} parent=107 // pred_check
          %p5461 = pneg %p618
        $region198: #{bert_classifier_forward.1} parent=107 // pred_check_branch
          %5463 = sbr.rel (%p5461) target = $region200
        $region199: #{bert_classifier_forward.1} parent=107 // pred_region
          %5465 = vsyncadd [#allocation5], 0
          %s5467 = sshll.u32 [#allocation35], 4
          %s5468 = int_to_ptr.vmem [resolvable:$true] %s5467
          %s5469 = sshll.u32 %s22, 4
          %s5470 = int_to_ptr.hbm [resolvable:$true] %s5469
          %5472 = dma.vmem_to_hbm [thread:$0]  %s5468, 32, %s5470, [#allocation5]
        $region200: #{bert_classifier_forward.1} parent=107 // pred_fallthru
          _
        // Predicated region
        $region201: #{bert_classifier_forward.1} parent=107 // pred_check
          %p5473 = pneg %p618
        $region202: #{bert_classifier_forward.1} parent=107 // pred_check_branch
          %5475 = sbr.rel (%p5473) target = $region204
        $region203: #{bert_classifier_forward.1} parent=107 // pred_region
          %5477 = dma.done [#allocation5], 32
        $region204: #{bert_classifier_forward.1} parent=107 // pred_fallthru
          _
      $region108: #{bert_classifier_forward.1} parent=5 // pred_fallthru
        _
      %p5478 = scmp.le.s32.totalorder 2, %s58
      // Predicated region
      $region205: #{bert_classifier_forward.1} parent=5 // pred_check
        %p5479 = pneg %p5478
      $region206: #{bert_classifier_forward.1} parent=5 // pred_check_branch
        %5481 = sbr.rel (%p5479) target = $region208
      $region207: #{bert_classifier_forward.1} parent=5 // pred_region
        %s5482 = ssub.s32 %s58, 2
      $region208: #{bert_classifier_forward.1} parent=5 // pred_fallthru
        _
    $region6: #{bert_classifier_forward.1} parent=1 // loop_footer
      %s62 = sadd.s32 1, %s58
    $region7: #{bert_classifier_forward.1} parent=1 // loop_footer_branch
      %57 = sbr.rel target = $region3
    $region8: #{bert_classifier_forward.1} parent=1 // loop_exit
      _
    %5483 = vsyncpa [#allocation4], 1
    %s5484 = scalar_lea.sflag [#allocation4], 1
    %5485 = vsyncpa %s5484, 1
    %5486 = vsyncpa [#allocation7], 1
    %s5487 = scalar_lea.sflag [#allocation7], 1
    %5488 = vsyncpa %s5487, 1
    %5489 = vsyncpa [#allocation10], 1
    %s5490 = scalar_lea.sflag [#allocation10], 1
    %5491 = vsyncpa %s5490, 1
    %5492 = vsyncpa [#allocation13], 1
    %s5493 = scalar_lea.sflag [#allocation13], 1
    %5494 = vsyncpa %s5493, 1
    %5495 = vsyncpa [#allocation16], 1
    %s5496 = scalar_lea.sflag [#allocation16], 1
    %5497 = vsyncpa %s5496, 1
    %5498 = vsyncpa [#allocation19], 1
    %s5499 = scalar_lea.sflag [#allocation19], 1
    %5500 = vsyncpa %s5499, 1
    %5501 = vsyncpa [#allocation22], 1
    %s5502 = scalar_lea.sflag [#allocation22], 1
    %5503 = vsyncpa %s5502, 1
    %5504 = vsyncpa [#allocation25], 1
    %s5505 = scalar_lea.sflag [#allocation25], 1
    %5506 = vsyncpa %s5505, 1
    %5507 = vsyncpa [#allocation28], 1
    %s5508 = scalar_lea.sflag [#allocation28], 1
    %5509 = vsyncpa %s5508, 1
    %5510 = vsyncpa [#allocation31], 1
    %5511 = vsyncpa [#allocation34], 1
    %5512 = vsyncpa [#allocation5], 1
    %s5513 = scalar_lea.sflag [#allocation5], 1
    %5514 = vsyncpa %s5513, 1

</llo_original>
